<compile_context>
chip_gen: v5e
topology: v5e:2x2
jax: 0.10.0
libtpu: 0.0.40
codegen_flags: <defaults>
</compile_context>

<pallas_src>
import math

import jax
import jax.numpy as jnp
from jax.experimental import pallas as pl
from jax.experimental.pallas import tpu as pltpu

WINDOW_SIZE = 8
EMBED_DIM = 32                       # small (module default is 96); divisible by 8 heads
NUM_HEADS = 8                        # hard-coded in the module
HEAD_DIM = EMBED_DIM // NUM_HEADS    # 4
HEAD_DIM_PAD = 8                     # pad each head to a full 8-sublane group
E_PAD = NUM_HEADS * HEAD_DIM_PAD     # 64 padded "internal" channels


# ----------------------------------------------------------------------------
# Pallas kernel: one (batch, query-tile) step of nn.MultiheadAttention forward
#   query = q (pre-rolled), key = x, value = k        (as in the reference call)
# Activations are channel-major bf16: q block (1, E, TQ); x/k blocks (1, E, S).
# Weights are pre-padded/pre-cast: Wq/Wk/Wv (E_PAD, E) bf16, biases (E_PAD, 1)
# f32, Wo (E, E_PAD) bf16, bo (E, 1) f32.
# ----------------------------------------------------------------------------
def _mha_kernel(q_ref, x_ref, k_ref,
                wq_ref, wk_ref, wv_ref,
                bq_ref, bk_ref, bv_ref,
                wo_ref, bo_ref,
                o_ref):
    q_in = q_ref[0]                       # (E, TQ)  bf16
    k_in = x_ref[0]                       # (E, S)   bf16  (key source = x)
    v_in = k_ref[0]                       # (E, S)   bf16  (value source = k)
    tq = q_in.shape[-1]
    s_len = k_in.shape[-1]
    hd_pad = wq_ref.shape[0] // NUM_HEADS

    def proj(w_ref, b_ref, a):
        # channel-major nn.Linear: y = W @ a + b ; bf16 MXU operands, f32 acc.
        y = jnp.dot(w_ref[...], a, preferred_element_type=jnp.float32)
        return (y + b_ref[...]).astype(jnp.bfloat16)      # (E_PAD, 1) lane-broadcast

    # NOTE: a fused (3E, E) QKV matmul does not apply: query/key/value come
    # from three different input tensors.  Recomputing kh/vh for the second
    # query tile is negligible (two 64x32 @ 32x256 matmuls).
    qh = proj(wq_ref, bq_ref, q_in).reshape(NUM_HEADS, hd_pad, tq)     # scale folded in Wq/bq
    kh = proj(wk_ref, bk_ref, k_in).reshape(NUM_HEADS, hd_pad, s_len)
    vh = proj(wv_ref, bv_ref, v_in).reshape(NUM_HEADS, hd_pad, s_len)  # row HEAD_DIM == 1.0

    # scores for all heads: (H, TQ, S); contraction over the padded head_dim=8
    # (padded q/k rows are zero, so scores are unchanged by the padding).
    s = jnp.einsum('hdq,hdk->hqk', qh, kh, preferred_element_type=jnp.float32)

    # Numerically-stable, *unnormalized* softmax: normalization is deferred
    # past the PV matmul so the big (H, TQ, S) tensor is never rescaled.
    m = jnp.max(s, axis=-1, keepdims=True)
    # On v6e/v7x (bf16 VPU/EUP) this exp may be computed in bf16:
    #   p = jnp.exp((s - m).astype(jnp.bfloat16))
    # kept in f32 here so the same kernel is also optimal on v5e.
    p = jnp.exp(s - m).astype(jnp.bfloat16)               # (H, TQ, S) bf16 MXU operand

    # PV matmul (contraction over all S keys).  The all-ones padded V row makes
    # row HEAD_DIM of o_h equal to the softmax denominator l = sum_k p, already
    # laid out lane-major as (H, 1, TQ).
    o_h = jnp.einsum('hdk,hqk->hdq', vh, p,
                     preferred_element_type=jnp.float32)  # (H, hd_pad, TQ)
    l = o_h[:, HEAD_DIM:HEAD_DIM + 1, :]                  # (H, 1, TQ), always >= ~1
    o_h = o_h * pl.reciprocal(l, approx=True)             # deferred normalization (tiny)

    # output projection: padded Wo columns are zero, so the padded (and the
    # l == 1 normalized) rows of o_h do not contribute.
    attn = o_h.reshape(NUM_HEADS * hd_pad, tq).astype(jnp.bfloat16)    # (E_PAD, TQ)
    out = jnp.dot(wo_ref[...], attn, preferred_element_type=jnp.float32)
    out = out + bo_ref[...]
    o_ref[0] = out.astype(o_ref.dtype)


def mha_pallas(q_seq, x_seq, k_seq, params, *, tq=128):
    """Channel-major MHA.  q_seq/x_seq/k_seq: (B, E, S) bf16. Returns (B, E, S) f32."""
    B, E, S = q_seq.shape
    wq, wk, wv, bq, bk, bv, wo, bo = params
    e_pad = wq.shape[0]
    tq = min(tq, S)
    assert S % tq == 0, "sequence length must be divisible by the query tile"

    q_spec = pl.BlockSpec((1, E, tq), lambda b, t: (b, 0, t))
    kv_spec = pl.BlockSpec((1, E, S), lambda b, t: (b, 0, 0))
    w_in_spec = pl.BlockSpec((e_pad, E), lambda b, t: (0, 0))
    b_in_spec = pl.BlockSpec((e_pad, 1), lambda b, t: (0, 0))
    w_out_spec = pl.BlockSpec((E, e_pad), lambda b, t: (0, 0))
    b_out_spec = pl.BlockSpec((E, 1), lambda b, t: (0, 0))
    out_spec = pl.BlockSpec((1, E, tq), lambda b, t: (b, 0, t))

    return pl.pallas_call(
        _mha_kernel,
        out_shape=jax.ShapeDtypeStruct((B, E, S), jnp.float32),
        grid_spec=pltpu.PrefetchScalarGridSpec(
            num_scalar_prefetch=0,
            grid=(B, S // tq),                 # 4 parallel steps for B=2, S=256
            in_specs=[q_spec, kv_spec, kv_spec,
                      w_in_spec, w_in_spec, w_in_spec,
                      b_in_spec, b_in_spec, b_in_spec,
                      w_out_spec, b_out_spec],
            out_specs=out_spec,
        ),
        compiler_params=pltpu.CompilerParams(
            dimension_semantics=("parallel", "parallel")),
    )(q_seq, x_seq, k_seq, wq, wk, wv, bq, bk, bv, wo, bo)


# ----------------------------------------------------------------------------
# Module forward (thin JAX glue around the Pallas attention kernel)
# ----------------------------------------------------------------------------
def window_shift_attention_forward(x, q, k, kernel_params, window_size=WINDOW_SIZE):
    B, C, H, W = x.shape
    assert C == EMBED_DIM
    shift = window_size // 2
    S = H * W
    # TODO(synk): the reference passes a (ws, ws) int64 tensor as torch.roll
    # shifts (not valid PyTorch) and rolls the (output, weights) tuple; we
    # interpret it as a Swin-style cyclic shift by window_size//2 on (H, W),
    # undone on the attention output.
    #
    # Rolls are not applied to x/k: for global attention, rolling keys and
    # values by the same amount is a permutation of (key, value) pairs, under
    # which softmax attention is exactly invariant.  The output un-roll is
    # equivalent to pre-rolling the query by (-shift, -shift), because the
    # attention output is pointwise in the query position.
    q_pre = jnp.roll(q, (-shift, -shift), axis=(2, 3))
    out = mha_pallas(q_pre.reshape(B, C, S).astype(jnp.bfloat16),
                     x.reshape(B, C, S).astype(jnp.bfloat16),
                     k.reshape(B, C, S).astype(jnp.bfloat16),
                     kernel_params)
    return out.reshape(B, C, H, W)


# ----------------------------------------------------------------------------
# Parameters: init (nn.MultiheadAttention shapes) + one-time kernel packing
# ----------------------------------------------------------------------------
def init_params(key, embed_dim=EMBED_DIM):
    k1, k2 = jax.random.split(key, 2)
    bound = 1.0 / math.sqrt(embed_dim)
    in_proj_w = jax.random.uniform(k1, (3 * embed_dim, embed_dim),
                                   jnp.float32, -bound, bound)
    in_proj_b = jnp.zeros((3 * embed_dim,), jnp.float32)
    out_w = jax.random.uniform(k2, (embed_dim, embed_dim),
                               jnp.float32, -bound, bound)
    out_b = jnp.zeros((embed_dim,), jnp.float32)
    wq, wk, wv = jnp.split(in_proj_w, 3, axis=0)
    bq, bk, bv = jnp.split(in_proj_b, 3, axis=0)
    return (wq, wk, wv, bq, bk, bv, out_w, out_b)


def prepare_params(params):
    """One-time packing: fold 1/sqrt(head_dim) into Wq/bq, zero-pad every head
    to HEAD_DIM_PAD=8 rows (Wo columns likewise), set one padded V row per head
    to 1.0 via its bias (free softmax denominator), pre-cast weights to bf16."""
    wq, wk, wv, bq, bk, bv, wo, bo = params
    E = wq.shape[0]
    assert HEAD_DIM < HEAD_DIM_PAD, "ones-row trick needs a spare padded row"
    scale = 1.0 / math.sqrt(HEAD_DIM)

    def pad_in_proj(w, b, ones_row=False):
        w = w.reshape(NUM_HEADS, HEAD_DIM, E)
        b = b.reshape(NUM_HEADS, HEAD_DIM)
        w_p = jnp.zeros((NUM_HEADS, HEAD_DIM_PAD, E), jnp.float32).at[:, :HEAD_DIM, :].set(w)
        b_p = jnp.zeros((NUM_HEADS, HEAD_DIM_PAD), jnp.float32).at[:, :HEAD_DIM].set(b)
        if ones_row:
            b_p = b_p.at[:, HEAD_DIM].set(1.0)     # constant-1 V row -> row-sum of p
        return (w_p.reshape(E_PAD, E).astype(jnp.bfloat16),
                b_p.reshape(E_PAD, 1))

    wq_p, bq_p = pad_in_proj(wq * scale, bq * scale)
    wk_p, bk_p = pad_in_proj(wk, bk)
    wv_p, bv_p = pad_in_proj(wv, bv, ones_row=True)

    wo_p = jnp.zeros((E, NUM_HEADS, HEAD_DIM_PAD), jnp.float32)
    wo_p = wo_p.at[:, :, :HEAD_DIM].set(wo.reshape(E, NUM_HEADS, HEAD_DIM))
    wo_p = wo_p.reshape(E, E_PAD).astype(jnp.bfloat16)

    return (wq_p, wk_p, wv_p, bq_p, bk_p, bv_p, wo_p, bo.reshape(E, 1))


# ----------------------------------------------------------------------------
# Pure-JAX reference (interpreted PyTorch semantics, all rolls applied, f32)
# ----------------------------------------------------------------------------
def reference_forward(x, q, k, raw_params, window_size=WINDOW_SIZE):
    wq, wk, wv, bq, bk, bv, wo, bo = raw_params
    B, C, H, W = x.shape
    shift = window_size // 2
    S = H * W
    hd = C // NUM_HEADS
    with jax.default_matmul_precision("float32"):
        x_s = jnp.roll(x, (shift, shift), axis=(2, 3)).reshape(B, C, S)
        k_s = jnp.roll(k, (shift, shift), axis=(2, 3)).reshape(B, C, S)
        qt = jnp.swapaxes(q.reshape(B, C, S), 1, 2)      # (B, S, C) tokens
        kt = jnp.swapaxes(x_s, 1, 2)
        vt = jnp.swapaxes(k_s, 1, 2)
        qp = qt @ wq.T + bq
        kp = kt @ wk.T + bk
        vp = vt @ wv.T + bv

        def split_heads(a):
            return a.reshape(B, S, NUM_HEADS, hd).transpose(0, 2, 1, 3)

        qh, kh, vh = split_heads(qp), split_heads(kp), split_heads(vp)
        s = jnp.einsum('bhqd,bhkd->bhqk', qh, kh) / math.sqrt(hd)
        p = jax.nn.softmax(s, axis=-1)
        o = jnp.einsum('bhqk,bhkd->bhqd', p, vh)
        o = o.transpose(0, 2, 1, 3).reshape(B, S, C)
        o = o @ wo.T + bo
        attn = jnp.swapaxes(o, 1, 2).reshape(B, C, H, W)
        return jnp.roll(attn, (-shift, -shift), axis=(2, 3))


if __name__ == "__main__":
    key = jax.random.PRNGKey(0)
    kx, kq, kk, kp = jax.random.split(key, 4)

    B, C, H, W = 2, EMBED_DIM, 16, 16
    x = jax.random.normal(kx, (B, C, H, W), jnp.float32)
    q = jax.random.normal(kq, (B, C, H, W), jnp.float32)
    k = jax.random.normal(kk, (B, C, H, W), jnp.float32)

    raw_params = init_params(kp)
    params = prepare_params(raw_params)

    fwd = jax.jit(window_shift_attention_forward)
    out = fwd(x, q, k, params)
    jax.block_until_ready(out)
    assert out.shape == (B, C, H, W) and out.dtype == jnp.float32

    # Correctness vs f32 reference (bf16 MXU operands + approx reciprocal =>
    # loose-ish tolerance).
    ref = reference_forward(x, q, k, raw_params)
    err = float(jnp.max(jnp.abs(out - ref)))
    ref_scale = float(jnp.max(jnp.abs(ref)))
    assert err <= 1e-2 + 2e-2 * ref_scale, f"max|err|={err:.3e} ref_max={ref_scale:.3e}"

    print("KERNEL_OK")
</pallas_src>

<mosaic_0001>
module attributes {stable_mosaic.version = 11 : i64} {
  func.func @_mha_kernel(%arg0: i32, %arg1: i32, %arg2: memref<1x32x128xbf16, #tpu.memory_space<vmem>>, %arg3: memref<1x32x256xbf16, #tpu.memory_space<vmem>>, %arg4: memref<1x32x256xbf16, #tpu.memory_space<vmem>>, %arg5: memref<64x32xbf16, #tpu.memory_space<vmem>>, %arg6: memref<64x32xbf16, #tpu.memory_space<vmem>>, %arg7: memref<64x32xbf16, #tpu.memory_space<vmem>>, %arg8: memref<64x1xf32, #tpu.memory_space<vmem>>, %arg9: memref<64x1xf32, #tpu.memory_space<vmem>>, %arg10: memref<64x1xf32, #tpu.memory_space<vmem>>, %arg11: memref<32x64xbf16, #tpu.memory_space<vmem>>, %arg12: memref<32x1xf32, #tpu.memory_space<vmem>>, %arg13: memref<1x32x128xf32, #tpu.memory_space<vmem>>) attributes {dimension_semantics = [#tpu.dimension_semantics<parallel>, #tpu.dimension_semantics<parallel>], iteration_bounds = array<i64: 2, 2>, scalar_prefetch = 0 : i64, scratch_operands = 0 : i64, tpu.core_type = #tpu.core_type<tc>, window_params = [{transform_indices = @transform_0, window_bounds = array<i64: 1, 32, 128>}, {transform_indices = @transform_1, window_bounds = array<i64: 1, 32, 256>}, {transform_indices = @transform_2, window_bounds = array<i64: 1, 32, 256>}, {pipeline_mode = #tpu.pipeline_mode<synchronous>, transform_indices = @transform_3, window_bounds = array<i64: 64, 32>}, {pipeline_mode = #tpu.pipeline_mode<synchronous>, transform_indices = @transform_4, window_bounds = array<i64: 64, 32>}, {pipeline_mode = #tpu.pipeline_mode<synchronous>, transform_indices = @transform_5, window_bounds = array<i64: 64, 32>}, {pipeline_mode = #tpu.pipeline_mode<synchronous>, transform_indices = @transform_6, window_bounds = array<i64: 64, 1>}, {pipeline_mode = #tpu.pipeline_mode<synchronous>, transform_indices = @transform_7, window_bounds = array<i64: 64, 1>}, {pipeline_mode = #tpu.pipeline_mode<synchronous>, transform_indices = @transform_8, window_bounds = array<i64: 64, 1>}, {pipeline_mode = #tpu.pipeline_mode<synchronous>, transform_indices = @transform_9, window_bounds = array<i64: 32, 64>}, {pipeline_mode = #tpu.pipeline_mode<synchronous>, transform_indices = @transform_10, window_bounds = array<i64: 32, 1>}, {transform_indices = @transform_11, window_bounds = array<i64: 1, 32, 128>}]} {
    %c0 = arith.constant 0 : index
    %c0_0 = arith.constant 0 : index
    %c0_1 = arith.constant 0 : index
    %0 = vector.load %arg2[%c0, %c0_0, %c0_1] : memref<1x32x128xbf16, #tpu.memory_space<vmem>>, vector<1x32x128xbf16>
    %1 = vector.shape_cast %0 : vector<1x32x128xbf16> to vector<32x128xbf16>
    %c0_2 = arith.constant 0 : index
    %c0_3 = arith.constant 0 : index
    %c0_4 = arith.constant 0 : index
    %2 = vector.load %arg3[%c0_2, %c0_3, %c0_4] : memref<1x32x256xbf16, #tpu.memory_space<vmem>>, vector<1x32x256xbf16>
    %3 = vector.shape_cast %2 : vector<1x32x256xbf16> to vector<32x256xbf16>
    %c0_5 = arith.constant 0 : index
    %c0_6 = arith.constant 0 : index
    %c0_7 = arith.constant 0 : index
    %4 = vector.load %arg4[%c0_5, %c0_6, %c0_7] : memref<1x32x256xbf16, #tpu.memory_space<vmem>>, vector<1x32x256xbf16>
    %5 = vector.shape_cast %4 : vector<1x32x256xbf16> to vector<32x256xbf16>
    %c0_8 = arith.constant 0 : index
    %c0_9 = arith.constant 0 : index
    %6 = vector.load %arg5[%c0_8, %c0_9] : memref<64x32xbf16, #tpu.memory_space<vmem>>, vector<64x32xbf16>
    %cst = arith.constant dense<0.000000e+00> : vector<64x128xf32>
    %7 = tpu.matmul %6, %1, %cst {dimension_numbers = #tpu.dot_dimension_numbers<[1], [0], [0], [1], [0, 0, 1, 1], [], []>} : vector<64x32xbf16>, vector<32x128xbf16>, vector<64x128xf32> -> vector<64x128xf32>
    %c0_10 = arith.constant 0 : index
    %c0_11 = arith.constant 0 : index
    %8 = vector.load %arg8[%c0_10, %c0_11] : memref<64x1xf32, #tpu.memory_space<vmem>>, vector<64x1xf32>
    %9 = vector.broadcast %8 : vector<64x1xf32> to vector<64x128xf32>
    %10 = arith.addf %7, %9 : vector<64x128xf32>
    %11 = arith.truncf %10 : vector<64x128xf32> to vector<64x128xbf16>
    %12 = vector.shape_cast %11 : vector<64x128xbf16> to vector<8x8x128xbf16>
    %c0_12 = arith.constant 0 : index
    %c0_13 = arith.constant 0 : index
    %13 = vector.load %arg6[%c0_12, %c0_13] : memref<64x32xbf16, #tpu.memory_space<vmem>>, vector<64x32xbf16>
    %cst_14 = arith.constant dense<0.000000e+00> : vector<64x256xf32>
    %14 = tpu.matmul %13, %3, %cst_14 {dimension_numbers = #tpu.dot_dimension_numbers<[1], [0], [0], [1], [0, 0, 1, 1], [], []>} : vector<64x32xbf16>, vector<32x256xbf16>, vector<64x256xf32> -> vector<64x256xf32>
    %c0_15 = arith.constant 0 : index
    %c0_16 = arith.constant 0 : index
    %15 = vector.load %arg9[%c0_15, %c0_16] : memref<64x1xf32, #tpu.memory_space<vmem>>, vector<64x1xf32>
    %16 = vector.broadcast %15 : vector<64x1xf32> to vector<64x256xf32>
    %17 = arith.addf %14, %16 : vector<64x256xf32>
    %18 = arith.truncf %17 : vector<64x256xf32> to vector<64x256xbf16>
    %19 = vector.shape_cast %18 : vector<64x256xbf16> to vector<8x8x256xbf16>
    %c0_17 = arith.constant 0 : index
    %c0_18 = arith.constant 0 : index
    %20 = vector.load %arg7[%c0_17, %c0_18] : memref<64x32xbf16, #tpu.memory_space<vmem>>, vector<64x32xbf16>
    %cst_19 = arith.constant dense<0.000000e+00> : vector<64x256xf32>
    %21 = tpu.matmul %20, %5, %cst_19 {dimension_numbers = #tpu.dot_dimension_numbers<[1], [0], [0], [1], [0, 0, 1, 1], [], []>} : vector<64x32xbf16>, vector<32x256xbf16>, vector<64x256xf32> -> vector<64x256xf32>
    %c0_20 = arith.constant 0 : index
    %c0_21 = arith.constant 0 : index
    %22 = vector.load %arg10[%c0_20, %c0_21] : memref<64x1xf32, #tpu.memory_space<vmem>>, vector<64x1xf32>
    %23 = vector.broadcast %22 : vector<64x1xf32> to vector<64x256xf32>
    %24 = arith.addf %21, %23 : vector<64x256xf32>
    %25 = arith.truncf %24 : vector<64x256xf32> to vector<64x256xbf16>
    %26 = vector.shape_cast %25 : vector<64x256xbf16> to vector<8x8x256xbf16>
    "tpu.trace_start"() <{level = 10 : i32, message = "hdq,hdk->hqk"}> : () -> ()
    %cst_22 = arith.constant dense<0.000000e+00> : vector<8x128x256xf32>
    %27 = tpu.matmul %12, %19, %cst_22 {dimension_numbers = #tpu.dot_dimension_numbers<[1], [1], [2], [2], [0, 0, 0, 2, 1, 2], [0], [0]>} : vector<8x8x128xbf16>, vector<8x8x256xbf16>, vector<8x128x256xf32> -> vector<8x128x256xf32>
    "tpu.trace_stop"() : () -> ()
    %cst_23 = arith.constant dense<0xFF800000> : vector<8x128xf32>
    %28 = vector.multi_reduction <maximumf>, %27, %cst_23 [2] : vector<8x128x256xf32> to vector<8x128xf32>
    %29 = vector.shape_cast %28 : vector<8x128xf32> to vector<8x128x1xf32>
    %30 = vector.broadcast %29 : vector<8x128x1xf32> to vector<8x128x256xf32>
    %31 = arith.subf %27, %30 : vector<8x128x256xf32>
    %32 = math.exp %31 : vector<8x128x256xf32>
    %33 = arith.truncf %32 : vector<8x128x256xf32> to vector<8x128x256xbf16>
    "tpu.trace_start"() <{level = 10 : i32, message = "hdk,hqk->hdq"}> : () -> ()
    %cst_24 = arith.constant dense<0.000000e+00> : vector<8x8x128xf32>
    %34 = tpu.matmul %26, %33, %cst_24 {dimension_numbers = #tpu.dot_dimension_numbers<[2], [2], [1], [1], [0, 0, 0, 1, 1, 1], [0], [0]>} : vector<8x8x256xbf16>, vector<8x128x256xbf16>, vector<8x8x128xf32> -> vector<8x8x128xf32>
    "tpu.trace_stop"() : () -> ()
    %35 = vector.extract_strided_slice %34 {offsets = [0, 4, 0], sizes = [8, 1, 128], strides = [1, 1, 1]} : vector<8x8x128xf32> to vector<8x1x128xf32>
    %36 = tpu.reciprocal %35 {approx = true} : vector<8x1x128xf32> -> vector<8x1x128xf32>
    %37 = vector.broadcast %36 : vector<8x1x128xf32> to vector<8x8x128xf32>
    %38 = arith.mulf %34, %37 : vector<8x8x128xf32>
    %39 = vector.shape_cast %38 : vector<8x8x128xf32> to vector<64x128xf32>
    %40 = arith.truncf %39 : vector<64x128xf32> to vector<64x128xbf16>
    %c0_25 = arith.constant 0 : index
    %c0_26 = arith.constant 0 : index
    %41 = vector.load %arg11[%c0_25, %c0_26] : memref<32x64xbf16, #tpu.memory_space<vmem>>, vector<32x64xbf16>
    %cst_27 = arith.constant dense<0.000000e+00> : vector<32x128xf32>
    %42 = tpu.matmul %41, %40, %cst_27 {dimension_numbers = #tpu.dot_dimension_numbers<[1], [0], [0], [1], [0, 0, 1, 1], [], []>} : vector<32x64xbf16>, vector<64x128xbf16>, vector<32x128xf32> -> vector<32x128xf32>
    %c0_28 = arith.constant 0 : index
    %c0_29 = arith.constant 0 : index
    %43 = vector.load %arg12[%c0_28, %c0_29] : memref<32x1xf32, #tpu.memory_space<vmem>>, vector<32x1xf32>
    %44 = vector.broadcast %43 : vector<32x1xf32> to vector<32x128xf32>
    %45 = arith.addf %42, %44 : vector<32x128xf32>
    %c0_30 = arith.constant 0 : index
    %c0_31 = arith.constant 0 : index
    %c0_32 = arith.constant 0 : index
    %46 = vector.load %arg13[%c0_30, %c0_31, %c0_32] : memref<1x32x128xf32, #tpu.memory_space<vmem>>, vector<1x32x128xf32>
    %47 = vector.shape_cast %46 : vector<1x32x128xf32> to vector<32x128xf32>
    %48 = vector.shape_cast %45 : vector<32x128xf32> to vector<1x32x128xf32>
    tpu.vector_store %arg13[%c0_30, %c0_31, %c0_32], %48 {strides = array<i32>} : memref<1x32x128xf32, #tpu.memory_space<vmem>>, vector<1x32x128xf32>,
    return
  }
  func.func @transform_0(%arg0: i32, %arg1: i32) -> (i32, i32, i32) {
    %c0_i32 = arith.constant 0 : i32
    %c0_i32_0 = arith.constant 0 : i32
    return %arg0, %c0_i32, %arg1 : i32, i32, i32
  }
  func.func @transform_1(%arg0: i32, %arg1: i32) -> (i32, i32, i32) {
    %c0_i32 = arith.constant 0 : i32
    %c0_i32_0 = arith.constant 0 : i32
    %c0_i32_1 = arith.constant 0 : i32
    return %arg0, %c0_i32, %c0_i32_0 : i32, i32, i32
  }
  func.func @transform_2(%arg0: i32, %arg1: i32) -> (i32, i32, i32) {
    %c0_i32 = arith.constant 0 : i32
    %c0_i32_0 = arith.constant 0 : i32
    %c0_i32_1 = arith.constant 0 : i32
    return %arg0, %c0_i32, %c0_i32_0 : i32, i32, i32
  }
  func.func @transform_3(%arg0: i32, %arg1: i32) -> (i32, i32) {
    %c0_i32 = arith.constant 0 : i32
    %c0_i32_0 = arith.constant 0 : i32
    %c0_i32_1 = arith.constant 0 : i32
    return %c0_i32, %c0_i32_0 : i32, i32
  }
  func.func @transform_4(%arg0: i32, %arg1: i32) -> (i32, i32) {
    %c0_i32 = arith.constant 0 : i32
    %c0_i32_0 = arith.constant 0 : i32
    %c0_i32_1 = arith.constant 0 : i32
    return %c0_i32, %c0_i32_0 : i32, i32
  }
  func.func @transform_5(%arg0: i32, %arg1: i32) -> (i32, i32) {
    %c0_i32 = arith.constant 0 : i32
    %c0_i32_0 = arith.constant 0 : i32
    %c0_i32_1 = arith.constant 0 : i32
    return %c0_i32, %c0_i32_0 : i32, i32
  }
  func.func @transform_6(%arg0: i32, %arg1: i32) -> (i32, i32) {
    %c0_i32 = arith.constant 0 : i32
    %c0_i32_0 = arith.constant 0 : i32
    %c0_i32_1 = arith.constant 0 : i32
    return %c0_i32, %c0_i32_0 : i32, i32
  }
  func.func @transform_7(%arg0: i32, %arg1: i32) -> (i32, i32) {
    %c0_i32 = arith.constant 0 : i32
    %c0_i32_0 = arith.constant 0 : i32
    %c0_i32_1 = arith.constant 0 : i32
    return %c0_i32, %c0_i32_0 : i32, i32
  }
  func.func @transform_8(%arg0: i32, %arg1: i32) -> (i32, i32) {
    %c0_i32 = arith.constant 0 : i32
    %c0_i32_0 = arith.constant 0 : i32
    %c0_i32_1 = arith.constant 0 : i32
    return %c0_i32, %c0_i32_0 : i32, i32
  }
  func.func @transform_9(%arg0: i32, %arg1: i32) -> (i32, i32) {
    %c0_i32 = arith.constant 0 : i32
    %c0_i32_0 = arith.constant 0 : i32
    %c0_i32_1 = arith.constant 0 : i32
    return %c0_i32, %c0_i32_0 : i32, i32
  }
  func.func @transform_10(%arg0: i32, %arg1: i32) -> (i32, i32) {
    %c0_i32 = arith.constant 0 : i32
    %c0_i32_0 = arith.constant 0 : i32
    %c0_i32_1 = arith.constant 0 : i32
    return %c0_i32, %c0_i32_0 : i32, i32
  }
  func.func @transform_11(%arg0: i32, %arg1: i32) -> (i32, i32, i32) {
    %c0_i32 = arith.constant 0 : i32
    %c0_i32_0 = arith.constant 0 : i32
    return %arg0, %c0_i32, %arg1 : i32, i32, i32
  }
}

</mosaic_0001>

<llo_original>
// kernel: window_shift_attention_forward.1
$region0: #{window_shift_attention_forward.1}
  #allocation0 [shape = 'u32[]', space=smem, size = 0x4, offset = 0x4, fixed_abs, tag = 'smem constant byte address 0x4 - core index']
  #allocation1 [shape = 'u32[72,128]{1,0:T(1,128)}', space=vmem, size = 0x9000, scoped, tag = 'internal scratch']
  %s0 = inlined_call_operand.vmem [shape: bf16[2,32,256], index: 0, kind: input, shape index: {}]
  %s1 = inlined_call_operand.vmem [shape: bf16[2,32,256], index: 1, kind: input, shape index: {}]
  %s2 = inlined_call_operand.vmem [shape: bf16[2,32,256], index: 2, kind: input, shape index: {}]
  %s3 = inlined_call_operand.vmem [shape: bf16[64,32], index: 3, kind: input, shape index: {}]
  %s4 = inlined_call_operand.vmem [shape: bf16[64,32], index: 4, kind: input, shape index: {}]
  %s5 = inlined_call_operand.vmem [shape: bf16[64,32], index: 5, kind: input, shape index: {}]
  %s6 = inlined_call_operand.vmem [shape: f32[64,1], index: 6, kind: input, shape index: {}]
  %s7 = inlined_call_operand.vmem [shape: f32[64,1], index: 7, kind: input, shape index: {}]
  %s8 = inlined_call_operand.vmem [shape: f32[64,1], index: 8, kind: input, shape index: {}]
  %s9 = inlined_call_operand.vmem [shape: bf16[32,64], index: 9, kind: input, shape index: {}]
  %s10 = inlined_call_operand.vmem [shape: f32[32,1], index: 10, kind: input, shape index: {}]
  %s11 = inlined_call_operand.vmem [shape: f32[2,32,256], index: 11, kind: output, shape index: {}]
  %s12 = sld [smem:[#allocation0]]
  $region152: #{window_shift_attention_forward.1} parent=0
    _
  %s14 = ssub.s32 1, %s12
  %s15 = scalar_select 0, %s14, %s12
  $region1: #{window_shift_attention_forward.1} parent=0
    #allocation2 [shape = 'u8[16384]{0}', space=vmem, size = 0x4000, scoped, tag = 'input window, operand 0']
    #allocation3 [shape = 'u8[32768]{0}', space=vmem, size = 0x8000, scoped, tag = 'output window, operand 0']
    loop: start=0, step=1, limit=6
    $region2: #{window_shift_attention_forward.1} parent=1 // loop_pre_header
      _
    $region3: #{window_shift_attention_forward.1} parent=1 // loop_header
      %s17 = sphi 0, %s21
      %p18 = scmp.ge.s32.totalorder %s17, 6
      %s24 = sphi 0, %s36
      %s25 = sphi 0, %s32
      %s26 = sphi 0, %s24
      %s27 = sphi 0, %s25
      %s28 = sphi 0, %s26
      %s29 = sphi 0, %s27
      %s41 = sphi 0, %s43
      %s44 = sphi 0, %s41
      %s45 = sphi 0, %s44
      %s61 = sphi 0, %s45
      %s67 = sphi 0, %s69
      %s70 = sphi 0, %s67
      %s71 = sphi 0, %s70
      %s87 = sphi 0, %s71
      %s93 = sphi 0, %s95
      %s96 = sphi 0, %s93
      %s97 = sphi 0, %s96
      %s113 = sphi 0, %s97
      %s117 = sphi 0, %s117
      %s119 = sphi 0, %s117
      %s120 = sphi 0, %s119
      %s134 = sphi 0, %s120
      %s138 = sphi 0, %s138
      %s140 = sphi 0, %s138
      %s141 = sphi 0, %s140
      %s155 = sphi 0, %s141
      %s159 = sphi 0, %s159
      %s161 = sphi 0, %s159
      %s162 = sphi 0, %s161
      %s176 = sphi 0, %s162
      %s180 = sphi 0, %s180
      %s182 = sphi 0, %s180
      %s183 = sphi 0, %s182
      %s197 = sphi 0, %s183
      %s201 = sphi 0, %s201
      %s203 = sphi 0, %s201
      %s204 = sphi 0, %s203
      %s218 = sphi 0, %s204
      %s222 = sphi 0, %s222
      %s224 = sphi 0, %s222
      %s225 = sphi 0, %s224
      %s239 = sphi 0, %s225
      %s243 = sphi 0, %s243
      %s245 = sphi 0, %s243
      %s246 = sphi 0, %s245
      %s260 = sphi 0, %s246
      %s264 = sphi 0, %s264
      %s266 = sphi 0, %s264
      %s267 = sphi 0, %s266
      %s281 = sphi 0, %s267
      %s289 = sphi 0, %s291
      %s292 = sphi 0, %s289
      %s293 = sphi 0, %s292
      %s309 = sphi 0, %s293
    $region4: #{window_shift_attention_forward.1} parent=1 // loop_header_branch
      %20 = sbr.rel (%p18) target = $region8
    $region5: #{window_shift_attention_forward.1} parent=1 // loop_body
      %s22 = ssub.s32 %s17, 1
      %s23 = ssub.s32 %s17, 2
      %s30 = sadd.s32 1, %s25
      %p31 = scmp.ge.s32.totalorder %s30, 2
      %s32 = scalar_select %p31, 0, %s30
      %s33 = sadd.s32 1, %s24
      %s34 = scalar_select %p31, %s33, %s24
      %p35 = scmp.ge.s32.totalorder %s34, 2
      %s36 = scalar_select %p35, 0, %s34
      %s37 = ssub.s32 %s24, %s36
      %s38 = ssub.s32 %s25, %s32
      %s39 = sor.u32 %s37, %s38
      %p40 = scmp.eq.s32.totalorder %s39, 0
      %s42 = sadd.s32 %s41, 1
      %s43 = scalar_select %p40, %s41, %s42
      %p46 = pneg %p40
      %p47 = scmp.eq.s32.totalorder %s17, 3
      %p48 = por %p46, %p47
      %p49 = scmp.ne.s32.totalorder %s41, %s44
      %p50 = scmp.eq.s32.totalorder %s17, 0
      %p51 = por %p49, %p50
      %p52 = scmp.ne.s32.totalorder %s41, %s44
      %p53 = scmp.eq.s32.totalorder %s22, 3
      %p54 = por %p52, %p53
      %p55 = scmp.ne.s32.totalorder %s44, %s45
      %p56 = scmp.eq.s32.totalorder %s22, 0
      %p57 = por %p55, %p56
      %p58 = scmp.ne.s32.totalorder %s44, %s45
      %p59 = scmp.eq.s32.totalorder %s23, 3
      %p60 = por %p58, %p59
      %p62 = scmp.ne.s32.totalorder %s45, %s61
      %p63 = scmp.eq.s32.totalorder %s23, 0
      %p64 = por %p62, %p63
      %s65 = ssub.s32 %s24, %s36
      %p66 = scmp.eq.s32.totalorder %s65, 0
      %s68 = sadd.s32 %s67, 1
      %s69 = scalar_select %p66, %s67, %s68
      %p72 = pneg %p66
      %p73 = scmp.eq.s32.totalorder %s17, 3
      %p74 = por %p72, %p73
      %p75 = scmp.ne.s32.totalorder %s67, %s70
      %p76 = scmp.eq.s32.totalorder %s17, 0
      %p77 = por %p75, %p76
      %p78 = scmp.ne.s32.totalorder %s67, %s70
      %p79 = scmp.eq.s32.totalorder %s22, 3
      %p80 = por %p78, %p79
      %p81 = scmp.ne.s32.totalorder %s70, %s71
      %p82 = scmp.eq.s32.totalorder %s22, 0
      %p83 = por %p81, %p82
      %p84 = scmp.ne.s32.totalorder %s70, %s71
      %p85 = scmp.eq.s32.totalorder %s23, 3
      %p86 = por %p84, %p85
      %p88 = scmp.ne.s32.totalorder %s71, %s87
      %p89 = scmp.eq.s32.totalorder %s23, 0
      %p90 = por %p88, %p89
      %s91 = ssub.s32 %s24, %s36
      %p92 = scmp.eq.s32.totalorder %s91, 0
      %s94 = sadd.s32 %s93, 1
      %s95 = scalar_select %p92, %s93, %s94
      %p98 = pneg %p92
      %p99 = scmp.eq.s32.totalorder %s17, 3
      %p100 = por %p98, %p99
      %p101 = scmp.ne.s32.totalorder %s93, %s96
      %p102 = scmp.eq.s32.totalorder %s17, 0
      %p103 = por %p101, %p102
      %p104 = scmp.ne.s32.totalorder %s93, %s96
      %p105 = scmp.eq.s32.totalorder %s22, 3
      %p106 = por %p104, %p105
      %p107 = scmp.ne.s32.totalorder %s96, %s97
      %p108 = scmp.eq.s32.totalorder %s22, 0
      %p109 = por %p107, %p108
      %p110 = scmp.ne.s32.totalorder %s96, %s97
      %p111 = scmp.eq.s32.totalorder %s23, 3
      %p112 = por %p110, %p111
      %p114 = scmp.ne.s32.totalorder %s97, %s113
      %p115 = scmp.eq.s32.totalorder %s23, 0
      %p116 = por %p114, %p115
      %s118 = sadd.s32 %s117, 1
      %p121 = scmp.eq.s32.totalorder %s17, 3
      %p122 = scmp.ne.s32.totalorder %s117, %s119
      %p123 = scmp.eq.s32.totalorder %s17, 0
      %p124 = por %p122, %p123
      %p125 = scmp.ne.s32.totalorder %s117, %s119
      %p126 = scmp.eq.s32.totalorder %s22, 3
      %p127 = por %p125, %p126
      %p128 = scmp.ne.s32.totalorder %s119, %s120
      %p129 = scmp.eq.s32.totalorder %s22, 0
      %p130 = por %p128, %p129
      %p131 = scmp.ne.s32.totalorder %s119, %s120
      %p132 = scmp.eq.s32.totalorder %s23, 3
      %p133 = por %p131, %p132
      %p135 = scmp.ne.s32.totalorder %s120, %s134
      %p136 = scmp.eq.s32.totalorder %s23, 0
      %p137 = por %p135, %p136
      %s139 = sadd.s32 %s138, 1
      %p142 = scmp.eq.s32.totalorder %s17, 3
      %p143 = scmp.ne.s32.totalorder %s138, %s140
      %p144 = scmp.eq.s32.totalorder %s17, 0
      %p145 = por %p143, %p144
      %p146 = scmp.ne.s32.totalorder %s138, %s140
      %p147 = scmp.eq.s32.totalorder %s22, 3
      %p148 = por %p146, %p147
      %p149 = scmp.ne.s32.totalorder %s140, %s141
      %p150 = scmp.eq.s32.totalorder %s22, 0
      %p151 = por %p149, %p150
      %p152 = scmp.ne.s32.totalorder %s140, %s141
      %p153 = scmp.eq.s32.totalorder %s23, 3
      %p154 = por %p152, %p153
      %p156 = scmp.ne.s32.totalorder %s141, %s155
      %p157 = scmp.eq.s32.totalorder %s23, 0
      %p158 = por %p156, %p157
      %s160 = sadd.s32 %s159, 1
      %p163 = scmp.eq.s32.totalorder %s17, 3
      %p164 = scmp.ne.s32.totalorder %s159, %s161
      %p165 = scmp.eq.s32.totalorder %s17, 0
      %p166 = por %p164, %p165
      %p167 = scmp.ne.s32.totalorder %s159, %s161
      %p168 = scmp.eq.s32.totalorder %s22, 3
      %p169 = por %p167, %p168
      %p170 = scmp.ne.s32.totalorder %s161, %s162
      %p171 = scmp.eq.s32.totalorder %s22, 0
      %p172 = por %p170, %p171
      %p173 = scmp.ne.s32.totalorder %s161, %s162
      %p174 = scmp.eq.s32.totalorder %s23, 3
      %p175 = por %p173, %p174
      %p177 = scmp.ne.s32.totalorder %s162, %s176
      %p178 = scmp.eq.s32.totalorder %s23, 0
      %p179 = por %p177, %p178
      %s181 = sadd.s32 %s180, 1
      %p184 = scmp.eq.s32.totalorder %s17, 3
      %p185 = scmp.ne.s32.totalorder %s180, %s182
      %p186 = scmp.eq.s32.totalorder %s17, 0
      %p187 = por %p185, %p186
      %p188 = scmp.ne.s32.totalorder %s180, %s182
      %p189 = scmp.eq.s32.totalorder %s22, 3
      %p190 = por %p188, %p189
      %p191 = scmp.ne.s32.totalorder %s182, %s183
      %p192 = scmp.eq.s32.totalorder %s22, 0
      %p193 = por %p191, %p192
      %p194 = scmp.ne.s32.totalorder %s182, %s183
      %p195 = scmp.eq.s32.totalorder %s23, 3
      %p196 = por %p194, %p195
      %p198 = scmp.ne.s32.totalorder %s183, %s197
      %p199 = scmp.eq.s32.totalorder %s23, 0
      %p200 = por %p198, %p199
      %s202 = sadd.s32 %s201, 1
      %p205 = scmp.eq.s32.totalorder %s17, 3
      %p206 = scmp.ne.s32.totalorder %s201, %s203
      %p207 = scmp.eq.s32.totalorder %s17, 0
      %p208 = por %p206, %p207
      %p209 = scmp.ne.s32.totalorder %s201, %s203
      %p210 = scmp.eq.s32.totalorder %s22, 3
      %p211 = por %p209, %p210
      %p212 = scmp.ne.s32.totalorder %s203, %s204
      %p213 = scmp.eq.s32.totalorder %s22, 0
      %p214 = por %p212, %p213
      %p215 = scmp.ne.s32.totalorder %s203, %s204
      %p216 = scmp.eq.s32.totalorder %s23, 3
      %p217 = por %p215, %p216
      %p219 = scmp.ne.s32.totalorder %s204, %s218
      %p220 = scmp.eq.s32.totalorder %s23, 0
      %p221 = por %p219, %p220
      %s223 = sadd.s32 %s222, 1
      %p226 = scmp.eq.s32.totalorder %s17, 3
      %p227 = scmp.ne.s32.totalorder %s222, %s224
      %p228 = scmp.eq.s32.totalorder %s17, 0
      %p229 = por %p227, %p228
      %p230 = scmp.ne.s32.totalorder %s222, %s224
      %p231 = scmp.eq.s32.totalorder %s22, 3
      %p232 = por %p230, %p231
      %p233 = scmp.ne.s32.totalorder %s224, %s225
      %p234 = scmp.eq.s32.totalorder %s22, 0
      %p235 = por %p233, %p234
      %p236 = scmp.ne.s32.totalorder %s224, %s225
      %p237 = scmp.eq.s32.totalorder %s23, 3
      %p238 = por %p236, %p237
      %p240 = scmp.ne.s32.totalorder %s225, %s239
      %p241 = scmp.eq.s32.totalorder %s23, 0
      %p242 = por %p240, %p241
      %s244 = sadd.s32 %s243, 1
      %p247 = scmp.eq.s32.totalorder %s17, 3
      %p248 = scmp.ne.s32.totalorder %s243, %s245
      %p249 = scmp.eq.s32.totalorder %s17, 0
      %p250 = por %p248, %p249
      %p251 = scmp.ne.s32.totalorder %s243, %s245
      %p252 = scmp.eq.s32.totalorder %s22, 3
      %p253 = por %p251, %p252
      %p254 = scmp.ne.s32.totalorder %s245, %s246
      %p255 = scmp.eq.s32.totalorder %s22, 0
      %p256 = por %p254, %p255
      %p257 = scmp.ne.s32.totalorder %s245, %s246
      %p258 = scmp.eq.s32.totalorder %s23, 3
      %p259 = por %p257, %p258
      %p261 = scmp.ne.s32.totalorder %s246, %s260
      %p262 = scmp.eq.s32.totalorder %s23, 0
      %p263 = por %p261, %p262
      %s265 = sadd.s32 %s264, 1
      %p268 = scmp.eq.s32.totalorder %s17, 3
      %p269 = scmp.ne.s32.totalorder %s264, %s266
      %p270 = scmp.eq.s32.totalorder %s17, 0
      %p271 = por %p269, %p270
      %p272 = scmp.ne.s32.totalorder %s264, %s266
      %p273 = scmp.eq.s32.totalorder %s22, 3
      %p274 = por %p272, %p273
      %p275 = scmp.ne.s32.totalorder %s266, %s267
      %p276 = scmp.eq.s32.totalorder %s22, 0
      %p277 = por %p275, %p276
      %p278 = scmp.ne.s32.totalorder %s266, %s267
      %p279 = scmp.eq.s32.totalorder %s23, 3
      %p280 = por %p278, %p279
      %p282 = scmp.ne.s32.totalorder %s267, %s281
      %p283 = scmp.eq.s32.totalorder %s23, 0
      %p284 = por %p282, %p283
      %s285 = ssub.s32 %s24, %s36
      %s286 = ssub.s32 %s25, %s32
      %s287 = sor.u32 %s285, %s286
      %p288 = scmp.eq.s32.totalorder %s287, 0
      %s290 = sadd.s32 %s289, 1
      %s291 = scalar_select %p288, %s289, %s290
      %p294 = pneg %p288
      %p295 = scmp.eq.s32.totalorder %s17, 3
      %p296 = por %p294, %p295
      %p297 = scmp.ne.s32.totalorder %s289, %s292
      %p298 = scmp.eq.s32.totalorder %s17, 0
      %p299 = por %p297, %p298
      %p300 = scmp.ne.s32.totalorder %s289, %s292
      %p301 = scmp.eq.s32.totalorder %s22, 3
      %p302 = por %p300, %p301
      %p303 = scmp.ne.s32.totalorder %s292, %s293
      %p304 = scmp.eq.s32.totalorder %s22, 0
      %p305 = por %p303, %p304
      %p306 = scmp.ne.s32.totalorder %s292, %s293
      %p307 = scmp.eq.s32.totalorder %s23, 3
      %p308 = por %p306, %p307
      %p310 = scmp.ne.s32.totalorder %s293, %s309
      %p311 = scmp.eq.s32.totalorder %s23, 0
      %p312 = por %p310, %p311
      %p313 = scmp.le.s32.totalorder 1, %s17
      %p314 = scmp.lt.s32.totalorder %s17, 5
      %p315 = pnand %p313, %p314
      %p316 = pneg %p315
      // Predicated region
      $region9: #{window_shift_attention_forward.1} parent=5 // pred_check
        _
      $region10: #{window_shift_attention_forward.1} parent=5 // pred_check_branch
        %318 = sbr.rel (%p315) target = $region12
      $region11: #{window_shift_attention_forward.1} parent=5 // pred_region
        %s319 = ssub.s32 %s17, 1
        // Predicated region
        $region13: #{window_shift_attention_forward.1} parent=11 // pred_check
          %p320 = pneg %p130
        $region14: #{window_shift_attention_forward.1} parent=11 // pred_check_branch
          %322 = sbr.rel (%p320) target = $region16
        $region15: #{window_shift_attention_forward.1} parent=11 // pred_region
          _
        $region16: #{window_shift_attention_forward.1} parent=11 // pred_fallthru
          _
        // Predicated region
        $region17: #{window_shift_attention_forward.1} parent=11 // pred_check
          %p323 = pneg %p151
        $region18: #{window_shift_attention_forward.1} parent=11 // pred_check_branch
          %325 = sbr.rel (%p323) target = $region20
        $region19: #{window_shift_attention_forward.1} parent=11 // pred_region
          _
        $region20: #{window_shift_attention_forward.1} parent=11 // pred_fallthru
          _
        // Predicated region
        $region21: #{window_shift_attention_forward.1} parent=11 // pred_check
          %p326 = pneg %p172
        $region22: #{window_shift_attention_forward.1} parent=11 // pred_check_branch
          %328 = sbr.rel (%p326) target = $region24
        $region23: #{window_shift_attention_forward.1} parent=11 // pred_region
          _
        $region24: #{window_shift_attention_forward.1} parent=11 // pred_fallthru
          _
        // Predicated region
        $region25: #{window_shift_attention_forward.1} parent=11 // pred_check
          %p329 = pneg %p193
        $region26: #{window_shift_attention_forward.1} parent=11 // pred_check_branch
          %331 = sbr.rel (%p329) target = $region28
        $region27: #{window_shift_attention_forward.1} parent=11 // pred_region
          _
        $region28: #{window_shift_attention_forward.1} parent=11 // pred_fallthru
          _
        // Predicated region
        $region29: #{window_shift_attention_forward.1} parent=11 // pred_check
          %p332 = pneg %p214
        $region30: #{window_shift_attention_forward.1} parent=11 // pred_check_branch
          %334 = sbr.rel (%p332) target = $region32
        $region31: #{window_shift_attention_forward.1} parent=11 // pred_region
          _
        $region32: #{window_shift_attention_forward.1} parent=11 // pred_fallthru
          _
        // Predicated region
        $region33: #{window_shift_attention_forward.1} parent=11 // pred_check
          %p335 = pneg %p235
        $region34: #{window_shift_attention_forward.1} parent=11 // pred_check_branch
          %337 = sbr.rel (%p335) target = $region36
        $region35: #{window_shift_attention_forward.1} parent=11 // pred_region
          _
        $region36: #{window_shift_attention_forward.1} parent=11 // pred_fallthru
          _
        // Predicated region
        $region37: #{window_shift_attention_forward.1} parent=11 // pred_check
          %p338 = pneg %p256
        $region38: #{window_shift_attention_forward.1} parent=11 // pred_check_branch
          %340 = sbr.rel (%p338) target = $region40
        $region39: #{window_shift_attention_forward.1} parent=11 // pred_region
          _
        $region40: #{window_shift_attention_forward.1} parent=11 // pred_fallthru
          _
        // Predicated region
        $region41: #{window_shift_attention_forward.1} parent=11 // pred_check
          %p341 = pneg %p277
        $region42: #{window_shift_attention_forward.1} parent=11 // pred_check_branch
          %343 = sbr.rel (%p341) target = $region44
        $region43: #{window_shift_attention_forward.1} parent=11 // pred_region
          _
        $region44: #{window_shift_attention_forward.1} parent=11 // pred_fallthru
          _
      $region12: #{window_shift_attention_forward.1} parent=5 // pred_fallthru
        _
      %p344 = scmp.lt.s32.totalorder %s17, 4
      // Predicated region
      $region45: #{window_shift_attention_forward.1} parent=5 // pred_check
        %p345 = pneg %p344
      $region46: #{window_shift_attention_forward.1} parent=5 // pred_check_branch
        %347 = sbr.rel (%p345) target = $region48
      $region47: #{window_shift_attention_forward.1} parent=5 // pred_region
        // Predicated region
        $region49: #{window_shift_attention_forward.1} parent=47 // pred_check
          %p348 = pneg %p51
        $region50: #{window_shift_attention_forward.1} parent=47 // pred_check_branch
          %350 = sbr.rel (%p348) target = $region52
        $region51: #{window_shift_attention_forward.1} parent=47 // pred_region
          %s351 = sand.u32 %s41, 1
          %s352 = sand.u32 %s41, 1
          %s353 = smul.addr %s352, 16
          %s354 = scalar_lea.vmem [#allocation2], %s353
          %s355 = smul.addr %s24, 8
          %s356 = sadd.s32 %s25, %s355
          %s357 = smul.addr %s356, 4
          %s358 = scalar_lea.vmem %s0, %s357
          // Predicated region
          $region53: #{window_shift_attention_forward.1} parent=51 // pred_check
            _
          $region54: #{window_shift_attention_forward.1} parent=51 // pred_check_branch
            %360 = sbr.rel (0) target = $region56
          $region55: #{window_shift_attention_forward.1} parent=51 // pred_region
            // Predicated region
            $region57: #{window_shift_attention_forward.1} parent=55 // pred_check
              _
            $region58: #{window_shift_attention_forward.1} parent=55 // pred_check_branch
              %362 = sbr.rel target = $region60
            $region59: #{window_shift_attention_forward.1} parent=55 // pred_region
              // Predicated region
              $region72: #{window_shift_attention_forward.1} parent=59 // pred_check
                _
              $region73: #{window_shift_attention_forward.1} parent=59 // pred_check_branch
                %384 = sbr.rel (0) target = $region75
              $region74: #{window_shift_attention_forward.1} parent=59 // pred_region
                loop: start=0, step=1, limit=1
                $region76: #{window_shift_attention_forward.1} parent=74 // loop_pre_header
                  _
                $region77: #{window_shift_attention_forward.1} parent=74 // loop_header
                  %s386 = sphi 0, %s390
                  %p387 = scmp.ge.s32.totalorder %s386, 1
                  %s391 = sphi %s358, %s358
                  %s392 = sphi %s354, %s354
                $region78: #{window_shift_attention_forward.1} parent=74 // loop_header_branch
                  %389 = sbr.rel (%p387) target = $region82
                $region79: #{window_shift_attention_forward.1} parent=74 // loop_body
                  _
                $region80: #{window_shift_attention_forward.1} parent=74 // loop_footer
                  %s390 = sadd.s32 1, %s386
                $region81: #{window_shift_attention_forward.1} parent=74 // loop_footer_branch
                  %385 = sbr.rel target = $region77
                $region82: #{window_shift_attention_forward.1} parent=74 // loop_exit
                  _
                %s394 = ssub.s32 16, 1
                loop: start=0, step=1, limit=1
                $region83: #{window_shift_attention_forward.1} parent=74 // loop_pre_header
                  _
                $region84: #{window_shift_attention_forward.1} parent=74 // loop_header
                  %s396 = sphi 0, %s400
                  %p397 = scmp.ge.s32.totalorder %s396, 1
                  %s401 = sphi %s358, %s358
                  %s402 = sphi %s354, %s354
                $region85: #{window_shift_attention_forward.1} parent=74 // loop_header_branch
                  %399 = sbr.rel (%p397) target = $region89
                $region86: #{window_shift_attention_forward.1} parent=74 // loop_body
                  %v403 = vld [vmem:[%s401] sm:%s394]
                  %404 = vst [vmem:[%s402] sm:%s394] %v403
                  %v405 = vld [vmem:[%s401 + $0x8] sm:%s394]
                  %406 = vst [vmem:[%s402 + $0x4] sm:%s394] %v405
                  %v407 = vld [vmem:[%s401 + $0x10] sm:%s394]
                  %408 = vst [vmem:[%s402 + $0x8] sm:%s394] %v407
                  %v409 = vld [vmem:[%s401 + $0x18] sm:%s394]
                  %410 = vst [vmem:[%s402 + $0xc] sm:%s394] %v409
                $region87: #{window_shift_attention_forward.1} parent=74 // loop_footer
                  %s400 = sadd.s32 1, %s396
                $region88: #{window_shift_attention_forward.1} parent=74 // loop_footer_branch
                  %395 = sbr.rel target = $region84
                $region89: #{window_shift_attention_forward.1} parent=74 // loop_exit
                  _
              $region75: #{window_shift_attention_forward.1} parent=59 // pred_fallthru
                _
            $region60: #{window_shift_attention_forward.1} parent=55 // pred_fallthru
              _
            // Predicated region
            $region61: #{window_shift_attention_forward.1} parent=55 // pred_check
              _
            $region62: #{window_shift_attention_forward.1} parent=55 // pred_check_branch
              %364 = sbr.rel (0) target = $region64
            $region63: #{window_shift_attention_forward.1} parent=55 // pred_region
              %s366 = ssub.s32 16, 1
              loop: start=0, step=1, limit=1
              $region65: #{window_shift_attention_forward.1} parent=63 // loop_pre_header
                _
              $region66: #{window_shift_attention_forward.1} parent=63 // loop_header
                %s368 = sphi 0, %s372
                %p369 = scmp.ge.s32.totalorder %s368, 1
                %s373 = sphi %s358, %s358
                %s374 = sphi %s354, %s354
              $region67: #{window_shift_attention_forward.1} parent=63 // loop_header_branch
                %371 = sbr.rel (%p369) target = $region71
              $region68: #{window_shift_attention_forward.1} parent=63 // loop_body
                %v375 = vld [vmem:[%s373] sm:%s366]
                %376 = vst [vmem:[%s374] sm:%s366] %v375
                %v377 = vld [vmem:[%s373 + $0x8] sm:%s366]
                %378 = vst [vmem:[%s374 + $0x4] sm:%s366] %v377
                %v379 = vld [vmem:[%s373 + $0x10] sm:%s366]
                %380 = vst [vmem:[%s374 + $0x8] sm:%s366] %v379
                %v381 = vld [vmem:[%s373 + $0x18] sm:%s366]
                %382 = vst [vmem:[%s374 + $0xc] sm:%s366] %v381
              $region69: #{window_shift_attention_forward.1} parent=63 // loop_footer
                %s372 = sadd.s32 1, %s368
              $region70: #{window_shift_attention_forward.1} parent=63 // loop_footer_branch
                %367 = sbr.rel target = $region66
              $region71: #{window_shift_attention_forward.1} parent=63 // loop_exit
                _
            $region64: #{window_shift_attention_forward.1} parent=55 // pred_fallthru
              _
          $region56: #{window_shift_attention_forward.1} parent=51 // pred_fallthru
            _
          %411 = vnop
        $region52: #{window_shift_attention_forward.1} parent=47 // pred_fallthru
          _
        // Predicated region
        $region90: #{window_shift_attention_forward.1} parent=47 // pred_check
          %p412 = pneg %p77
        $region91: #{window_shift_attention_forward.1} parent=47 // pred_check_branch
          %414 = sbr.rel (%p412) target = $region93
        $region92: #{window_shift_attention_forward.1} parent=47 // pred_region
          %p415 = scmp.lt.s32.totalorder %s24, 1
          %s416 = scalar_select %p415, %s24, 1
          %s417 = smul.addr %s416, 8
          %s418 = smul.addr %s417, 4
          %s419 = scalar_lea.vmem %s1, %s418
        $region93: #{window_shift_attention_forward.1} parent=47 // pred_fallthru
          _
        // Predicated region
        $region94: #{window_shift_attention_forward.1} parent=47 // pred_check
          %p420 = pneg %p103
        $region95: #{window_shift_attention_forward.1} parent=47 // pred_check_branch
          %422 = sbr.rel (%p420) target = $region97
        $region96: #{window_shift_attention_forward.1} parent=47 // pred_region
          %p423 = scmp.lt.s32.totalorder %s24, 1
          %s424 = scalar_select %p423, %s24, 1
          %s425 = smul.addr %s424, 8
          %s426 = smul.addr %s425, 4
          %s427 = scalar_lea.vmem %s2, %s426
        $region97: #{window_shift_attention_forward.1} parent=47 // pred_fallthru
          _
      $region48: #{window_shift_attention_forward.1} parent=5 // pred_fallthru
        _
      %p428 = scmp.le.s32.totalorder 1, %s17
      %p429 = scmp.lt.s32.totalorder %s17, 5
      %p430 = pnand %p428, %p429
      %p431 = pneg %p430
      // Predicated region
      $region98: #{window_shift_attention_forward.1} parent=5 // pred_check
        _
      $region99: #{window_shift_attention_forward.1} parent=5 // pred_check_branch
        %433 = sbr.rel (%p430) target = $region101
      $region100: #{window_shift_attention_forward.1} parent=5 // pred_region
        %s434 = ssub.s32 %s17, 1
        %s435 = sand.u32 %s44, 1
        %s436 = sand.u32 %s44, 1
        %s437 = smul.addr %s436, 16
        %s438 = scalar_lea.vmem [#allocation2], %s437
        // Predicated region
        $region102: #{window_shift_attention_forward.1} parent=100 // pred_check
          %p439 = pneg %p57
        $region103: #{window_shift_attention_forward.1} parent=100 // pred_check_branch
          %441 = sbr.rel (%p439) target = $region105
        $region104: #{window_shift_attention_forward.1} parent=100 // pred_region
          _
        $region105: #{window_shift_attention_forward.1} parent=100 // pred_fallthru
          _
        %s442 = sand.u32 %s44, 1
        %s443 = sand.u32 %s44, 1
        %s444 = smul.addr %s443, 16
        %s445 = scalar_lea.vmem [#allocation2], %s444
        %p446 = pneg %p57
        %p447 = pneg %p54
        %p448 = scmp.lt.s32.totalorder %s26, 1
        %s449 = scalar_select %p448, %s26, 1
        %s450 = smul.addr %s449, 8
        %s451 = smul.addr %s450, 4
        %s452 = scalar_lea.vmem %s1, %s451
        %p453 = pneg %p83
        %p454 = pneg %p80
        %p455 = scmp.lt.s32.totalorder %s26, 1
        %s456 = scalar_select %p455, %s26, 1
        %s457 = smul.addr %s456, 8
        %s458 = smul.addr %s457, 4
        %s459 = scalar_lea.vmem %s2, %s458
        %p460 = pneg %p109
        %p461 = pneg %p106
        %p462 = pneg %p130
        %p463 = pneg %p127
        %p464 = pneg %p151
        %p465 = pneg %p148
        %p466 = pneg %p172
        %p467 = pneg %p169
        %p468 = pneg %p193
        %p469 = pneg %p190
        %p470 = pneg %p214
        %p471 = pneg %p211
        %p472 = pneg %p235
        %p473 = pneg %p232
        %p474 = pneg %p256
        %p475 = pneg %p253
        %p476 = pneg %p277
        %p477 = pneg %p274
        %p478 = pneg %p305
        %p479 = pneg %p302
        %s480 = sand.u32 %s292, 1
        %s481 = sand.u32 %s292, 1
        %s482 = smul.addr %s481, 32
        %s483 = scalar_lea.vmem [#allocation3], %s482
        %p484 = scmp.lt.s32.totalorder %s26, 1
        %s485 = scalar_select %p484, %s26, 1
        %s486 = smul.addr %s485, 8
        %s487 = smul.addr %s486, 4
        %s488 = scalar_lea.vmem %s1, %s487
        %p489 = scmp.lt.s32.totalorder %s26, 1
        %s490 = scalar_select %p489, %s26, 1
        %s491 = smul.addr %s490, 8
        %s492 = smul.addr %s491, 4
        %s493 = scalar_lea.vmem %s2, %s492
        %v495 = vld [vmem:[%s438] sm:$0xf]
        %v496 = vld [vmem:[%s438 + $0x4] sm:$0xf]
        %v497 = vld [vmem:[%s438 + $0x8] sm:$0xf]
        %v498 = vld [vmem:[%s438 + $0xc] sm:$0xf]
        %v499 = vld [vmem:[%s488] sm:$0xff]
        %v500 = vld [vmem:[%s488 + $0x8] sm:$0xff]
        %v501 = vld [vmem:[%s488 + $0x10] sm:$0xff]
        %v502 = vld [vmem:[%s488 + $0x18] sm:$0xff]
        %v503 = vld [vmem:[%s493] sm:$0xff]
        %v504 = vld [vmem:[%s493 + $0x8] sm:$0xff]
        %v505 = vld [vmem:[%s493 + $0x10] sm:$0xff]
        %v506 = vld [vmem:[%s493 + $0x18] sm:$0xff]
        %v507 = vld [vmem:[%s3] sm:$0xf]
        %v508 = vld [vmem:[%s3 + $0x4] sm:$0xf]
        %v509 = vld [vmem:[%s3 + $0x8] sm:$0xf]
        %v510 = vld [vmem:[%s3 + $0xc] sm:$0xf]
        %v511 = vld [vmem:[%s3 + $0x10] sm:$0xf]
        %v512 = vld [vmem:[%s3 + $0x14] sm:$0xf]
        %v513 = vld [vmem:[%s3 + $0x18] sm:$0xf]
        %v514 = vld [vmem:[%s3 + $0x1c] sm:$0xf]
        %v515 = vld [vmem:[%s6] sm:$0xff]
        %v516 = vld [vmem:[%s6 + $0x8] sm:$0xff]
        %v517 = vld [vmem:[%s6 + $0x10] sm:$0xff]
        %v518 = vld [vmem:[%s6 + $0x18] sm:$0xff]
        %v519 = vld [vmem:[%s6 + $0x20] sm:$0xff]
        %v520 = vld [vmem:[%s6 + $0x28] sm:$0xff]
        %v521 = vld [vmem:[%s6 + $0x30] sm:$0xff]
        %v522 = vld [vmem:[%s6 + $0x38] sm:$0xff]
        %524 = vset.pattern.permute.xlu0 0
        %525 = vperm.xlu0 %524, %v515
        %v526 = vpop.permute.xlu0 %525
        %529 = vset.pattern.permute.xlu0 0
        %530 = vperm.xlu0 %529, %v516
        %v531 = vpop.permute.xlu0 %530
        %534 = vset.pattern.permute.xlu0 0
        %535 = vperm.xlu0 %534, %v517
        %v536 = vpop.permute.xlu0 %535
        %539 = vset.pattern.permute.xlu0 0
        %540 = vperm.xlu0 %539, %v518
        %v541 = vpop.permute.xlu0 %540
        %544 = vset.pattern.permute.xlu0 0
        %545 = vperm.xlu0 %544, %v519
        %v546 = vpop.permute.xlu0 %545
        %549 = vset.pattern.permute.xlu0 0
        %550 = vperm.xlu0 %549, %v520
        %v551 = vpop.permute.xlu0 %550
        %554 = vset.pattern.permute.xlu0 0
        %555 = vperm.xlu0 %554, %v521
        %v556 = vpop.permute.xlu0 %555
        %559 = vset.pattern.permute.xlu0 0
        %560 = vperm.xlu0 %559, %v522
        %v561 = vpop.permute.xlu0 %560
        %v571 = vunpack.c.l.b16 %v507
        %v572 = vunpack.c.l.b16 %v508
        %v573 = vunpack.c.l.b16 %v509
        %v574 = vunpack.c.l.b16 %v510
        %v575 = vunpack.c.l.b16 %v511
        %v576 = vunpack.c.l.b16 %v512
        %v577 = vunpack.c.l.b16 %v513
        %v578 = vunpack.c.l.b16 %v514
        %v579 = vpack.c.b16 %v572, %v571
        %v580 = vpack.c.b16 %v574, %v573
        %v581 = vpack.c.b16 %v576, %v575
        %v582 = vpack.c.b16 %v578, %v577
        %v587 = vunpack.c.l.b16 %v495
        %v588 = vunpack.c.l.b16 %v496
        %v589 = vunpack.c.l.b16 %v497
        %v590 = vunpack.c.l.b16 %v498
        %v591 = vpack.c.b16 %v588, %v587
        %v592 = vpack.c.b16 %v590, %v589
        %vm595 = vcmask 261120
        %v597 = vsel %vm595, %v579, 0
        %v600 = vsel %vm595, %v580, 0
        %v603 = vsel %vm595, %v581, 0
        %v606 = vsel %vm595, %v582, 0
        %608 = vmatpush.bf16.msra.mxu0 0
        %609 = vmatpush.bf16.msra.mxu0 0
        %610 = vmatpush.bf16.msra.mxu0 0
        %611 = vmatpush.bf16.msra.mxu0 0
        %612 = vmatpush.bf16.msra.mxu0 0
        %613 = vmatpush.bf16.msra.mxu0 0
        %614 = vmatpush.bf16.msra.mxu0 %v592
        %615 = vmatpush.bf16.msra.mxu0 %v591
        %616 = vmatmul.bf16.gmra.mxu0 %v597
        %v617 = vpop.f32.mrf.mxu0
        %v618 = vadd.f32 %v526, %v617
        %v619 = vpop.f32.mrf.mxu0
        %v620 = vadd.f32 %v531, %v619
        %621 = vmatmul.bf16.gmra.mxu0 %v600
        %v622 = vpop.f32.mrf.mxu0
        %v623 = vadd.f32 %v536, %v622
        %v624 = vpop.f32.mrf.mxu0
        %v625 = vadd.f32 %v541, %v624
        %626 = vmatmul.bf16.gmra.mxu0 %v603
        %v627 = vpop.f32.mrf.mxu0
        %v628 = vadd.f32 %v546, %v627
        %v629 = vpop.f32.mrf.mxu0
        %v630 = vadd.f32 %v551, %v629
        %631 = vmatmul.bf16.gmra.mxu0 %v606
        %v632 = vpop.f32.mrf.mxu0
        %v633 = vadd.f32 %v556, %v632
        %v634 = vpop.f32.mrf.mxu0
        %v635 = vadd.f32 %v561, %v634
        %636 = vdwg.mxu0
        %v637 = vpack.c.bf16 %v618, %v618
        %v638 = vpack.c.bf16 %v620, %v620
        %v639 = vpack.c.bf16 %v623, %v623
        %v640 = vpack.c.bf16 %v625, %v625
        %v641 = vpack.c.bf16 %v628, %v628
        %v642 = vpack.c.bf16 %v630, %v630
        %v643 = vpack.c.bf16 %v633, %v633
        %v644 = vpack.c.bf16 %v635, %v635
        %v645 = vld [vmem:[%s4] sm:$0xf]
        %v646 = vld [vmem:[%s4 + $0x4] sm:$0xf]
        %v647 = vld [vmem:[%s4 + $0x8] sm:$0xf]
        %v648 = vld [vmem:[%s4 + $0xc] sm:$0xf]
        %v649 = vld [vmem:[%s4 + $0x10] sm:$0xf]
        %v650 = vld [vmem:[%s4 + $0x14] sm:$0xf]
        %v651 = vld [vmem:[%s4 + $0x18] sm:$0xf]
        %v652 = vld [vmem:[%s4 + $0x1c] sm:$0xf]
        %v653 = vld [vmem:[%s7] sm:$0xff]
        %v654 = vld [vmem:[%s7 + $0x8] sm:$0xff]
        %v655 = vld [vmem:[%s7 + $0x10] sm:$0xff]
        %v656 = vld [vmem:[%s7 + $0x18] sm:$0xff]
        %v657 = vld [vmem:[%s7 + $0x20] sm:$0xff]
        %v658 = vld [vmem:[%s7 + $0x28] sm:$0xff]
        %v659 = vld [vmem:[%s7 + $0x30] sm:$0xff]
        %v660 = vld [vmem:[%s7 + $0x38] sm:$0xff]
        %662 = vset.pattern.permute.xlu0 0
        %663 = vperm.xlu0 %662, %v653
        %v664 = vpop.permute.xlu0 %663
        %667 = vset.pattern.permute.xlu0 0
        %668 = vperm.xlu0 %667, %v654
        %v669 = vpop.permute.xlu0 %668
        %672 = vset.pattern.permute.xlu0 0
        %673 = vperm.xlu0 %672, %v655
        %v674 = vpop.permute.xlu0 %673
        %677 = vset.pattern.permute.xlu0 0
        %678 = vperm.xlu0 %677, %v656
        %v679 = vpop.permute.xlu0 %678
        %682 = vset.pattern.permute.xlu0 0
        %683 = vperm.xlu0 %682, %v657
        %v684 = vpop.permute.xlu0 %683
        %687 = vset.pattern.permute.xlu0 0
        %688 = vperm.xlu0 %687, %v658
        %v689 = vpop.permute.xlu0 %688
        %692 = vset.pattern.permute.xlu0 0
        %693 = vperm.xlu0 %692, %v659
        %v694 = vpop.permute.xlu0 %693
        %697 = vset.pattern.permute.xlu0 0
        %698 = vperm.xlu0 %697, %v660
        %v699 = vpop.permute.xlu0 %698
        %v709 = vunpack.c.l.b16 %v645
        %v710 = vunpack.c.l.b16 %v646
        %v711 = vunpack.c.l.b16 %v647
        %v712 = vunpack.c.l.b16 %v648
        %v713 = vunpack.c.l.b16 %v649
        %v714 = vunpack.c.l.b16 %v650
        %v715 = vunpack.c.l.b16 %v651
        %v716 = vunpack.c.l.b16 %v652
        %v717 = vpack.c.b16 %v710, %v709
        %v718 = vpack.c.b16 %v712, %v711
        %v719 = vpack.c.b16 %v714, %v713
        %v720 = vpack.c.b16 %v716, %v715
        %v725 = vunpack.c.l.b16 %v499
        %v726 = vunpack.c.h.b16 %v499
        %v727 = vunpack.c.l.b16 %v500
        %v728 = vunpack.c.h.b16 %v500
        %v729 = vunpack.c.l.b16 %v501
        %v730 = vunpack.c.h.b16 %v501
        %v731 = vunpack.c.l.b16 %v502
        %v732 = vunpack.c.h.b16 %v502
        %v733 = vpack.c.b16 %v727, %v725
        %v734 = vpack.c.b16 %v728, %v726
        %v735 = vpack.c.b16 %v731, %v729
        %v736 = vpack.c.b16 %v732, %v730
        %v742 = vsel %vm595, %v717, 0
        %v745 = vsel %vm595, %v718, 0
        %v748 = vsel %vm595, %v719, 0
        %v751 = vsel %vm595, %v720, 0
        %753 = vmatpush.bf16.msra.mxu0 0
        %754 = vmatpush.bf16.msra.mxu0 0
        %755 = vmatpush.bf16.msra.mxu0 0
        %756 = vmatpush.bf16.msra.mxu0 0
        %757 = vmatpush.bf16.msra.mxu0 0
        %758 = vmatpush.bf16.msra.mxu0 0
        %759 = vmatpush.bf16.msra.mxu0 %v735
        %760 = vmatpush.bf16.msra.mxu0 %v733
        %761 = vmatmul.bf16.gmra.mxu0 %v742
        %v762 = vpop.f32.mrf.mxu0
        %v763 = vadd.f32 %v664, %v762
        %v764 = vpop.f32.mrf.mxu0
        %v765 = vadd.f32 %v669, %v764
        %766 = vmatmul.bf16.gmra.mxu0 %v745
        %v767 = vpop.f32.mrf.mxu0
        %v768 = vadd.f32 %v674, %v767
        %v769 = vpop.f32.mrf.mxu0
        %v770 = vadd.f32 %v679, %v769
        %771 = vmatmul.bf16.gmra.mxu0 %v748
        %v772 = vpop.f32.mrf.mxu0
        %v773 = vadd.f32 %v684, %v772
        %v774 = vpop.f32.mrf.mxu0
        %v775 = vadd.f32 %v689, %v774
        %776 = vmatmul.bf16.gmra.mxu0 %v751
        %v777 = vpop.f32.mrf.mxu0
        %v778 = vadd.f32 %v694, %v777
        %v779 = vpop.f32.mrf.mxu0
        %v780 = vadd.f32 %v699, %v779
        %781 = vdwg.mxu0
        %782 = vmatpush.bf16.msra.mxu0 0
        %783 = vmatpush.bf16.msra.mxu0 0
        %784 = vmatpush.bf16.msra.mxu0 0
        %785 = vmatpush.bf16.msra.mxu0 0
        %786 = vmatpush.bf16.msra.mxu0 0
        %787 = vmatpush.bf16.msra.mxu0 0
        %788 = vmatpush.bf16.msra.mxu0 %v736
        %789 = vmatpush.bf16.msra.mxu0 %v734
        %790 = vmatmul.bf16.gmra.mxu0 %v742
        %v791 = vpop.f32.mrf.mxu0
        %v792 = vadd.f32 %v664, %v791
        %v793 = vpop.f32.mrf.mxu0
        %v794 = vadd.f32 %v669, %v793
        %795 = vmatmul.bf16.gmra.mxu0 %v745
        %v796 = vpop.f32.mrf.mxu0
        %v797 = vadd.f32 %v674, %v796
        %v798 = vpop.f32.mrf.mxu0
        %v799 = vadd.f32 %v679, %v798
        %800 = vmatmul.bf16.gmra.mxu0 %v748
        %v801 = vpop.f32.mrf.mxu0
        %v802 = vadd.f32 %v684, %v801
        %v803 = vpop.f32.mrf.mxu0
        %v804 = vadd.f32 %v689, %v803
        %805 = vmatmul.bf16.gmra.mxu0 %v751
        %v806 = vpop.f32.mrf.mxu0
        %v807 = vadd.f32 %v694, %v806
        %v808 = vpop.f32.mrf.mxu0
        %v809 = vadd.f32 %v699, %v808
        %810 = vdwg.mxu0
        %v811 = vpack.c.bf16 %v792, %v763
        %v812 = vpack.c.bf16 %v794, %v765
        %v813 = vpack.c.bf16 %v797, %v768
        %v814 = vpack.c.bf16 %v799, %v770
        %v815 = vpack.c.bf16 %v802, %v773
        %v816 = vpack.c.bf16 %v804, %v775
        %v817 = vpack.c.bf16 %v807, %v778
        %v818 = vpack.c.bf16 %v809, %v780
        %v819 = vld [vmem:[%s5] sm:$0xf]
        %v820 = vld [vmem:[%s5 + $0x4] sm:$0xf]
        %v821 = vld [vmem:[%s5 + $0x8] sm:$0xf]
        %v822 = vld [vmem:[%s5 + $0xc] sm:$0xf]
        %v823 = vld [vmem:[%s5 + $0x10] sm:$0xf]
        %v824 = vld [vmem:[%s5 + $0x14] sm:$0xf]
        %v825 = vld [vmem:[%s5 + $0x18] sm:$0xf]
        %v826 = vld [vmem:[%s5 + $0x1c] sm:$0xf]
        %v827 = vld [vmem:[%s8] sm:$0xff]
        %v828 = vld [vmem:[%s8 + $0x8] sm:$0xff]
        %v829 = vld [vmem:[%s8 + $0x10] sm:$0xff]
        %v830 = vld [vmem:[%s8 + $0x18] sm:$0xff]
        %v831 = vld [vmem:[%s8 + $0x20] sm:$0xff]
        %v832 = vld [vmem:[%s8 + $0x28] sm:$0xff]
        %v833 = vld [vmem:[%s8 + $0x30] sm:$0xff]
        %v834 = vld [vmem:[%s8 + $0x38] sm:$0xff]
        %836 = vset.pattern.permute.xlu0 0
        %837 = vperm.xlu0 %836, %v827
        %v838 = vpop.permute.xlu0 %837
        %841 = vset.pattern.permute.xlu0 0
        %842 = vperm.xlu0 %841, %v828
        %v843 = vpop.permute.xlu0 %842
        %846 = vset.pattern.permute.xlu0 0
        %847 = vperm.xlu0 %846, %v829
        %v848 = vpop.permute.xlu0 %847
        %851 = vset.pattern.permute.xlu0 0
        %852 = vperm.xlu0 %851, %v830
        %v853 = vpop.permute.xlu0 %852
        %856 = vset.pattern.permute.xlu0 0
        %857 = vperm.xlu0 %856, %v831
        %v858 = vpop.permute.xlu0 %857
        %861 = vset.pattern.permute.xlu0 0
        %862 = vperm.xlu0 %861, %v832
        %v863 = vpop.permute.xlu0 %862
        %866 = vset.pattern.permute.xlu0 0
        %867 = vperm.xlu0 %866, %v833
        %v868 = vpop.permute.xlu0 %867
        %871 = vset.pattern.permute.xlu0 0
        %872 = vperm.xlu0 %871, %v834
        %v873 = vpop.permute.xlu0 %872
        %v883 = vunpack.c.l.b16 %v819
        %v884 = vunpack.c.l.b16 %v820
        %v885 = vunpack.c.l.b16 %v821
        %v886 = vunpack.c.l.b16 %v822
        %v887 = vunpack.c.l.b16 %v823
        %v888 = vunpack.c.l.b16 %v824
        %v889 = vunpack.c.l.b16 %v825
        %v890 = vunpack.c.l.b16 %v826
        %v891 = vpack.c.b16 %v884, %v883
        %v892 = vpack.c.b16 %v886, %v885
        %v893 = vpack.c.b16 %v888, %v887
        %v894 = vpack.c.b16 %v890, %v889
        %v899 = vunpack.c.l.b16 %v503
        %v900 = vunpack.c.h.b16 %v503
        %v901 = vunpack.c.l.b16 %v504
        %v902 = vunpack.c.h.b16 %v504
        %v903 = vunpack.c.l.b16 %v505
        %v904 = vunpack.c.h.b16 %v505
        %v905 = vunpack.c.l.b16 %v506
        %v906 = vunpack.c.h.b16 %v506
        %v907 = vpack.c.b16 %v901, %v899
        %v908 = vpack.c.b16 %v902, %v900
        %v909 = vpack.c.b16 %v905, %v903
        %v910 = vpack.c.b16 %v906, %v904
        %v916 = vsel %vm595, %v891, 0
        %v919 = vsel %vm595, %v892, 0
        %v922 = vsel %vm595, %v893, 0
        %v925 = vsel %vm595, %v894, 0
        %927 = vmatpush.bf16.msra.mxu0 0
        %928 = vmatpush.bf16.msra.mxu0 0
        %929 = vmatpush.bf16.msra.mxu0 0
        %930 = vmatpush.bf16.msra.mxu0 0
        %931 = vmatpush.bf16.msra.mxu0 0
        %932 = vmatpush.bf16.msra.mxu0 0
        %933 = vmatpush.bf16.msra.mxu0 %v909
        %934 = vmatpush.bf16.msra.mxu0 %v907
        %935 = vmatmul.bf16.gmra.mxu0 %v916
        %v936 = vpop.f32.mrf.mxu0
        %v937 = vadd.f32 %v838, %v936
        %v938 = vpop.f32.mrf.mxu0
        %v939 = vadd.f32 %v843, %v938
        %940 = vmatmul.bf16.gmra.mxu0 %v919
        %v941 = vpop.f32.mrf.mxu0
        %v942 = vadd.f32 %v848, %v941
        %v943 = vpop.f32.mrf.mxu0
        %v944 = vadd.f32 %v853, %v943
        %945 = vmatmul.bf16.gmra.mxu0 %v922
        %v946 = vpop.f32.mrf.mxu0
        %v947 = vadd.f32 %v858, %v946
        %v948 = vpop.f32.mrf.mxu0
        %v949 = vadd.f32 %v863, %v948
        %950 = vmatmul.bf16.gmra.mxu0 %v925
        %v951 = vpop.f32.mrf.mxu0
        %v952 = vadd.f32 %v868, %v951
        %v953 = vpop.f32.mrf.mxu0
        %v954 = vadd.f32 %v873, %v953
        %955 = vdwg.mxu0
        %956 = vmatpush.bf16.msra.mxu0 0
        %957 = vmatpush.bf16.msra.mxu0 0
        %958 = vmatpush.bf16.msra.mxu0 0
        %959 = vmatpush.bf16.msra.mxu0 0
        %960 = vmatpush.bf16.msra.mxu0 0
        %961 = vmatpush.bf16.msra.mxu0 0
        %962 = vmatpush.bf16.msra.mxu0 %v910
        %963 = vmatpush.bf16.msra.mxu0 %v908
        %964 = vmatmul.bf16.gmra.mxu0 %v916
        %v965 = vpop.f32.mrf.mxu0
        %v966 = vadd.f32 %v838, %v965
        %v967 = vpop.f32.mrf.mxu0
        %v968 = vadd.f32 %v843, %v967
        %969 = vmatmul.bf16.gmra.mxu0 %v919
        %v970 = vpop.f32.mrf.mxu0
        %v971 = vadd.f32 %v848, %v970
        %v972 = vpop.f32.mrf.mxu0
        %v973 = vadd.f32 %v853, %v972
        %974 = vmatmul.bf16.gmra.mxu0 %v922
        %v975 = vpop.f32.mrf.mxu0
        %v976 = vadd.f32 %v858, %v975
        %v977 = vpop.f32.mrf.mxu0
        %v978 = vadd.f32 %v863, %v977
        %979 = vmatmul.bf16.gmra.mxu0 %v925
        %v980 = vpop.f32.mrf.mxu0
        %v981 = vadd.f32 %v868, %v980
        %v982 = vpop.f32.mrf.mxu0
        %v983 = vadd.f32 %v873, %v982
        %984 = vdwg.mxu0
        %v985 = vpack.c.bf16 %v966, %v937
        %v986 = vpack.c.bf16 %v968, %v939
        %v987 = vpack.c.bf16 %v971, %v942
        %v988 = vpack.c.bf16 %v973, %v944
        %v989 = vpack.c.bf16 %v976, %v947
        %v990 = vpack.c.bf16 %v978, %v949
        %v991 = vpack.c.bf16 %v981, %v952
        %v992 = vpack.c.bf16 %v983, %v954
        %993 = vxpose.xlu0.c.b16.start [1/8] %v637, 128
        %994 = vxpose.xlu0.c.b16.cont [2/8] 0, 128
        %995 = vxpose.xlu0.c.b16.cont [3/8] 0, 128
        %996 = vxpose.xlu0.c.b16.cont [4/8] 0, 128
        %997 = vxpose.xlu0.c.b16.cont [5/8] 0, 128
        %998 = vxpose.xlu0.c.b16.cont [6/8] 0, 128
        %999 = vxpose.xlu0.c.b16.cont [7/8] 0, 128
        %1000 = vxpose.xlu0.c.b16.end [8/8] 0, 128
        %v1001 = vpop.trf.xlu0
        %v1002 = vpop.trf.xlu0
        %v1003 = vpop.trf.xlu0
        %v1004 = vpop.trf.xlu0
        %v1005 = vpop.trf.xlu0
        %v1006 = vpop.trf.xlu0
        %v1007 = vpop.trf.xlu0
        %v1008 = vpop.trf.xlu0
        %v1010 = vunpack.c.l.b16 %v811
        %v1011 = vunpack.c.h.b16 %v811
        %v1012 = vpack.c.b16 %v1010, %v1010
        %v1013 = vpack.c.b16 %v1011, %v1011
        %vm1014 = vcmask 64512
        %v1016 = vsel %vm1014, %v1001, 0
        %v1019 = vsel %vm1014, %v1002, 0
        %v1022 = vsel %vm1014, %v1003, 0
        %v1025 = vsel %vm1014, %v1004, 0
        %v1028 = vsel %vm1014, %v1005, 0
        %v1031 = vsel %vm1014, %v1006, 0
        %v1034 = vsel %vm1014, %v1007, 0
        %v1037 = vsel %vm1014, %v1008, 0
        %vm1039 = vcmask 1043456
        %v1041 = vsel %vm1039, %v1012, 0
        %v1044 = vsel %vm1039, %v1013, 0
        %1046 = vmatpush.bf16.msra.mxu0 0
        %1047 = vmatpush.bf16.msra.mxu0 0
        %1048 = vmatpush.bf16.msra.mxu0 0
        %1049 = vmatpush.bf16.msra.mxu0 0
        %1050 = vmatpush.bf16.msra.mxu0 0
        %1051 = vmatpush.bf16.msra.mxu0 0
        %1052 = vmatpush.bf16.msra.mxu0 0
        %1053 = vmatpush.bf16.msra.mxu0 %v1041
        %1054 = vmatmul.bf16.gmra.mxu0 %v1016
        %v1055 = vpop.f32.mrf.mxu0
        %v1056 = vadd.f32 0.0, %v1055
        %v1057 = vpop.f32.mrf.mxu0
        %v1058 = vadd.f32 0.0, %v1057
        %1059 = vmatmul.bf16.gmra.mxu0 %v1019
        %v1060 = vpop.f32.mrf.mxu0
        %v1061 = vadd.f32 0.0, %v1060
        %v1062 = vpop.f32.mrf.mxu0
        %v1063 = vadd.f32 0.0, %v1062
        %1064 = vmatmul.bf16.gmra.mxu0 %v1022
        %v1065 = vpop.f32.mrf.mxu0
        %v1066 = vadd.f32 0.0, %v1065
        %v1067 = vpop.f32.mrf.mxu0
        %v1068 = vadd.f32 0.0, %v1067
        %1069 = vmatmul.bf16.gmra.mxu0 %v1025
        %v1070 = vpop.f32.mrf.mxu0
        %v1071 = vadd.f32 0.0, %v1070
        %v1072 = vpop.f32.mrf.mxu0
        %v1073 = vadd.f32 0.0, %v1072
        %1074 = vmatmul.bf16.gmra.mxu0 %v1028
        %v1075 = vpop.f32.mrf.mxu0
        %v1076 = vadd.f32 0.0, %v1075
        %v1077 = vpop.f32.mrf.mxu0
        %v1078 = vadd.f32 0.0, %v1077
        %1079 = vmatmul.bf16.gmra.mxu0 %v1031
        %v1080 = vpop.f32.mrf.mxu0
        %v1081 = vadd.f32 0.0, %v1080
        %v1082 = vpop.f32.mrf.mxu0
        %v1083 = vadd.f32 0.0, %v1082
        %1084 = vmatmul.bf16.gmra.mxu0 %v1034
        %v1085 = vpop.f32.mrf.mxu0
        %v1086 = vadd.f32 0.0, %v1085
        %v1087 = vpop.f32.mrf.mxu0
        %v1088 = vadd.f32 0.0, %v1087
        %1089 = vmatmul.bf16.gmra.mxu0 %v1037
        %v1090 = vpop.f32.mrf.mxu0
        %v1091 = vadd.f32 0.0, %v1090
        %v1092 = vpop.f32.mrf.mxu0
        %v1093 = vadd.f32 0.0, %v1092
        %1094 = vdwg.mxu0
        %1095 = vmatpush.bf16.msra.mxu0 0
        %1096 = vmatpush.bf16.msra.mxu0 0
        %1097 = vmatpush.bf16.msra.mxu0 0
        %1098 = vmatpush.bf16.msra.mxu0 0
        %1099 = vmatpush.bf16.msra.mxu0 0
        %1100 = vmatpush.bf16.msra.mxu0 0
        %1101 = vmatpush.bf16.msra.mxu0 0
        %1102 = vmatpush.bf16.msra.mxu0 %v1044
        %1103 = vmatmul.bf16.gmra.mxu0 %v1016
        %v1104 = vpop.f32.mrf.mxu0
        %v1105 = vadd.f32 0.0, %v1104
        %v1106 = vpop.f32.mrf.mxu0
        %v1107 = vadd.f32 0.0, %v1106
        %1108 = vmatmul.bf16.gmra.mxu0 %v1019
        %v1109 = vpop.f32.mrf.mxu0
        %v1110 = vadd.f32 0.0, %v1109
        %v1111 = vpop.f32.mrf.mxu0
        %v1112 = vadd.f32 0.0, %v1111
        %1113 = vmatmul.bf16.gmra.mxu0 %v1022
        %v1114 = vpop.f32.mrf.mxu0
        %v1115 = vadd.f32 0.0, %v1114
        %v1116 = vpop.f32.mrf.mxu0
        %v1117 = vadd.f32 0.0, %v1116
        %1118 = vmatmul.bf16.gmra.mxu0 %v1025
        %v1119 = vpop.f32.mrf.mxu0
        %v1120 = vadd.f32 0.0, %v1119
        %v1121 = vpop.f32.mrf.mxu0
        %v1122 = vadd.f32 0.0, %v1121
        %1123 = vmatmul.bf16.gmra.mxu0 %v1028
        %v1124 = vpop.f32.mrf.mxu0
        %v1125 = vadd.f32 0.0, %v1124
        %v1126 = vpop.f32.mrf.mxu0
        %v1127 = vadd.f32 0.0, %v1126
        %1128 = vmatmul.bf16.gmra.mxu0 %v1031
        %v1129 = vpop.f32.mrf.mxu0
        %v1130 = vadd.f32 0.0, %v1129
        %v1131 = vpop.f32.mrf.mxu0
        %v1132 = vadd.f32 0.0, %v1131
        %1133 = vmatmul.bf16.gmra.mxu0 %v1034
        %v1134 = vpop.f32.mrf.mxu0
        %v1135 = vadd.f32 0.0, %v1134
        %v1136 = vpop.f32.mrf.mxu0
        %v1137 = vadd.f32 0.0, %v1136
        %1138 = vmatmul.bf16.gmra.mxu0 %v1037
        %v1139 = vpop.f32.mrf.mxu0
        %v1140 = vadd.f32 0.0, %v1139
        %v1141 = vpop.f32.mrf.mxu0
        %v1142 = vadd.f32 0.0, %v1141
        %1143 = vdwg.mxu0
        %1144 = vxpose.xlu0.c.b16.start [1/8] %v638, 128
        %1145 = vxpose.xlu0.c.b16.cont [2/8] 0, 128
        %1146 = vxpose.xlu0.c.b16.cont [3/8] 0, 128
        %1147 = vxpose.xlu0.c.b16.cont [4/8] 0, 128
        %1148 = vxpose.xlu0.c.b16.cont [5/8] 0, 128
        %1149 = vxpose.xlu0.c.b16.cont [6/8] 0, 128
        %1150 = vxpose.xlu0.c.b16.cont [7/8] 0, 128
        %1151 = vxpose.xlu0.c.b16.end [8/8] 0, 128
        %v1152 = vpop.trf.xlu0
        %v1153 = vpop.trf.xlu0
        %v1154 = vpop.trf.xlu0
        %v1155 = vpop.trf.xlu0
        %v1156 = vpop.trf.xlu0
        %v1157 = vpop.trf.xlu0
        %v1158 = vpop.trf.xlu0
        %v1159 = vpop.trf.xlu0
        %v1161 = vunpack.c.l.b16 %v812
        %v1162 = vunpack.c.h.b16 %v812
        %v1163 = vpack.c.b16 %v1161, %v1161
        %v1164 = vpack.c.b16 %v1162, %v1162
        %v1166 = vsel %vm1014, %v1152, 0
        %v1169 = vsel %vm1014, %v1153, 0
        %v1172 = vsel %vm1014, %v1154, 0
        %v1175 = vsel %vm1014, %v1155, 0
        %v1178 = vsel %vm1014, %v1156, 0
        %v1181 = vsel %vm1014, %v1157, 0
        %v1184 = vsel %vm1014, %v1158, 0
        %v1187 = vsel %vm1014, %v1159, 0
        %v1190 = vsel %vm1039, %v1163, 0
        %v1193 = vsel %vm1039, %v1164, 0
        %1195 = vmatpush.bf16.msra.mxu0 0
        %1196 = vmatpush.bf16.msra.mxu0 0
        %1197 = vmatpush.bf16.msra.mxu0 0
        %1198 = vmatpush.bf16.msra.mxu0 0
        %1199 = vmatpush.bf16.msra.mxu0 0
        %1200 = vmatpush.bf16.msra.mxu0 0
        %1201 = vmatpush.bf16.msra.mxu0 0
        %1202 = vmatpush.bf16.msra.mxu0 %v1190
        %1203 = vmatmul.bf16.gmra.mxu0 %v1166
        %v1204 = vpop.f32.mrf.mxu0
        %v1205 = vadd.f32 0.0, %v1204
        %v1206 = vpop.f32.mrf.mxu0
        %v1207 = vadd.f32 0.0, %v1206
        %1208 = vmatmul.bf16.gmra.mxu0 %v1169
        %v1209 = vpop.f32.mrf.mxu0
        %v1210 = vadd.f32 0.0, %v1209
        %v1211 = vpop.f32.mrf.mxu0
        %v1212 = vadd.f32 0.0, %v1211
        %1213 = vmatmul.bf16.gmra.mxu0 %v1172
        %v1214 = vpop.f32.mrf.mxu0
        %v1215 = vadd.f32 0.0, %v1214
        %v1216 = vpop.f32.mrf.mxu0
        %v1217 = vadd.f32 0.0, %v1216
        %1218 = vmatmul.bf16.gmra.mxu0 %v1175
        %v1219 = vpop.f32.mrf.mxu0
        %v1220 = vadd.f32 0.0, %v1219
        %v1221 = vpop.f32.mrf.mxu0
        %v1222 = vadd.f32 0.0, %v1221
        %1223 = vmatmul.bf16.gmra.mxu0 %v1178
        %v1224 = vpop.f32.mrf.mxu0
        %v1225 = vadd.f32 0.0, %v1224
        %v1226 = vpop.f32.mrf.mxu0
        %v1227 = vadd.f32 0.0, %v1226
        %1228 = vmatmul.bf16.gmra.mxu0 %v1181
        %v1229 = vpop.f32.mrf.mxu0
        %v1230 = vadd.f32 0.0, %v1229
        %v1231 = vpop.f32.mrf.mxu0
        %v1232 = vadd.f32 0.0, %v1231
        %1233 = vmatmul.bf16.gmra.mxu0 %v1184
        %v1234 = vpop.f32.mrf.mxu0
        %v1235 = vadd.f32 0.0, %v1234
        %v1236 = vpop.f32.mrf.mxu0
        %v1237 = vadd.f32 0.0, %v1236
        %1238 = vmatmul.bf16.gmra.mxu0 %v1187
        %v1239 = vpop.f32.mrf.mxu0
        %v1240 = vadd.f32 0.0, %v1239
        %v1241 = vpop.f32.mrf.mxu0
        %v1242 = vadd.f32 0.0, %v1241
        %1243 = vdwg.mxu0
        %1244 = vmatpush.bf16.msra.mxu0 0
        %1245 = vmatpush.bf16.msra.mxu0 0
        %1246 = vmatpush.bf16.msra.mxu0 0
        %1247 = vmatpush.bf16.msra.mxu0 0
        %1248 = vmatpush.bf16.msra.mxu0 0
        %1249 = vmatpush.bf16.msra.mxu0 0
        %1250 = vmatpush.bf16.msra.mxu0 0
        %1251 = vmatpush.bf16.msra.mxu0 %v1193
        %1252 = vmatmul.bf16.gmra.mxu0 %v1166
        %v1253 = vpop.f32.mrf.mxu0
        %v1254 = vadd.f32 0.0, %v1253
        %v1255 = vpop.f32.mrf.mxu0
        %v1256 = vadd.f32 0.0, %v1255
        %1257 = vmatmul.bf16.gmra.mxu0 %v1169
        %v1258 = vpop.f32.mrf.mxu0
        %v1259 = vadd.f32 0.0, %v1258
        %v1260 = vpop.f32.mrf.mxu0
        %v1261 = vadd.f32 0.0, %v1260
        %1262 = vmatmul.bf16.gmra.mxu0 %v1172
        %v1263 = vpop.f32.mrf.mxu0
        %v1264 = vadd.f32 0.0, %v1263
        %v1265 = vpop.f32.mrf.mxu0
        %v1266 = vadd.f32 0.0, %v1265
        %1267 = vmatmul.bf16.gmra.mxu0 %v1175
        %v1268 = vpop.f32.mrf.mxu0
        %v1269 = vadd.f32 0.0, %v1268
        %v1270 = vpop.f32.mrf.mxu0
        %v1271 = vadd.f32 0.0, %v1270
        %1272 = vmatmul.bf16.gmra.mxu0 %v1178
        %v1273 = vpop.f32.mrf.mxu0
        %v1274 = vadd.f32 0.0, %v1273
        %v1275 = vpop.f32.mrf.mxu0
        %v1276 = vadd.f32 0.0, %v1275
        %1277 = vmatmul.bf16.gmra.mxu0 %v1181
        %v1278 = vpop.f32.mrf.mxu0
        %v1279 = vadd.f32 0.0, %v1278
        %v1280 = vpop.f32.mrf.mxu0
        %v1281 = vadd.f32 0.0, %v1280
        %1282 = vmatmul.bf16.gmra.mxu0 %v1184
        %v1283 = vpop.f32.mrf.mxu0
        %v1284 = vadd.f32 0.0, %v1283
        %v1285 = vpop.f32.mrf.mxu0
        %v1286 = vadd.f32 0.0, %v1285
        %1287 = vmatmul.bf16.gmra.mxu0 %v1187
        %v1288 = vpop.f32.mrf.mxu0
        %v1289 = vadd.f32 0.0, %v1288
        %v1290 = vpop.f32.mrf.mxu0
        %v1291 = vadd.f32 0.0, %v1290
        %1292 = vdwg.mxu0
        %1293 = vxpose.xlu0.c.b16.start [1/8] %v639, 128
        %1294 = vxpose.xlu0.c.b16.cont [2/8] 0, 128
        %1295 = vxpose.xlu0.c.b16.cont [3/8] 0, 128
        %1296 = vxpose.xlu0.c.b16.cont [4/8] 0, 128
        %1297 = vxpose.xlu0.c.b16.cont [5/8] 0, 128
        %1298 = vxpose.xlu0.c.b16.cont [6/8] 0, 128
        %1299 = vxpose.xlu0.c.b16.cont [7/8] 0, 128
        %1300 = vxpose.xlu0.c.b16.end [8/8] 0, 128
        %v1301 = vpop.trf.xlu0
        %v1302 = vpop.trf.xlu0
        %v1303 = vpop.trf.xlu0
        %v1304 = vpop.trf.xlu0
        %v1305 = vpop.trf.xlu0
        %v1306 = vpop.trf.xlu0
        %v1307 = vpop.trf.xlu0
        %v1308 = vpop.trf.xlu0
        %v1310 = vunpack.c.l.b16 %v813
        %v1311 = vunpack.c.h.b16 %v813
        %v1312 = vpack.c.b16 %v1310, %v1310
        %v1313 = vpack.c.b16 %v1311, %v1311
        %v1315 = vsel %vm1014, %v1301, 0
        %v1318 = vsel %vm1014, %v1302, 0
        %v1321 = vsel %vm1014, %v1303, 0
        %v1324 = vsel %vm1014, %v1304, 0
        %v1327 = vsel %vm1014, %v1305, 0
        %v1330 = vsel %vm1014, %v1306, 0
        %v1333 = vsel %vm1014, %v1307, 0
        %v1336 = vsel %vm1014, %v1308, 0
        %v1339 = vsel %vm1039, %v1312, 0
        %v1342 = vsel %vm1039, %v1313, 0
        %1344 = vmatpush.bf16.msra.mxu0 0
        %1345 = vmatpush.bf16.msra.mxu0 0
        %1346 = vmatpush.bf16.msra.mxu0 0
        %1347 = vmatpush.bf16.msra.mxu0 0
        %1348 = vmatpush.bf16.msra.mxu0 0
        %1349 = vmatpush.bf16.msra.mxu0 0
        %1350 = vmatpush.bf16.msra.mxu0 0
        %1351 = vmatpush.bf16.msra.mxu0 %v1339
        %1352 = vmatmul.bf16.gmra.mxu0 %v1315
        %v1353 = vpop.f32.mrf.mxu0
        %v1354 = vadd.f32 0.0, %v1353
        %v1355 = vpop.f32.mrf.mxu0
        %v1356 = vadd.f32 0.0, %v1355
        %1357 = vmatmul.bf16.gmra.mxu0 %v1318
        %v1358 = vpop.f32.mrf.mxu0
        %v1359 = vadd.f32 0.0, %v1358
        %v1360 = vpop.f32.mrf.mxu0
        %v1361 = vadd.f32 0.0, %v1360
        %1362 = vmatmul.bf16.gmra.mxu0 %v1321
        %v1363 = vpop.f32.mrf.mxu0
        %v1364 = vadd.f32 0.0, %v1363
        %v1365 = vpop.f32.mrf.mxu0
        %v1366 = vadd.f32 0.0, %v1365
        %1367 = vmatmul.bf16.gmra.mxu0 %v1324
        %v1368 = vpop.f32.mrf.mxu0
        %v1369 = vadd.f32 0.0, %v1368
        %v1370 = vpop.f32.mrf.mxu0
        %v1371 = vadd.f32 0.0, %v1370
        %1372 = vmatmul.bf16.gmra.mxu0 %v1327
        %v1373 = vpop.f32.mrf.mxu0
        %v1374 = vadd.f32 0.0, %v1373
        %v1375 = vpop.f32.mrf.mxu0
        %v1376 = vadd.f32 0.0, %v1375
        %1377 = vmatmul.bf16.gmra.mxu0 %v1330
        %v1378 = vpop.f32.mrf.mxu0
        %v1379 = vadd.f32 0.0, %v1378
        %v1380 = vpop.f32.mrf.mxu0
        %v1381 = vadd.f32 0.0, %v1380
        %1382 = vmatmul.bf16.gmra.mxu0 %v1333
        %v1383 = vpop.f32.mrf.mxu0
        %v1384 = vadd.f32 0.0, %v1383
        %v1385 = vpop.f32.mrf.mxu0
        %v1386 = vadd.f32 0.0, %v1385
        %1387 = vmatmul.bf16.gmra.mxu0 %v1336
        %v1388 = vpop.f32.mrf.mxu0
        %v1389 = vadd.f32 0.0, %v1388
        %v1390 = vpop.f32.mrf.mxu0
        %v1391 = vadd.f32 0.0, %v1390
        %1392 = vdwg.mxu0
        %1393 = vmatpush.bf16.msra.mxu0 0
        %1394 = vmatpush.bf16.msra.mxu0 0
        %1395 = vmatpush.bf16.msra.mxu0 0
        %1396 = vmatpush.bf16.msra.mxu0 0
        %1397 = vmatpush.bf16.msra.mxu0 0
        %1398 = vmatpush.bf16.msra.mxu0 0
        %1399 = vmatpush.bf16.msra.mxu0 0
        %1400 = vmatpush.bf16.msra.mxu0 %v1342
        %1401 = vmatmul.bf16.gmra.mxu0 %v1315
        %v1402 = vpop.f32.mrf.mxu0
        %v1403 = vadd.f32 0.0, %v1402
        %v1404 = vpop.f32.mrf.mxu0
        %v1405 = vadd.f32 0.0, %v1404
        %1406 = vmatmul.bf16.gmra.mxu0 %v1318
        %v1407 = vpop.f32.mrf.mxu0
        %v1408 = vadd.f32 0.0, %v1407
        %v1409 = vpop.f32.mrf.mxu0
        %v1410 = vadd.f32 0.0, %v1409
        %1411 = vmatmul.bf16.gmra.mxu0 %v1321
        %v1412 = vpop.f32.mrf.mxu0
        %v1413 = vadd.f32 0.0, %v1412
        %v1414 = vpop.f32.mrf.mxu0
        %v1415 = vadd.f32 0.0, %v1414
        %1416 = vmatmul.bf16.gmra.mxu0 %v1324
        %v1417 = vpop.f32.mrf.mxu0
        %v1418 = vadd.f32 0.0, %v1417
        %v1419 = vpop.f32.mrf.mxu0
        %v1420 = vadd.f32 0.0, %v1419
        %1421 = vmatmul.bf16.gmra.mxu0 %v1327
        %v1422 = vpop.f32.mrf.mxu0
        %v1423 = vadd.f32 0.0, %v1422
        %v1424 = vpop.f32.mrf.mxu0
        %v1425 = vadd.f32 0.0, %v1424
        %1426 = vmatmul.bf16.gmra.mxu0 %v1330
        %v1427 = vpop.f32.mrf.mxu0
        %v1428 = vadd.f32 0.0, %v1427
        %v1429 = vpop.f32.mrf.mxu0
        %v1430 = vadd.f32 0.0, %v1429
        %1431 = vmatmul.bf16.gmra.mxu0 %v1333
        %v1432 = vpop.f32.mrf.mxu0
        %v1433 = vadd.f32 0.0, %v1432
        %v1434 = vpop.f32.mrf.mxu0
        %v1435 = vadd.f32 0.0, %v1434
        %1436 = vmatmul.bf16.gmra.mxu0 %v1336
        %v1437 = vpop.f32.mrf.mxu0
        %v1438 = vadd.f32 0.0, %v1437
        %v1439 = vpop.f32.mrf.mxu0
        %v1440 = vadd.f32 0.0, %v1439
        %1441 = vdwg.mxu0
        %1442 = vxpose.xlu0.c.b16.start [1/8] %v640, 128
        %1443 = vxpose.xlu0.c.b16.cont [2/8] 0, 128
        %1444 = vxpose.xlu0.c.b16.cont [3/8] 0, 128
        %1445 = vxpose.xlu0.c.b16.cont [4/8] 0, 128
        %1446 = vxpose.xlu0.c.b16.cont [5/8] 0, 128
        %1447 = vxpose.xlu0.c.b16.cont [6/8] 0, 128
        %1448 = vxpose.xlu0.c.b16.cont [7/8] 0, 128
        %1449 = vxpose.xlu0.c.b16.end [8/8] 0, 128
        %v1450 = vpop.trf.xlu0
        %v1451 = vpop.trf.xlu0
        %v1452 = vpop.trf.xlu0
        %v1453 = vpop.trf.xlu0
        %v1454 = vpop.trf.xlu0
        %v1455 = vpop.trf.xlu0
        %v1456 = vpop.trf.xlu0
        %v1457 = vpop.trf.xlu0
        %v1459 = vunpack.c.l.b16 %v814
        %v1460 = vunpack.c.h.b16 %v814
        %v1461 = vpack.c.b16 %v1459, %v1459
        %v1462 = vpack.c.b16 %v1460, %v1460
        %v1464 = vsel %vm1014, %v1450, 0
        %v1467 = vsel %vm1014, %v1451, 0
        %v1470 = vsel %vm1014, %v1452, 0
        %v1473 = vsel %vm1014, %v1453, 0
        %v1476 = vsel %vm1014, %v1454, 0
        %v1479 = vsel %vm1014, %v1455, 0
        %v1482 = vsel %vm1014, %v1456, 0
        %v1485 = vsel %vm1014, %v1457, 0
        %v1488 = vsel %vm1039, %v1461, 0
        %v1491 = vsel %vm1039, %v1462, 0
        %1493 = vmatpush.bf16.msra.mxu0 0
        %1494 = vmatpush.bf16.msra.mxu0 0
        %1495 = vmatpush.bf16.msra.mxu0 0
        %1496 = vmatpush.bf16.msra.mxu0 0
        %1497 = vmatpush.bf16.msra.mxu0 0
        %1498 = vmatpush.bf16.msra.mxu0 0
        %1499 = vmatpush.bf16.msra.mxu0 0
        %1500 = vmatpush.bf16.msra.mxu0 %v1488
        %1501 = vmatmul.bf16.gmra.mxu0 %v1464
        %v1502 = vpop.f32.mrf.mxu0
        %v1503 = vadd.f32 0.0, %v1502
        %v1504 = vpop.f32.mrf.mxu0
        %v1505 = vadd.f32 0.0, %v1504
        %1506 = vmatmul.bf16.gmra.mxu0 %v1467
        %v1507 = vpop.f32.mrf.mxu0
        %v1508 = vadd.f32 0.0, %v1507
        %v1509 = vpop.f32.mrf.mxu0
        %v1510 = vadd.f32 0.0, %v1509
        %1511 = vmatmul.bf16.gmra.mxu0 %v1470
        %v1512 = vpop.f32.mrf.mxu0
        %v1513 = vadd.f32 0.0, %v1512
        %v1514 = vpop.f32.mrf.mxu0
        %v1515 = vadd.f32 0.0, %v1514
        %1516 = vmatmul.bf16.gmra.mxu0 %v1473
        %v1517 = vpop.f32.mrf.mxu0
        %v1518 = vadd.f32 0.0, %v1517
        %v1519 = vpop.f32.mrf.mxu0
        %v1520 = vadd.f32 0.0, %v1519
        %1521 = vmatmul.bf16.gmra.mxu0 %v1476
        %v1522 = vpop.f32.mrf.mxu0
        %v1523 = vadd.f32 0.0, %v1522
        %v1524 = vpop.f32.mrf.mxu0
        %v1525 = vadd.f32 0.0, %v1524
        %1526 = vmatmul.bf16.gmra.mxu0 %v1479
        %v1527 = vpop.f32.mrf.mxu0
        %v1528 = vadd.f32 0.0, %v1527
        %v1529 = vpop.f32.mrf.mxu0
        %v1530 = vadd.f32 0.0, %v1529
        %1531 = vmatmul.bf16.gmra.mxu0 %v1482
        %v1532 = vpop.f32.mrf.mxu0
        %v1533 = vadd.f32 0.0, %v1532
        %v1534 = vpop.f32.mrf.mxu0
        %v1535 = vadd.f32 0.0, %v1534
        %1536 = vmatmul.bf16.gmra.mxu0 %v1485
        %v1537 = vpop.f32.mrf.mxu0
        %v1538 = vadd.f32 0.0, %v1537
        %v1539 = vpop.f32.mrf.mxu0
        %v1540 = vadd.f32 0.0, %v1539
        %1541 = vdwg.mxu0
        %1542 = vmatpush.bf16.msra.mxu0 0
        %1543 = vmatpush.bf16.msra.mxu0 0
        %1544 = vmatpush.bf16.msra.mxu0 0
        %1545 = vmatpush.bf16.msra.mxu0 0
        %1546 = vmatpush.bf16.msra.mxu0 0
        %1547 = vmatpush.bf16.msra.mxu0 0
        %1548 = vmatpush.bf16.msra.mxu0 0
        %1549 = vmatpush.bf16.msra.mxu0 %v1491
        %1550 = vmatmul.bf16.gmra.mxu0 %v1464
        %v1551 = vpop.f32.mrf.mxu0
        %v1552 = vadd.f32 0.0, %v1551
        %v1553 = vpop.f32.mrf.mxu0
        %v1554 = vadd.f32 0.0, %v1553
        %1555 = vmatmul.bf16.gmra.mxu0 %v1467
        %v1556 = vpop.f32.mrf.mxu0
        %v1557 = vadd.f32 0.0, %v1556
        %v1558 = vpop.f32.mrf.mxu0
        %v1559 = vadd.f32 0.0, %v1558
        %1560 = vmatmul.bf16.gmra.mxu0 %v1470
        %v1561 = vpop.f32.mrf.mxu0
        %v1562 = vadd.f32 0.0, %v1561
        %v1563 = vpop.f32.mrf.mxu0
        %v1564 = vadd.f32 0.0, %v1563
        %1565 = vmatmul.bf16.gmra.mxu0 %v1473
        %v1566 = vpop.f32.mrf.mxu0
        %v1567 = vadd.f32 0.0, %v1566
        %v1568 = vpop.f32.mrf.mxu0
        %v1569 = vadd.f32 0.0, %v1568
        %1570 = vmatmul.bf16.gmra.mxu0 %v1476
        %v1571 = vpop.f32.mrf.mxu0
        %v1572 = vadd.f32 0.0, %v1571
        %v1573 = vpop.f32.mrf.mxu0
        %v1574 = vadd.f32 0.0, %v1573
        %1575 = vmatmul.bf16.gmra.mxu0 %v1479
        %v1576 = vpop.f32.mrf.mxu0
        %v1577 = vadd.f32 0.0, %v1576
        %v1578 = vpop.f32.mrf.mxu0
        %v1579 = vadd.f32 0.0, %v1578
        %1580 = vmatmul.bf16.gmra.mxu0 %v1482
        %v1581 = vpop.f32.mrf.mxu0
        %v1582 = vadd.f32 0.0, %v1581
        %v1583 = vpop.f32.mrf.mxu0
        %v1584 = vadd.f32 0.0, %v1583
        %1585 = vmatmul.bf16.gmra.mxu0 %v1485
        %v1586 = vpop.f32.mrf.mxu0
        %v1587 = vadd.f32 0.0, %v1586
        %v1588 = vpop.f32.mrf.mxu0
        %v1589 = vadd.f32 0.0, %v1588
        %1590 = vdwg.mxu0
        %1591 = vxpose.xlu0.c.b16.start [1/8] %v641, 128
        %1592 = vxpose.xlu0.c.b16.cont [2/8] 0, 128
        %1593 = vxpose.xlu0.c.b16.cont [3/8] 0, 128
        %1594 = vxpose.xlu0.c.b16.cont [4/8] 0, 128
        %1595 = vxpose.xlu0.c.b16.cont [5/8] 0, 128
        %1596 = vxpose.xlu0.c.b16.cont [6/8] 0, 128
        %1597 = vxpose.xlu0.c.b16.cont [7/8] 0, 128
        %1598 = vxpose.xlu0.c.b16.end [8/8] 0, 128
        %v1599 = vpop.trf.xlu0
        %v1600 = vpop.trf.xlu0
        %v1601 = vpop.trf.xlu0
        %v1602 = vpop.trf.xlu0
        %v1603 = vpop.trf.xlu0
        %v1604 = vpop.trf.xlu0
        %v1605 = vpop.trf.xlu0
        %v1606 = vpop.trf.xlu0
        %v1608 = vunpack.c.l.b16 %v815
        %v1609 = vunpack.c.h.b16 %v815
        %v1610 = vpack.c.b16 %v1608, %v1608
        %v1611 = vpack.c.b16 %v1609, %v1609
        %v1613 = vsel %vm1014, %v1599, 0
        %v1616 = vsel %vm1014, %v1600, 0
        %v1619 = vsel %vm1014, %v1601, 0
        %v1622 = vsel %vm1014, %v1602, 0
        %v1625 = vsel %vm1014, %v1603, 0
        %v1628 = vsel %vm1014, %v1604, 0
        %v1631 = vsel %vm1014, %v1605, 0
        %v1634 = vsel %vm1014, %v1606, 0
        %v1637 = vsel %vm1039, %v1610, 0
        %v1640 = vsel %vm1039, %v1611, 0
        %1642 = vmatpush.bf16.msra.mxu0 0
        %1643 = vmatpush.bf16.msra.mxu0 0
        %1644 = vmatpush.bf16.msra.mxu0 0
        %1645 = vmatpush.bf16.msra.mxu0 0
        %1646 = vmatpush.bf16.msra.mxu0 0
        %1647 = vmatpush.bf16.msra.mxu0 0
        %1648 = vmatpush.bf16.msra.mxu0 0
        %1649 = vmatpush.bf16.msra.mxu0 %v1637
        %1650 = vmatmul.bf16.gmra.mxu0 %v1613
        %v1651 = vpop.f32.mrf.mxu0
        %v1652 = vadd.f32 0.0, %v1651
        %v1653 = vpop.f32.mrf.mxu0
        %v1654 = vadd.f32 0.0, %v1653
        %1655 = vmatmul.bf16.gmra.mxu0 %v1616
        %v1656 = vpop.f32.mrf.mxu0
        %v1657 = vadd.f32 0.0, %v1656
        %v1658 = vpop.f32.mrf.mxu0
        %v1659 = vadd.f32 0.0, %v1658
        %1660 = vmatmul.bf16.gmra.mxu0 %v1619
        %v1661 = vpop.f32.mrf.mxu0
        %v1662 = vadd.f32 0.0, %v1661
        %v1663 = vpop.f32.mrf.mxu0
        %v1664 = vadd.f32 0.0, %v1663
        %1665 = vmatmul.bf16.gmra.mxu0 %v1622
        %v1666 = vpop.f32.mrf.mxu0
        %v1667 = vadd.f32 0.0, %v1666
        %v1668 = vpop.f32.mrf.mxu0
        %v1669 = vadd.f32 0.0, %v1668
        %1670 = vmatmul.bf16.gmra.mxu0 %v1625
        %v1671 = vpop.f32.mrf.mxu0
        %v1672 = vadd.f32 0.0, %v1671
        %v1673 = vpop.f32.mrf.mxu0
        %v1674 = vadd.f32 0.0, %v1673
        %1675 = vmatmul.bf16.gmra.mxu0 %v1628
        %v1676 = vpop.f32.mrf.mxu0
        %v1677 = vadd.f32 0.0, %v1676
        %v1678 = vpop.f32.mrf.mxu0
        %v1679 = vadd.f32 0.0, %v1678
        %1680 = vmatmul.bf16.gmra.mxu0 %v1631
        %v1681 = vpop.f32.mrf.mxu0
        %v1682 = vadd.f32 0.0, %v1681
        %v1683 = vpop.f32.mrf.mxu0
        %v1684 = vadd.f32 0.0, %v1683
        %1685 = vmatmul.bf16.gmra.mxu0 %v1634
        %v1686 = vpop.f32.mrf.mxu0
        %v1687 = vadd.f32 0.0, %v1686
        %v1688 = vpop.f32.mrf.mxu0
        %v1689 = vadd.f32 0.0, %v1688
        %1690 = vdwg.mxu0
        %1691 = vmatpush.bf16.msra.mxu0 0
        %1692 = vmatpush.bf16.msra.mxu0 0
        %1693 = vmatpush.bf16.msra.mxu0 0
        %1694 = vmatpush.bf16.msra.mxu0 0
        %1695 = vmatpush.bf16.msra.mxu0 0
        %1696 = vmatpush.bf16.msra.mxu0 0
        %1697 = vmatpush.bf16.msra.mxu0 0
        %1698 = vmatpush.bf16.msra.mxu0 %v1640
        %1699 = vmatmul.bf16.gmra.mxu0 %v1613
        %v1700 = vpop.f32.mrf.mxu0
        %v1701 = vadd.f32 0.0, %v1700
        %v1702 = vpop.f32.mrf.mxu0
        %v1703 = vadd.f32 0.0, %v1702
        %1704 = vmatmul.bf16.gmra.mxu0 %v1616
        %v1705 = vpop.f32.mrf.mxu0
        %v1706 = vadd.f32 0.0, %v1705
        %v1707 = vpop.f32.mrf.mxu0
        %v1708 = vadd.f32 0.0, %v1707
        %1709 = vmatmul.bf16.gmra.mxu0 %v1619
        %v1710 = vpop.f32.mrf.mxu0
        %v1711 = vadd.f32 0.0, %v1710
        %v1712 = vpop.f32.mrf.mxu0
        %v1713 = vadd.f32 0.0, %v1712
        %1714 = vmatmul.bf16.gmra.mxu0 %v1622
        %v1715 = vpop.f32.mrf.mxu0
        %v1716 = vadd.f32 0.0, %v1715
        %v1717 = vpop.f32.mrf.mxu0
        %v1718 = vadd.f32 0.0, %v1717
        %1719 = vmatmul.bf16.gmra.mxu0 %v1625
        %v1720 = vpop.f32.mrf.mxu0
        %v1721 = vadd.f32 0.0, %v1720
        %v1722 = vpop.f32.mrf.mxu0
        %v1723 = vadd.f32 0.0, %v1722
        %1724 = vmatmul.bf16.gmra.mxu0 %v1628
        %v1725 = vpop.f32.mrf.mxu0
        %v1726 = vadd.f32 0.0, %v1725
        %v1727 = vpop.f32.mrf.mxu0
        %v1728 = vadd.f32 0.0, %v1727
        %1729 = vmatmul.bf16.gmra.mxu0 %v1631
        %v1730 = vpop.f32.mrf.mxu0
        %v1731 = vadd.f32 0.0, %v1730
        %v1732 = vpop.f32.mrf.mxu0
        %v1733 = vadd.f32 0.0, %v1732
        %1734 = vmatmul.bf16.gmra.mxu0 %v1634
        %v1735 = vpop.f32.mrf.mxu0
        %v1736 = vadd.f32 0.0, %v1735
        %v1737 = vpop.f32.mrf.mxu0
        %v1738 = vadd.f32 0.0, %v1737
        %1739 = vdwg.mxu0
        %1740 = vxpose.xlu0.c.b16.start [1/8] %v642, 128
        %1741 = vxpose.xlu0.c.b16.cont [2/8] 0, 128
        %1742 = vxpose.xlu0.c.b16.cont [3/8] 0, 128
        %1743 = vxpose.xlu0.c.b16.cont [4/8] 0, 128
        %1744 = vxpose.xlu0.c.b16.cont [5/8] 0, 128
        %1745 = vxpose.xlu0.c.b16.cont [6/8] 0, 128
        %1746 = vxpose.xlu0.c.b16.cont [7/8] 0, 128
        %1747 = vxpose.xlu0.c.b16.end [8/8] 0, 128
        %v1748 = vpop.trf.xlu0
        %v1749 = vpop.trf.xlu0
        %v1750 = vpop.trf.xlu0
        %v1751 = vpop.trf.xlu0
        %v1752 = vpop.trf.xlu0
        %v1753 = vpop.trf.xlu0
        %v1754 = vpop.trf.xlu0
        %v1755 = vpop.trf.xlu0
        %v1757 = vunpack.c.l.b16 %v816
        %v1758 = vunpack.c.h.b16 %v816
        %v1759 = vpack.c.b16 %v1757, %v1757
        %v1760 = vpack.c.b16 %v1758, %v1758
        %v1762 = vsel %vm1014, %v1748, 0
        %v1765 = vsel %vm1014, %v1749, 0
        %v1768 = vsel %vm1014, %v1750, 0
        %v1771 = vsel %vm1014, %v1751, 0
        %v1774 = vsel %vm1014, %v1752, 0
        %v1777 = vsel %vm1014, %v1753, 0
        %v1780 = vsel %vm1014, %v1754, 0
        %v1783 = vsel %vm1014, %v1755, 0
        %v1786 = vsel %vm1039, %v1759, 0
        %v1789 = vsel %vm1039, %v1760, 0
        %1791 = vmatpush.bf16.msra.mxu0 0
        %1792 = vmatpush.bf16.msra.mxu0 0
        %1793 = vmatpush.bf16.msra.mxu0 0
        %1794 = vmatpush.bf16.msra.mxu0 0
        %1795 = vmatpush.bf16.msra.mxu0 0
        %1796 = vmatpush.bf16.msra.mxu0 0
        %1797 = vmatpush.bf16.msra.mxu0 0
        %1798 = vmatpush.bf16.msra.mxu0 %v1786
        %1799 = vmatmul.bf16.gmra.mxu0 %v1762
        %v1800 = vpop.f32.mrf.mxu0
        %v1801 = vadd.f32 0.0, %v1800
        %v1802 = vpop.f32.mrf.mxu0
        %v1803 = vadd.f32 0.0, %v1802
        %1804 = vmatmul.bf16.gmra.mxu0 %v1765
        %v1805 = vpop.f32.mrf.mxu0
        %v1806 = vadd.f32 0.0, %v1805
        %v1807 = vpop.f32.mrf.mxu0
        %v1808 = vadd.f32 0.0, %v1807
        %1809 = vmatmul.bf16.gmra.mxu0 %v1768
        %v1810 = vpop.f32.mrf.mxu0
        %v1811 = vadd.f32 0.0, %v1810
        %v1812 = vpop.f32.mrf.mxu0
        %v1813 = vadd.f32 0.0, %v1812
        %1814 = vmatmul.bf16.gmra.mxu0 %v1771
        %v1815 = vpop.f32.mrf.mxu0
        %v1816 = vadd.f32 0.0, %v1815
        %v1817 = vpop.f32.mrf.mxu0
        %v1818 = vadd.f32 0.0, %v1817
        %1819 = vmatmul.bf16.gmra.mxu0 %v1774
        %v1820 = vpop.f32.mrf.mxu0
        %v1821 = vadd.f32 0.0, %v1820
        %v1822 = vpop.f32.mrf.mxu0
        %v1823 = vadd.f32 0.0, %v1822
        %1824 = vmatmul.bf16.gmra.mxu0 %v1777
        %v1825 = vpop.f32.mrf.mxu0
        %v1826 = vadd.f32 0.0, %v1825
        %v1827 = vpop.f32.mrf.mxu0
        %v1828 = vadd.f32 0.0, %v1827
        %1829 = vmatmul.bf16.gmra.mxu0 %v1780
        %v1830 = vpop.f32.mrf.mxu0
        %v1831 = vadd.f32 0.0, %v1830
        %v1832 = vpop.f32.mrf.mxu0
        %v1833 = vadd.f32 0.0, %v1832
        %1834 = vmatmul.bf16.gmra.mxu0 %v1783
        %v1835 = vpop.f32.mrf.mxu0
        %v1836 = vadd.f32 0.0, %v1835
        %v1837 = vpop.f32.mrf.mxu0
        %v1838 = vadd.f32 0.0, %v1837
        %1839 = vdwg.mxu0
        %1840 = vmatpush.bf16.msra.mxu0 0
        %1841 = vmatpush.bf16.msra.mxu0 0
        %1842 = vmatpush.bf16.msra.mxu0 0
        %1843 = vmatpush.bf16.msra.mxu0 0
        %1844 = vmatpush.bf16.msra.mxu0 0
        %1845 = vmatpush.bf16.msra.mxu0 0
        %1846 = vmatpush.bf16.msra.mxu0 0
        %1847 = vmatpush.bf16.msra.mxu0 %v1789
        %1848 = vmatmul.bf16.gmra.mxu0 %v1762
        %v1849 = vpop.f32.mrf.mxu0
        %v1850 = vadd.f32 0.0, %v1849
        %v1851 = vpop.f32.mrf.mxu0
        %v1852 = vadd.f32 0.0, %v1851
        %1853 = vmatmul.bf16.gmra.mxu0 %v1765
        %v1854 = vpop.f32.mrf.mxu0
        %v1855 = vadd.f32 0.0, %v1854
        %v1856 = vpop.f32.mrf.mxu0
        %v1857 = vadd.f32 0.0, %v1856
        %1858 = vmatmul.bf16.gmra.mxu0 %v1768
        %v1859 = vpop.f32.mrf.mxu0
        %v1860 = vadd.f32 0.0, %v1859
        %v1861 = vpop.f32.mrf.mxu0
        %v1862 = vadd.f32 0.0, %v1861
        %1863 = vmatmul.bf16.gmra.mxu0 %v1771
        %v1864 = vpop.f32.mrf.mxu0
        %v1865 = vadd.f32 0.0, %v1864
        %v1866 = vpop.f32.mrf.mxu0
        %v1867 = vadd.f32 0.0, %v1866
        %1868 = vmatmul.bf16.gmra.mxu0 %v1774
        %v1869 = vpop.f32.mrf.mxu0
        %v1870 = vadd.f32 0.0, %v1869
        %v1871 = vpop.f32.mrf.mxu0
        %v1872 = vadd.f32 0.0, %v1871
        %1873 = vmatmul.bf16.gmra.mxu0 %v1777
        %v1874 = vpop.f32.mrf.mxu0
        %v1875 = vadd.f32 0.0, %v1874
        %v1876 = vpop.f32.mrf.mxu0
        %v1877 = vadd.f32 0.0, %v1876
        %1878 = vmatmul.bf16.gmra.mxu0 %v1780
        %v1879 = vpop.f32.mrf.mxu0
        %v1880 = vadd.f32 0.0, %v1879
        %v1881 = vpop.f32.mrf.mxu0
        %v1882 = vadd.f32 0.0, %v1881
        %1883 = vmatmul.bf16.gmra.mxu0 %v1783
        %v1884 = vpop.f32.mrf.mxu0
        %v1885 = vadd.f32 0.0, %v1884
        %v1886 = vpop.f32.mrf.mxu0
        %v1887 = vadd.f32 0.0, %v1886
        %1888 = vdwg.mxu0
        %1889 = vxpose.xlu0.c.b16.start [1/8] %v643, 128
        %1890 = vxpose.xlu0.c.b16.cont [2/8] 0, 128
        %1891 = vxpose.xlu0.c.b16.cont [3/8] 0, 128
        %1892 = vxpose.xlu0.c.b16.cont [4/8] 0, 128
        %1893 = vxpose.xlu0.c.b16.cont [5/8] 0, 128
        %1894 = vxpose.xlu0.c.b16.cont [6/8] 0, 128
        %1895 = vxpose.xlu0.c.b16.cont [7/8] 0, 128
        %1896 = vxpose.xlu0.c.b16.end [8/8] 0, 128
        %v1897 = vpop.trf.xlu0
        %v1898 = vpop.trf.xlu0
        %v1899 = vpop.trf.xlu0
        %v1900 = vpop.trf.xlu0
        %v1901 = vpop.trf.xlu0
        %v1902 = vpop.trf.xlu0
        %v1903 = vpop.trf.xlu0
        %v1904 = vpop.trf.xlu0
        %v1906 = vunpack.c.l.b16 %v817
        %v1907 = vunpack.c.h.b16 %v817
        %v1908 = vpack.c.b16 %v1906, %v1906
        %v1909 = vpack.c.b16 %v1907, %v1907
        %v1911 = vsel %vm1014, %v1897, 0
        %v1914 = vsel %vm1014, %v1898, 0
        %v1917 = vsel %vm1014, %v1899, 0
        %v1920 = vsel %vm1014, %v1900, 0
        %v1923 = vsel %vm1014, %v1901, 0
        %v1926 = vsel %vm1014, %v1902, 0
        %v1929 = vsel %vm1014, %v1903, 0
        %v1932 = vsel %vm1014, %v1904, 0
        %v1935 = vsel %vm1039, %v1908, 0
        %v1938 = vsel %vm1039, %v1909, 0
        %1940 = vmatpush.bf16.msra.mxu0 0
        %1941 = vmatpush.bf16.msra.mxu0 0
        %1942 = vmatpush.bf16.msra.mxu0 0
        %1943 = vmatpush.bf16.msra.mxu0 0
        %1944 = vmatpush.bf16.msra.mxu0 0
        %1945 = vmatpush.bf16.msra.mxu0 0
        %1946 = vmatpush.bf16.msra.mxu0 0
        %1947 = vmatpush.bf16.msra.mxu0 %v1935
        %1948 = vmatmul.bf16.gmra.mxu0 %v1911
        %v1949 = vpop.f32.mrf.mxu0
        %v1950 = vadd.f32 0.0, %v1949
        %v1951 = vpop.f32.mrf.mxu0
        %v1952 = vadd.f32 0.0, %v1951
        %1953 = vmatmul.bf16.gmra.mxu0 %v1914
        %v1954 = vpop.f32.mrf.mxu0
        %v1955 = vadd.f32 0.0, %v1954
        %v1956 = vpop.f32.mrf.mxu0
        %v1957 = vadd.f32 0.0, %v1956
        %1958 = vmatmul.bf16.gmra.mxu0 %v1917
        %v1959 = vpop.f32.mrf.mxu0
        %v1960 = vadd.f32 0.0, %v1959
        %v1961 = vpop.f32.mrf.mxu0
        %v1962 = vadd.f32 0.0, %v1961
        %1963 = vmatmul.bf16.gmra.mxu0 %v1920
        %v1964 = vpop.f32.mrf.mxu0
        %v1965 = vadd.f32 0.0, %v1964
        %v1966 = vpop.f32.mrf.mxu0
        %v1967 = vadd.f32 0.0, %v1966
        %1968 = vmatmul.bf16.gmra.mxu0 %v1923
        %v1969 = vpop.f32.mrf.mxu0
        %v1970 = vadd.f32 0.0, %v1969
        %v1971 = vpop.f32.mrf.mxu0
        %v1972 = vadd.f32 0.0, %v1971
        %1973 = vmatmul.bf16.gmra.mxu0 %v1926
        %v1974 = vpop.f32.mrf.mxu0
        %v1975 = vadd.f32 0.0, %v1974
        %v1976 = vpop.f32.mrf.mxu0
        %v1977 = vadd.f32 0.0, %v1976
        %1978 = vmatmul.bf16.gmra.mxu0 %v1929
        %v1979 = vpop.f32.mrf.mxu0
        %v1980 = vadd.f32 0.0, %v1979
        %v1981 = vpop.f32.mrf.mxu0
        %v1982 = vadd.f32 0.0, %v1981
        %1983 = vmatmul.bf16.gmra.mxu0 %v1932
        %v1984 = vpop.f32.mrf.mxu0
        %v1985 = vadd.f32 0.0, %v1984
        %v1986 = vpop.f32.mrf.mxu0
        %v1987 = vadd.f32 0.0, %v1986
        %1988 = vdwg.mxu0
        %1989 = vmatpush.bf16.msra.mxu0 0
        %1990 = vmatpush.bf16.msra.mxu0 0
        %1991 = vmatpush.bf16.msra.mxu0 0
        %1992 = vmatpush.bf16.msra.mxu0 0
        %1993 = vmatpush.bf16.msra.mxu0 0
        %1994 = vmatpush.bf16.msra.mxu0 0
        %1995 = vmatpush.bf16.msra.mxu0 0
        %1996 = vmatpush.bf16.msra.mxu0 %v1938
        %1997 = vmatmul.bf16.gmra.mxu0 %v1911
        %v1998 = vpop.f32.mrf.mxu0
        %v1999 = vadd.f32 0.0, %v1998
        %v2000 = vpop.f32.mrf.mxu0
        %v2001 = vadd.f32 0.0, %v2000
        %2002 = vmatmul.bf16.gmra.mxu0 %v1914
        %v2003 = vpop.f32.mrf.mxu0
        %v2004 = vadd.f32 0.0, %v2003
        %v2005 = vpop.f32.mrf.mxu0
        %v2006 = vadd.f32 0.0, %v2005
        %2007 = vmatmul.bf16.gmra.mxu0 %v1917
        %v2008 = vpop.f32.mrf.mxu0
        %v2009 = vadd.f32 0.0, %v2008
        %v2010 = vpop.f32.mrf.mxu0
        %v2011 = vadd.f32 0.0, %v2010
        %2012 = vmatmul.bf16.gmra.mxu0 %v1920
        %v2013 = vpop.f32.mrf.mxu0
        %v2014 = vadd.f32 0.0, %v2013
        %v2015 = vpop.f32.mrf.mxu0
        %v2016 = vadd.f32 0.0, %v2015
        %2017 = vmatmul.bf16.gmra.mxu0 %v1923
        %v2018 = vpop.f32.mrf.mxu0
        %v2019 = vadd.f32 0.0, %v2018
        %v2020 = vpop.f32.mrf.mxu0
        %v2021 = vadd.f32 0.0, %v2020
        %2022 = vmatmul.bf16.gmra.mxu0 %v1926
        %v2023 = vpop.f32.mrf.mxu0
        %v2024 = vadd.f32 0.0, %v2023
        %v2025 = vpop.f32.mrf.mxu0
        %v2026 = vadd.f32 0.0, %v2025
        %2027 = vmatmul.bf16.gmra.mxu0 %v1929
        %v2028 = vpop.f32.mrf.mxu0
        %v2029 = vadd.f32 0.0, %v2028
        %v2030 = vpop.f32.mrf.mxu0
        %v2031 = vadd.f32 0.0, %v2030
        %2032 = vmatmul.bf16.gmra.mxu0 %v1932
        %v2033 = vpop.f32.mrf.mxu0
        %v2034 = vadd.f32 0.0, %v2033
        %v2035 = vpop.f32.mrf.mxu0
        %v2036 = vadd.f32 0.0, %v2035
        %2037 = vdwg.mxu0
        %2038 = vxpose.xlu0.c.b16.start [1/8] %v644, 128
        %2039 = vxpose.xlu0.c.b16.cont [2/8] 0, 128
        %2040 = vxpose.xlu0.c.b16.cont [3/8] 0, 128
        %2041 = vxpose.xlu0.c.b16.cont [4/8] 0, 128
        %2042 = vxpose.xlu0.c.b16.cont [5/8] 0, 128
        %2043 = vxpose.xlu0.c.b16.cont [6/8] 0, 128
        %2044 = vxpose.xlu0.c.b16.cont [7/8] 0, 128
        %2045 = vxpose.xlu0.c.b16.end [8/8] 0, 128
        %v2046 = vpop.trf.xlu0
        %v2047 = vpop.trf.xlu0
        %v2048 = vpop.trf.xlu0
        %v2049 = vpop.trf.xlu0
        %v2050 = vpop.trf.xlu0
        %v2051 = vpop.trf.xlu0
        %v2052 = vpop.trf.xlu0
        %v2053 = vpop.trf.xlu0
        %v2055 = vunpack.c.l.b16 %v818
        %v2056 = vunpack.c.h.b16 %v818
        %v2057 = vpack.c.b16 %v2055, %v2055
        %v2058 = vpack.c.b16 %v2056, %v2056
        %v2060 = vsel %vm1014, %v2046, 0
        %v2063 = vsel %vm1014, %v2047, 0
        %v2066 = vsel %vm1014, %v2048, 0
        %v2069 = vsel %vm1014, %v2049, 0
        %v2072 = vsel %vm1014, %v2050, 0
        %v2075 = vsel %vm1014, %v2051, 0
        %v2078 = vsel %vm1014, %v2052, 0
        %v2081 = vsel %vm1014, %v2053, 0
        %v2084 = vsel %vm1039, %v2057, 0
        %v2087 = vsel %vm1039, %v2058, 0
        %2089 = vmatpush.bf16.msra.mxu0 0
        %2090 = vmatpush.bf16.msra.mxu0 0
        %2091 = vmatpush.bf16.msra.mxu0 0
        %2092 = vmatpush.bf16.msra.mxu0 0
        %2093 = vmatpush.bf16.msra.mxu0 0
        %2094 = vmatpush.bf16.msra.mxu0 0
        %2095 = vmatpush.bf16.msra.mxu0 0
        %2096 = vmatpush.bf16.msra.mxu0 %v2084
        %2097 = vmatmul.bf16.gmra.mxu0 %v2060
        %v2098 = vpop.f32.mrf.mxu0
        %v2099 = vadd.f32 0.0, %v2098
        %v2100 = vpop.f32.mrf.mxu0
        %v2101 = vadd.f32 0.0, %v2100
        %2102 = vmatmul.bf16.gmra.mxu0 %v2063
        %v2103 = vpop.f32.mrf.mxu0
        %v2104 = vadd.f32 0.0, %v2103
        %v2105 = vpop.f32.mrf.mxu0
        %v2106 = vadd.f32 0.0, %v2105
        %2107 = vmatmul.bf16.gmra.mxu0 %v2066
        %v2108 = vpop.f32.mrf.mxu0
        %v2109 = vadd.f32 0.0, %v2108
        %v2110 = vpop.f32.mrf.mxu0
        %v2111 = vadd.f32 0.0, %v2110
        %2112 = vmatmul.bf16.gmra.mxu0 %v2069
        %v2113 = vpop.f32.mrf.mxu0
        %v2114 = vadd.f32 0.0, %v2113
        %v2115 = vpop.f32.mrf.mxu0
        %v2116 = vadd.f32 0.0, %v2115
        %2117 = vmatmul.bf16.gmra.mxu0 %v2072
        %v2118 = vpop.f32.mrf.mxu0
        %v2119 = vadd.f32 0.0, %v2118
        %v2120 = vpop.f32.mrf.mxu0
        %v2121 = vadd.f32 0.0, %v2120
        %2122 = vmatmul.bf16.gmra.mxu0 %v2075
        %v2123 = vpop.f32.mrf.mxu0
        %v2124 = vadd.f32 0.0, %v2123
        %v2125 = vpop.f32.mrf.mxu0
        %v2126 = vadd.f32 0.0, %v2125
        %2127 = vmatmul.bf16.gmra.mxu0 %v2078
        %v2128 = vpop.f32.mrf.mxu0
        %v2129 = vadd.f32 0.0, %v2128
        %v2130 = vpop.f32.mrf.mxu0
        %v2131 = vadd.f32 0.0, %v2130
        %2132 = vmatmul.bf16.gmra.mxu0 %v2081
        %v2133 = vpop.f32.mrf.mxu0
        %v2134 = vadd.f32 0.0, %v2133
        %v2135 = vpop.f32.mrf.mxu0
        %v2136 = vadd.f32 0.0, %v2135
        %2137 = vdwg.mxu0
        %2138 = vmatpush.bf16.msra.mxu0 0
        %2139 = vmatpush.bf16.msra.mxu0 0
        %2140 = vmatpush.bf16.msra.mxu0 0
        %2141 = vmatpush.bf16.msra.mxu0 0
        %2142 = vmatpush.bf16.msra.mxu0 0
        %2143 = vmatpush.bf16.msra.mxu0 0
        %2144 = vmatpush.bf16.msra.mxu0 0
        %2145 = vmatpush.bf16.msra.mxu0 %v2087
        %2146 = vmatmul.bf16.gmra.mxu0 %v2060
        %v2147 = vpop.f32.mrf.mxu0
        %v2148 = vadd.f32 0.0, %v2147
        %v2149 = vpop.f32.mrf.mxu0
        %v2150 = vadd.f32 0.0, %v2149
        %2151 = vmatmul.bf16.gmra.mxu0 %v2063
        %v2152 = vpop.f32.mrf.mxu0
        %v2153 = vadd.f32 0.0, %v2152
        %v2154 = vpop.f32.mrf.mxu0
        %v2155 = vadd.f32 0.0, %v2154
        %2156 = vmatmul.bf16.gmra.mxu0 %v2066
        %v2157 = vpop.f32.mrf.mxu0
        %v2158 = vadd.f32 0.0, %v2157
        %v2159 = vpop.f32.mrf.mxu0
        %v2160 = vadd.f32 0.0, %v2159
        %2161 = vmatmul.bf16.gmra.mxu0 %v2069
        %v2162 = vpop.f32.mrf.mxu0
        %v2163 = vadd.f32 0.0, %v2162
        %v2164 = vpop.f32.mrf.mxu0
        %v2165 = vadd.f32 0.0, %v2164
        %2166 = vmatmul.bf16.gmra.mxu0 %v2072
        %v2167 = vpop.f32.mrf.mxu0
        %v2168 = vadd.f32 0.0, %v2167
        %v2169 = vpop.f32.mrf.mxu0
        %v2170 = vadd.f32 0.0, %v2169
        %2171 = vmatmul.bf16.gmra.mxu0 %v2075
        %v2172 = vpop.f32.mrf.mxu0
        %v2173 = vadd.f32 0.0, %v2172
        %v2174 = vpop.f32.mrf.mxu0
        %v2175 = vadd.f32 0.0, %v2174
        %2176 = vmatmul.bf16.gmra.mxu0 %v2078
        %v2177 = vpop.f32.mrf.mxu0
        %v2178 = vadd.f32 0.0, %v2177
        %v2179 = vpop.f32.mrf.mxu0
        %v2180 = vadd.f32 0.0, %v2179
        %2181 = vmatmul.bf16.gmra.mxu0 %v2081
        %v2182 = vpop.f32.mrf.mxu0
        %v2183 = vadd.f32 0.0, %v2182
        %v2184 = vpop.f32.mrf.mxu0
        %v2185 = vadd.f32 0.0, %v2184
        %2186 = vdwg.mxu0
        %v2187 = vmax.f32 %v1056, %v1105
        %2188 = vmax.xlane.f32.xlu0 %v2187
        %v2189 = vpop.xlane.xlu0 %2188
        %v2190 = vmax.f32 %v1058, %v1107
        %2191 = vmax.xlane.f32.xlu0 %v2190
        %v2192 = vpop.xlane.xlu0 %2191
        %v2193 = vmax.f32 %v1061, %v1110
        %2194 = vmax.xlane.f32.xlu0 %v2193
        %v2195 = vpop.xlane.xlu0 %2194
        %v2196 = vmax.f32 %v1063, %v1112
        %2197 = vmax.xlane.f32.xlu0 %v2196
        %v2198 = vpop.xlane.xlu0 %2197
        %v2199 = vmax.f32 %v1066, %v1115
        %2200 = vmax.xlane.f32.xlu0 %v2199
        %v2201 = vpop.xlane.xlu0 %2200
        %v2202 = vmax.f32 %v1068, %v1117
        %2203 = vmax.xlane.f32.xlu0 %v2202
        %v2204 = vpop.xlane.xlu0 %2203
        %v2205 = vmax.f32 %v1071, %v1120
        %2206 = vmax.xlane.f32.xlu0 %v2205
        %v2207 = vpop.xlane.xlu0 %2206
        %v2208 = vmax.f32 %v1073, %v1122
        %2209 = vmax.xlane.f32.xlu0 %v2208
        %v2210 = vpop.xlane.xlu0 %2209
        %v2211 = vmax.f32 %v1076, %v1125
        %2212 = vmax.xlane.f32.xlu0 %v2211
        %v2213 = vpop.xlane.xlu0 %2212
        %v2214 = vmax.f32 %v1078, %v1127
        %2215 = vmax.xlane.f32.xlu0 %v2214
        %v2216 = vpop.xlane.xlu0 %2215
        %v2217 = vmax.f32 %v1081, %v1130
        %2218 = vmax.xlane.f32.xlu0 %v2217
        %v2219 = vpop.xlane.xlu0 %2218
        %v2220 = vmax.f32 %v1083, %v1132
        %2221 = vmax.xlane.f32.xlu0 %v2220
        %v2222 = vpop.xlane.xlu0 %2221
        %v2223 = vmax.f32 %v1086, %v1135
        %2224 = vmax.xlane.f32.xlu0 %v2223
        %v2225 = vpop.xlane.xlu0 %2224
        %v2226 = vmax.f32 %v1088, %v1137
        %2227 = vmax.xlane.f32.xlu0 %v2226
        %v2228 = vpop.xlane.xlu0 %2227
        %v2229 = vmax.f32 %v1091, %v1140
        %2230 = vmax.xlane.f32.xlu0 %v2229
        %v2231 = vpop.xlane.xlu0 %2230
        %v2232 = vmax.f32 %v1093, %v1142
        %2233 = vmax.xlane.f32.xlu0 %v2232
        %v2234 = vpop.xlane.xlu0 %2233
        %v2235 = vmax.f32 %v1205, %v1254
        %2236 = vmax.xlane.f32.xlu0 %v2235
        %v2237 = vpop.xlane.xlu0 %2236
        %v2238 = vmax.f32 %v1207, %v1256
        %2239 = vmax.xlane.f32.xlu0 %v2238
        %v2240 = vpop.xlane.xlu0 %2239
        %v2241 = vmax.f32 %v1210, %v1259
        %2242 = vmax.xlane.f32.xlu0 %v2241
        %v2243 = vpop.xlane.xlu0 %2242
        %v2244 = vmax.f32 %v1212, %v1261
        %2245 = vmax.xlane.f32.xlu0 %v2244
        %v2246 = vpop.xlane.xlu0 %2245
        %v2247 = vmax.f32 %v1215, %v1264
        %2248 = vmax.xlane.f32.xlu0 %v2247
        %v2249 = vpop.xlane.xlu0 %2248
        %v2250 = vmax.f32 %v1217, %v1266
        %2251 = vmax.xlane.f32.xlu0 %v2250
        %v2252 = vpop.xlane.xlu0 %2251
        %v2253 = vmax.f32 %v1220, %v1269
        %2254 = vmax.xlane.f32.xlu0 %v2253
        %v2255 = vpop.xlane.xlu0 %2254
        %v2256 = vmax.f32 %v1222, %v1271
        %2257 = vmax.xlane.f32.xlu0 %v2256
        %v2258 = vpop.xlane.xlu0 %2257
        %v2259 = vmax.f32 %v1225, %v1274
        %2260 = vmax.xlane.f32.xlu0 %v2259
        %v2261 = vpop.xlane.xlu0 %2260
        %v2262 = vmax.f32 %v1227, %v1276
        %2263 = vmax.xlane.f32.xlu0 %v2262
        %v2264 = vpop.xlane.xlu0 %2263
        %v2265 = vmax.f32 %v1230, %v1279
        %2266 = vmax.xlane.f32.xlu0 %v2265
        %v2267 = vpop.xlane.xlu0 %2266
        %v2268 = vmax.f32 %v1232, %v1281
        %2269 = vmax.xlane.f32.xlu0 %v2268
        %v2270 = vpop.xlane.xlu0 %2269
        %v2271 = vmax.f32 %v1235, %v1284
        %2272 = vmax.xlane.f32.xlu0 %v2271
        %v2273 = vpop.xlane.xlu0 %2272
        %v2274 = vmax.f32 %v1237, %v1286
        %2275 = vmax.xlane.f32.xlu0 %v2274
        %v2276 = vpop.xlane.xlu0 %2275
        %v2277 = vmax.f32 %v1240, %v1289
        %2278 = vmax.xlane.f32.xlu0 %v2277
        %v2279 = vpop.xlane.xlu0 %2278
        %v2280 = vmax.f32 %v1242, %v1291
        %2281 = vmax.xlane.f32.xlu0 %v2280
        %v2282 = vpop.xlane.xlu0 %2281
        %v2283 = vmax.f32 %v1354, %v1403
        %2284 = vmax.xlane.f32.xlu0 %v2283
        %v2285 = vpop.xlane.xlu0 %2284
        %v2286 = vmax.f32 %v1356, %v1405
        %2287 = vmax.xlane.f32.xlu0 %v2286
        %v2288 = vpop.xlane.xlu0 %2287
        %v2289 = vmax.f32 %v1359, %v1408
        %2290 = vmax.xlane.f32.xlu0 %v2289
        %v2291 = vpop.xlane.xlu0 %2290
        %v2292 = vmax.f32 %v1361, %v1410
        %2293 = vmax.xlane.f32.xlu0 %v2292
        %v2294 = vpop.xlane.xlu0 %2293
        %v2295 = vmax.f32 %v1364, %v1413
        %2296 = vmax.xlane.f32.xlu0 %v2295
        %v2297 = vpop.xlane.xlu0 %2296
        %v2298 = vmax.f32 %v1366, %v1415
        %2299 = vmax.xlane.f32.xlu0 %v2298
        %v2300 = vpop.xlane.xlu0 %2299
        %v2301 = vmax.f32 %v1369, %v1418
        %2302 = vmax.xlane.f32.xlu0 %v2301
        %v2303 = vpop.xlane.xlu0 %2302
        %v2304 = vmax.f32 %v1371, %v1420
        %2305 = vmax.xlane.f32.xlu0 %v2304
        %v2306 = vpop.xlane.xlu0 %2305
        %v2307 = vmax.f32 %v1374, %v1423
        %2308 = vmax.xlane.f32.xlu0 %v2307
        %v2309 = vpop.xlane.xlu0 %2308
        %v2310 = vmax.f32 %v1376, %v1425
        %2311 = vmax.xlane.f32.xlu0 %v2310
        %v2312 = vpop.xlane.xlu0 %2311
        %v2313 = vmax.f32 %v1379, %v1428
        %2314 = vmax.xlane.f32.xlu0 %v2313
        %v2315 = vpop.xlane.xlu0 %2314
        %v2316 = vmax.f32 %v1381, %v1430
        %2317 = vmax.xlane.f32.xlu0 %v2316
        %v2318 = vpop.xlane.xlu0 %2317
        %v2319 = vmax.f32 %v1384, %v1433
        %2320 = vmax.xlane.f32.xlu0 %v2319
        %v2321 = vpop.xlane.xlu0 %2320
        %v2322 = vmax.f32 %v1386, %v1435
        %2323 = vmax.xlane.f32.xlu0 %v2322
        %v2324 = vpop.xlane.xlu0 %2323
        %v2325 = vmax.f32 %v1389, %v1438
        %2326 = vmax.xlane.f32.xlu0 %v2325
        %v2327 = vpop.xlane.xlu0 %2326
        %v2328 = vmax.f32 %v1391, %v1440
        %2329 = vmax.xlane.f32.xlu0 %v2328
        %v2330 = vpop.xlane.xlu0 %2329
        %v2331 = vmax.f32 %v1503, %v1552
        %2332 = vmax.xlane.f32.xlu0 %v2331
        %v2333 = vpop.xlane.xlu0 %2332
        %v2334 = vmax.f32 %v1505, %v1554
        %2335 = vmax.xlane.f32.xlu0 %v2334
        %v2336 = vpop.xlane.xlu0 %2335
        %v2337 = vmax.f32 %v1508, %v1557
        %2338 = vmax.xlane.f32.xlu0 %v2337
        %v2339 = vpop.xlane.xlu0 %2338
        %v2340 = vmax.f32 %v1510, %v1559
        %2341 = vmax.xlane.f32.xlu0 %v2340
        %v2342 = vpop.xlane.xlu0 %2341
        %v2343 = vmax.f32 %v1513, %v1562
        %2344 = vmax.xlane.f32.xlu0 %v2343
        %v2345 = vpop.xlane.xlu0 %2344
        %v2346 = vmax.f32 %v1515, %v1564
        %2347 = vmax.xlane.f32.xlu0 %v2346
        %v2348 = vpop.xlane.xlu0 %2347
        %v2349 = vmax.f32 %v1518, %v1567
        %2350 = vmax.xlane.f32.xlu0 %v2349
        %v2351 = vpop.xlane.xlu0 %2350
        %v2352 = vmax.f32 %v1520, %v1569
        %2353 = vmax.xlane.f32.xlu0 %v2352
        %v2354 = vpop.xlane.xlu0 %2353
        %v2355 = vmax.f32 %v1523, %v1572
        %2356 = vmax.xlane.f32.xlu0 %v2355
        %v2357 = vpop.xlane.xlu0 %2356
        %v2358 = vmax.f32 %v1525, %v1574
        %2359 = vmax.xlane.f32.xlu0 %v2358
        %v2360 = vpop.xlane.xlu0 %2359
        %v2361 = vmax.f32 %v1528, %v1577
        %2362 = vmax.xlane.f32.xlu0 %v2361
        %v2363 = vpop.xlane.xlu0 %2362
        %v2364 = vmax.f32 %v1530, %v1579
        %2365 = vmax.xlane.f32.xlu0 %v2364
        %v2366 = vpop.xlane.xlu0 %2365
        %v2367 = vmax.f32 %v1533, %v1582
        %2368 = vmax.xlane.f32.xlu0 %v2367
        %v2369 = vpop.xlane.xlu0 %2368
        %v2370 = vmax.f32 %v1535, %v1584
        %2371 = vmax.xlane.f32.xlu0 %v2370
        %v2372 = vpop.xlane.xlu0 %2371
        %v2373 = vmax.f32 %v1538, %v1587
        %2374 = vmax.xlane.f32.xlu0 %v2373
        %v2375 = vpop.xlane.xlu0 %2374
        %v2376 = vmax.f32 %v1540, %v1589
        %2377 = vmax.xlane.f32.xlu0 %v2376
        %v2378 = vpop.xlane.xlu0 %2377
        %v2379 = vmax.f32 %v1652, %v1701
        %2380 = vmax.xlane.f32.xlu0 %v2379
        %v2381 = vpop.xlane.xlu0 %2380
        %v2382 = vmax.f32 %v1654, %v1703
        %2383 = vmax.xlane.f32.xlu0 %v2382
        %v2384 = vpop.xlane.xlu0 %2383
        %v2385 = vmax.f32 %v1657, %v1706
        %2386 = vmax.xlane.f32.xlu0 %v2385
        %v2387 = vpop.xlane.xlu0 %2386
        %v2388 = vmax.f32 %v1659, %v1708
        %2389 = vmax.xlane.f32.xlu0 %v2388
        %v2390 = vpop.xlane.xlu0 %2389
        %v2391 = vmax.f32 %v1662, %v1711
        %2392 = vmax.xlane.f32.xlu0 %v2391
        %v2393 = vpop.xlane.xlu0 %2392
        %v2394 = vmax.f32 %v1664, %v1713
        %2395 = vmax.xlane.f32.xlu0 %v2394
        %v2396 = vpop.xlane.xlu0 %2395
        %v2397 = vmax.f32 %v1667, %v1716
        %2398 = vmax.xlane.f32.xlu0 %v2397
        %v2399 = vpop.xlane.xlu0 %2398
        %v2400 = vmax.f32 %v1669, %v1718
        %2401 = vmax.xlane.f32.xlu0 %v2400
        %v2402 = vpop.xlane.xlu0 %2401
        %v2403 = vmax.f32 %v1672, %v1721
        %2404 = vmax.xlane.f32.xlu0 %v2403
        %v2405 = vpop.xlane.xlu0 %2404
        %v2406 = vmax.f32 %v1674, %v1723
        %2407 = vmax.xlane.f32.xlu0 %v2406
        %v2408 = vpop.xlane.xlu0 %2407
        %v2409 = vmax.f32 %v1677, %v1726
        %2410 = vmax.xlane.f32.xlu0 %v2409
        %v2411 = vpop.xlane.xlu0 %2410
        %v2412 = vmax.f32 %v1679, %v1728
        %2413 = vmax.xlane.f32.xlu0 %v2412
        %v2414 = vpop.xlane.xlu0 %2413
        %v2415 = vmax.f32 %v1682, %v1731
        %2416 = vmax.xlane.f32.xlu0 %v2415
        %v2417 = vpop.xlane.xlu0 %2416
        %v2418 = vmax.f32 %v1684, %v1733
        %2419 = vmax.xlane.f32.xlu0 %v2418
        %v2420 = vpop.xlane.xlu0 %2419
        %v2421 = vmax.f32 %v1687, %v1736
        %2422 = vmax.xlane.f32.xlu0 %v2421
        %v2423 = vpop.xlane.xlu0 %2422
        %v2424 = vmax.f32 %v1689, %v1738
        %2425 = vmax.xlane.f32.xlu0 %v2424
        %v2426 = vpop.xlane.xlu0 %2425
        %v2427 = vmax.f32 %v1801, %v1850
        %2428 = vmax.xlane.f32.xlu0 %v2427
        %v2429 = vpop.xlane.xlu0 %2428
        %v2430 = vmax.f32 %v1803, %v1852
        %2431 = vmax.xlane.f32.xlu0 %v2430
        %v2432 = vpop.xlane.xlu0 %2431
        %v2433 = vmax.f32 %v1806, %v1855
        %2434 = vmax.xlane.f32.xlu0 %v2433
        %v2435 = vpop.xlane.xlu0 %2434
        %v2436 = vmax.f32 %v1808, %v1857
        %2437 = vmax.xlane.f32.xlu0 %v2436
        %v2438 = vpop.xlane.xlu0 %2437
        %v2439 = vmax.f32 %v1811, %v1860
        %2440 = vmax.xlane.f32.xlu0 %v2439
        %v2441 = vpop.xlane.xlu0 %2440
        %v2442 = vmax.f32 %v1813, %v1862
        %2443 = vmax.xlane.f32.xlu0 %v2442
        %v2444 = vpop.xlane.xlu0 %2443
        %v2445 = vmax.f32 %v1816, %v1865
        %2446 = vmax.xlane.f32.xlu0 %v2445
        %v2447 = vpop.xlane.xlu0 %2446
        %v2448 = vmax.f32 %v1818, %v1867
        %2449 = vmax.xlane.f32.xlu0 %v2448
        %v2450 = vpop.xlane.xlu0 %2449
        %v2451 = vmax.f32 %v1821, %v1870
        %2452 = vmax.xlane.f32.xlu0 %v2451
        %v2453 = vpop.xlane.xlu0 %2452
        %v2454 = vmax.f32 %v1823, %v1872
        %2455 = vmax.xlane.f32.xlu0 %v2454
        %v2456 = vpop.xlane.xlu0 %2455
        %v2457 = vmax.f32 %v1826, %v1875
        %2458 = vmax.xlane.f32.xlu0 %v2457
        %v2459 = vpop.xlane.xlu0 %2458
        %v2460 = vmax.f32 %v1828, %v1877
        %2461 = vmax.xlane.f32.xlu0 %v2460
        %v2462 = vpop.xlane.xlu0 %2461
        %v2463 = vmax.f32 %v1831, %v1880
        %2464 = vmax.xlane.f32.xlu0 %v2463
        %v2465 = vpop.xlane.xlu0 %2464
        %v2466 = vmax.f32 %v1833, %v1882
        %2467 = vmax.xlane.f32.xlu0 %v2466
        %v2468 = vpop.xlane.xlu0 %2467
        %v2469 = vmax.f32 %v1836, %v1885
        %2470 = vmax.xlane.f32.xlu0 %v2469
        %v2471 = vpop.xlane.xlu0 %2470
        %v2472 = vmax.f32 %v1838, %v1887
        %2473 = vmax.xlane.f32.xlu0 %v2472
        %v2474 = vpop.xlane.xlu0 %2473
        %v2475 = vmax.f32 %v1950, %v1999
        %2476 = vmax.xlane.f32.xlu0 %v2475
        %v2477 = vpop.xlane.xlu0 %2476
        %v2478 = vmax.f32 %v1952, %v2001
        %2479 = vmax.xlane.f32.xlu0 %v2478
        %v2480 = vpop.xlane.xlu0 %2479
        %v2481 = vmax.f32 %v1955, %v2004
        %2482 = vmax.xlane.f32.xlu0 %v2481
        %v2483 = vpop.xlane.xlu0 %2482
        %v2484 = vmax.f32 %v1957, %v2006
        %2485 = vmax.xlane.f32.xlu0 %v2484
        %v2486 = vpop.xlane.xlu0 %2485
        %v2487 = vmax.f32 %v1960, %v2009
        %2488 = vmax.xlane.f32.xlu0 %v2487
        %v2489 = vpop.xlane.xlu0 %2488
        %v2490 = vmax.f32 %v1962, %v2011
        %2491 = vmax.xlane.f32.xlu0 %v2490
        %v2492 = vpop.xlane.xlu0 %2491
        %v2493 = vmax.f32 %v1965, %v2014
        %2494 = vmax.xlane.f32.xlu0 %v2493
        %v2495 = vpop.xlane.xlu0 %2494
        %v2496 = vmax.f32 %v1967, %v2016
        %2497 = vmax.xlane.f32.xlu0 %v2496
        %v2498 = vpop.xlane.xlu0 %2497
        %v2499 = vmax.f32 %v1970, %v2019
        %2500 = vmax.xlane.f32.xlu0 %v2499
        %v2501 = vpop.xlane.xlu0 %2500
        %v2502 = vmax.f32 %v1972, %v2021
        %2503 = vmax.xlane.f32.xlu0 %v2502
        %v2504 = vpop.xlane.xlu0 %2503
        %v2505 = vmax.f32 %v1975, %v2024
        %2506 = vmax.xlane.f32.xlu0 %v2505
        %v2507 = vpop.xlane.xlu0 %2506
        %v2508 = vmax.f32 %v1977, %v2026
        %2509 = vmax.xlane.f32.xlu0 %v2508
        %v2510 = vpop.xlane.xlu0 %2509
        %v2511 = vmax.f32 %v1980, %v2029
        %2512 = vmax.xlane.f32.xlu0 %v2511
        %v2513 = vpop.xlane.xlu0 %2512
        %v2514 = vmax.f32 %v1982, %v2031
        %2515 = vmax.xlane.f32.xlu0 %v2514
        %v2516 = vpop.xlane.xlu0 %2515
        %v2517 = vmax.f32 %v1985, %v2034
        %2518 = vmax.xlane.f32.xlu0 %v2517
        %v2519 = vpop.xlane.xlu0 %2518
        %v2520 = vmax.f32 %v1987, %v2036
        %2521 = vmax.xlane.f32.xlu0 %v2520
        %v2522 = vpop.xlane.xlu0 %2521
        %v2523 = vmax.f32 %v2099, %v2148
        %2524 = vmax.xlane.f32.xlu0 %v2523
        %v2525 = vpop.xlane.xlu0 %2524
        %v2526 = vmax.f32 %v2101, %v2150
        %2527 = vmax.xlane.f32.xlu0 %v2526
        %v2528 = vpop.xlane.xlu0 %2527
        %v2529 = vmax.f32 %v2104, %v2153
        %2530 = vmax.xlane.f32.xlu0 %v2529
        %v2531 = vpop.xlane.xlu0 %2530
        %v2532 = vmax.f32 %v2106, %v2155
        %2533 = vmax.xlane.f32.xlu0 %v2532
        %v2534 = vpop.xlane.xlu0 %2533
        %v2535 = vmax.f32 %v2109, %v2158
        %2536 = vmax.xlane.f32.xlu0 %v2535
        %v2537 = vpop.xlane.xlu0 %2536
        %v2538 = vmax.f32 %v2111, %v2160
        %2539 = vmax.xlane.f32.xlu0 %v2538
        %v2540 = vpop.xlane.xlu0 %2539
        %v2541 = vmax.f32 %v2114, %v2163
        %2542 = vmax.xlane.f32.xlu0 %v2541
        %v2543 = vpop.xlane.xlu0 %2542
        %v2544 = vmax.f32 %v2116, %v2165
        %2545 = vmax.xlane.f32.xlu0 %v2544
        %v2546 = vpop.xlane.xlu0 %2545
        %v2547 = vmax.f32 %v2119, %v2168
        %2548 = vmax.xlane.f32.xlu0 %v2547
        %v2549 = vpop.xlane.xlu0 %2548
        %v2550 = vmax.f32 %v2121, %v2170
        %2551 = vmax.xlane.f32.xlu0 %v2550
        %v2552 = vpop.xlane.xlu0 %2551
        %v2553 = vmax.f32 %v2124, %v2173
        %2554 = vmax.xlane.f32.xlu0 %v2553
        %v2555 = vpop.xlane.xlu0 %2554
        %v2556 = vmax.f32 %v2126, %v2175
        %2557 = vmax.xlane.f32.xlu0 %v2556
        %v2558 = vpop.xlane.xlu0 %2557
        %v2559 = vmax.f32 %v2129, %v2178
        %2560 = vmax.xlane.f32.xlu0 %v2559
        %v2561 = vpop.xlane.xlu0 %2560
        %v2562 = vmax.f32 %v2131, %v2180
        %2563 = vmax.xlane.f32.xlu0 %v2562
        %v2564 = vpop.xlane.xlu0 %2563
        %v2565 = vmax.f32 %v2134, %v2183
        %2566 = vmax.xlane.f32.xlu0 %v2565
        %v2567 = vpop.xlane.xlu0 %2566
        %v2568 = vmax.f32 %v2136, %v2185
        %2569 = vmax.xlane.f32.xlu0 %v2568
        %v2570 = vpop.xlane.xlu0 %2569
        %v2571 = vsub.f32 %v1056, %v2189
        %v2572 = vsub.f32 %v1105, %v2189
        %v2573 = vsub.f32 %v1058, %v2192
        %v2574 = vsub.f32 %v1107, %v2192
        %v2575 = vsub.f32 %v1061, %v2195
        %v2576 = vsub.f32 %v1110, %v2195
        %v2577 = vsub.f32 %v1063, %v2198
        %v2578 = vsub.f32 %v1112, %v2198
        %v2579 = vsub.f32 %v1066, %v2201
        %v2580 = vsub.f32 %v1115, %v2201
        %v2581 = vsub.f32 %v1068, %v2204
        %v2582 = vsub.f32 %v1117, %v2204
        %v2583 = vsub.f32 %v1071, %v2207
        %v2584 = vsub.f32 %v1120, %v2207
        %v2585 = vsub.f32 %v1073, %v2210
        %v2586 = vsub.f32 %v1122, %v2210
        %v2587 = vsub.f32 %v1076, %v2213
        %v2588 = vsub.f32 %v1125, %v2213
        %v2589 = vsub.f32 %v1078, %v2216
        %v2590 = vsub.f32 %v1127, %v2216
        %v2591 = vsub.f32 %v1081, %v2219
        %v2592 = vsub.f32 %v1130, %v2219
        %v2593 = vsub.f32 %v1083, %v2222
        %v2594 = vsub.f32 %v1132, %v2222
        %v2595 = vsub.f32 %v1086, %v2225
        %v2596 = vsub.f32 %v1135, %v2225
        %v2597 = vsub.f32 %v1088, %v2228
        %v2598 = vsub.f32 %v1137, %v2228
        %v2599 = vsub.f32 %v1091, %v2231
        %v2600 = vsub.f32 %v1140, %v2231
        %v2601 = vsub.f32 %v1093, %v2234
        %v2602 = vsub.f32 %v1142, %v2234
        %v2603 = vsub.f32 %v1205, %v2237
        %v2604 = vsub.f32 %v1254, %v2237
        %v2605 = vsub.f32 %v1207, %v2240
        %v2606 = vsub.f32 %v1256, %v2240
        %v2607 = vsub.f32 %v1210, %v2243
        %v2608 = vsub.f32 %v1259, %v2243
        %v2609 = vsub.f32 %v1212, %v2246
        %v2610 = vsub.f32 %v1261, %v2246
        %v2611 = vsub.f32 %v1215, %v2249
        %v2612 = vsub.f32 %v1264, %v2249
        %v2613 = vsub.f32 %v1217, %v2252
        %v2614 = vsub.f32 %v1266, %v2252
        %v2615 = vsub.f32 %v1220, %v2255
        %v2616 = vsub.f32 %v1269, %v2255
        %v2617 = vsub.f32 %v1222, %v2258
        %v2618 = vsub.f32 %v1271, %v2258
        %v2619 = vsub.f32 %v1225, %v2261
        %v2620 = vsub.f32 %v1274, %v2261
        %v2621 = vsub.f32 %v1227, %v2264
        %v2622 = vsub.f32 %v1276, %v2264
        %v2623 = vsub.f32 %v1230, %v2267
        %v2624 = vsub.f32 %v1279, %v2267
        %v2625 = vsub.f32 %v1232, %v2270
        %v2626 = vsub.f32 %v1281, %v2270
        %v2627 = vsub.f32 %v1235, %v2273
        %v2628 = vsub.f32 %v1284, %v2273
        %v2629 = vsub.f32 %v1237, %v2276
        %v2630 = vsub.f32 %v1286, %v2276
        %v2631 = vsub.f32 %v1240, %v2279
        %v2632 = vsub.f32 %v1289, %v2279
        %v2633 = vsub.f32 %v1242, %v2282
        %v2634 = vsub.f32 %v1291, %v2282
        %v2635 = vsub.f32 %v1354, %v2285
        %v2636 = vsub.f32 %v1403, %v2285
        %v2637 = vsub.f32 %v1356, %v2288
        %v2638 = vsub.f32 %v1405, %v2288
        %v2639 = vsub.f32 %v1359, %v2291
        %v2640 = vsub.f32 %v1408, %v2291
        %v2641 = vsub.f32 %v1361, %v2294
        %v2642 = vsub.f32 %v1410, %v2294
        %v2643 = vsub.f32 %v1364, %v2297
        %v2644 = vsub.f32 %v1413, %v2297
        %v2645 = vsub.f32 %v1366, %v2300
        %v2646 = vsub.f32 %v1415, %v2300
        %v2647 = vsub.f32 %v1369, %v2303
        %v2648 = vsub.f32 %v1418, %v2303
        %v2649 = vsub.f32 %v1371, %v2306
        %v2650 = vsub.f32 %v1420, %v2306
        %v2651 = vsub.f32 %v1374, %v2309
        %v2652 = vsub.f32 %v1423, %v2309
        %v2653 = vsub.f32 %v1376, %v2312
        %v2654 = vsub.f32 %v1425, %v2312
        %v2655 = vsub.f32 %v1379, %v2315
        %v2656 = vsub.f32 %v1428, %v2315
        %v2657 = vsub.f32 %v1381, %v2318
        %v2658 = vsub.f32 %v1430, %v2318
        %v2659 = vsub.f32 %v1384, %v2321
        %v2660 = vsub.f32 %v1433, %v2321
        %v2661 = vsub.f32 %v1386, %v2324
        %v2662 = vsub.f32 %v1435, %v2324
        %v2663 = vsub.f32 %v1389, %v2327
        %v2664 = vsub.f32 %v1438, %v2327
        %v2665 = vsub.f32 %v1391, %v2330
        %v2666 = vsub.f32 %v1440, %v2330
        %v2667 = vsub.f32 %v1503, %v2333
        %v2668 = vsub.f32 %v1552, %v2333
        %v2669 = vsub.f32 %v1505, %v2336
        %v2670 = vsub.f32 %v1554, %v2336
        %v2671 = vsub.f32 %v1508, %v2339
        %v2672 = vsub.f32 %v1557, %v2339
        %v2673 = vsub.f32 %v1510, %v2342
        %v2674 = vsub.f32 %v1559, %v2342
        %v2675 = vsub.f32 %v1513, %v2345
        %v2676 = vsub.f32 %v1562, %v2345
        %v2677 = vsub.f32 %v1515, %v2348
        %v2678 = vsub.f32 %v1564, %v2348
        %v2679 = vsub.f32 %v1518, %v2351
        %v2680 = vsub.f32 %v1567, %v2351
        %v2681 = vsub.f32 %v1520, %v2354
        %v2682 = vsub.f32 %v1569, %v2354
        %v2683 = vsub.f32 %v1523, %v2357
        %v2684 = vsub.f32 %v1572, %v2357
        %v2685 = vsub.f32 %v1525, %v2360
        %v2686 = vsub.f32 %v1574, %v2360
        %v2687 = vsub.f32 %v1528, %v2363
        %v2688 = vsub.f32 %v1577, %v2363
        %v2689 = vsub.f32 %v1530, %v2366
        %v2690 = vsub.f32 %v1579, %v2366
        %v2691 = vsub.f32 %v1533, %v2369
        %v2692 = vsub.f32 %v1582, %v2369
        %v2693 = vsub.f32 %v1535, %v2372
        %v2694 = vsub.f32 %v1584, %v2372
        %v2695 = vsub.f32 %v1538, %v2375
        %v2696 = vsub.f32 %v1587, %v2375
        %v2697 = vsub.f32 %v1540, %v2378
        %v2698 = vsub.f32 %v1589, %v2378
        %v2699 = vsub.f32 %v1652, %v2381
        %v2700 = vsub.f32 %v1701, %v2381
        %v2701 = vsub.f32 %v1654, %v2384
        %v2702 = vsub.f32 %v1703, %v2384
        %v2703 = vsub.f32 %v1657, %v2387
        %v2704 = vsub.f32 %v1706, %v2387
        %v2705 = vsub.f32 %v1659, %v2390
        %v2706 = vsub.f32 %v1708, %v2390
        %v2707 = vsub.f32 %v1662, %v2393
        %v2708 = vsub.f32 %v1711, %v2393
        %v2709 = vsub.f32 %v1664, %v2396
        %v2710 = vsub.f32 %v1713, %v2396
        %v2711 = vsub.f32 %v1667, %v2399
        %v2712 = vsub.f32 %v1716, %v2399
        %v2713 = vsub.f32 %v1669, %v2402
        %v2714 = vsub.f32 %v1718, %v2402
        %v2715 = vsub.f32 %v1672, %v2405
        %v2716 = vsub.f32 %v1721, %v2405
        %v2717 = vsub.f32 %v1674, %v2408
        %v2718 = vsub.f32 %v1723, %v2408
        %v2719 = vsub.f32 %v1677, %v2411
        %v2720 = vsub.f32 %v1726, %v2411
        %v2721 = vsub.f32 %v1679, %v2414
        %v2722 = vsub.f32 %v1728, %v2414
        %v2723 = vsub.f32 %v1682, %v2417
        %v2724 = vsub.f32 %v1731, %v2417
        %v2725 = vsub.f32 %v1684, %v2420
        %v2726 = vsub.f32 %v1733, %v2420
        %v2727 = vsub.f32 %v1687, %v2423
        %v2728 = vsub.f32 %v1736, %v2423
        %v2729 = vsub.f32 %v1689, %v2426
        %v2730 = vsub.f32 %v1738, %v2426
        %v2731 = vsub.f32 %v1801, %v2429
        %v2732 = vsub.f32 %v1850, %v2429
        %v2733 = vsub.f32 %v1803, %v2432
        %v2734 = vsub.f32 %v1852, %v2432
        %v2735 = vsub.f32 %v1806, %v2435
        %v2736 = vsub.f32 %v1855, %v2435
        %v2737 = vsub.f32 %v1808, %v2438
        %v2738 = vsub.f32 %v1857, %v2438
        %v2739 = vsub.f32 %v1811, %v2441
        %v2740 = vsub.f32 %v1860, %v2441
        %v2741 = vsub.f32 %v1813, %v2444
        %v2742 = vsub.f32 %v1862, %v2444
        %v2743 = vsub.f32 %v1816, %v2447
        %v2744 = vsub.f32 %v1865, %v2447
        %v2745 = vsub.f32 %v1818, %v2450
        %v2746 = vsub.f32 %v1867, %v2450
        %v2747 = vsub.f32 %v1821, %v2453
        %v2748 = vsub.f32 %v1870, %v2453
        %v2749 = vsub.f32 %v1823, %v2456
        %v2750 = vsub.f32 %v1872, %v2456
        %v2751 = vsub.f32 %v1826, %v2459
        %v2752 = vsub.f32 %v1875, %v2459
        %v2753 = vsub.f32 %v1828, %v2462
        %v2754 = vsub.f32 %v1877, %v2462
        %v2755 = vsub.f32 %v1831, %v2465
        %v2756 = vsub.f32 %v1880, %v2465
        %v2757 = vsub.f32 %v1833, %v2468
        %v2758 = vsub.f32 %v1882, %v2468
        %v2759 = vsub.f32 %v1836, %v2471
        %v2760 = vsub.f32 %v1885, %v2471
        %v2761 = vsub.f32 %v1838, %v2474
        %v2762 = vsub.f32 %v1887, %v2474
        %v2763 = vsub.f32 %v1950, %v2477
        %v2764 = vsub.f32 %v1999, %v2477
        %v2765 = vsub.f32 %v1952, %v2480
        %v2766 = vsub.f32 %v2001, %v2480
        %v2767 = vsub.f32 %v1955, %v2483
        %v2768 = vsub.f32 %v2004, %v2483
        %v2769 = vsub.f32 %v1957, %v2486
        %v2770 = vsub.f32 %v2006, %v2486
        %v2771 = vsub.f32 %v1960, %v2489
        %v2772 = vsub.f32 %v2009, %v2489
        %v2773 = vsub.f32 %v1962, %v2492
        %v2774 = vsub.f32 %v2011, %v2492
        %v2775 = vsub.f32 %v1965, %v2495
        %v2776 = vsub.f32 %v2014, %v2495
        %v2777 = vsub.f32 %v1967, %v2498
        %v2778 = vsub.f32 %v2016, %v2498
        %v2779 = vsub.f32 %v1970, %v2501
        %v2780 = vsub.f32 %v2019, %v2501
        %v2781 = vsub.f32 %v1972, %v2504
        %v2782 = vsub.f32 %v2021, %v2504
        %v2783 = vsub.f32 %v1975, %v2507
        %v2784 = vsub.f32 %v2024, %v2507
        %v2785 = vsub.f32 %v1977, %v2510
        %v2786 = vsub.f32 %v2026, %v2510
        %v2787 = vsub.f32 %v1980, %v2513
        %v2788 = vsub.f32 %v2029, %v2513
        %v2789 = vsub.f32 %v1982, %v2516
        %v2790 = vsub.f32 %v2031, %v2516
        %v2791 = vsub.f32 %v1985, %v2519
        %v2792 = vsub.f32 %v2034, %v2519
        %v2793 = vsub.f32 %v1987, %v2522
        %v2794 = vsub.f32 %v2036, %v2522
        %v2795 = vsub.f32 %v2099, %v2525
        %v2796 = vsub.f32 %v2148, %v2525
        %v2797 = vsub.f32 %v2101, %v2528
        %v2798 = vsub.f32 %v2150, %v2528
        %v2799 = vsub.f32 %v2104, %v2531
        %v2800 = vsub.f32 %v2153, %v2531
        %v2801 = vsub.f32 %v2106, %v2534
        %v2802 = vsub.f32 %v2155, %v2534
        %v2803 = vsub.f32 %v2109, %v2537
        %v2804 = vsub.f32 %v2158, %v2537
        %v2805 = vsub.f32 %v2111, %v2540
        %v2806 = vsub.f32 %v2160, %v2540
        %v2807 = vsub.f32 %v2114, %v2543
        %v2808 = vsub.f32 %v2163, %v2543
        %v2809 = vsub.f32 %v2116, %v2546
        %v2810 = vsub.f32 %v2165, %v2546
        %v2811 = vsub.f32 %v2119, %v2549
        %v2812 = vsub.f32 %v2168, %v2549
        %v2813 = vsub.f32 %v2121, %v2552
        %v2814 = vsub.f32 %v2170, %v2552
        %v2815 = vsub.f32 %v2124, %v2555
        %v2816 = vsub.f32 %v2173, %v2555
        %v2817 = vsub.f32 %v2126, %v2558
        %v2818 = vsub.f32 %v2175, %v2558
        %v2819 = vsub.f32 %v2129, %v2561
        %v2820 = vsub.f32 %v2178, %v2561
        %v2821 = vsub.f32 %v2131, %v2564
        %v2822 = vsub.f32 %v2180, %v2564
        %v2823 = vsub.f32 %v2134, %v2567
        %v2824 = vsub.f32 %v2183, %v2567
        %v2825 = vsub.f32 %v2136, %v2570
        %v2826 = vsub.f32 %v2185, %v2570
        %v2827 = vmul.f32 %v2571, 1.442695
        %v2828 = vpow.pop %v2827
        %v2829 = vmul.f32 %v2572, 1.442695
        %v2830 = vpow.pop %v2829
        %v2831 = vmul.f32 %v2573, 1.442695
        %v2832 = vpow.pop %v2831
        %v2833 = vmul.f32 %v2574, 1.442695
        %v2834 = vpow.pop %v2833
        %v2835 = vmul.f32 %v2575, 1.442695
        %v2836 = vpow.pop %v2835
        %v2837 = vmul.f32 %v2576, 1.442695
        %v2838 = vpow.pop %v2837
        %v2839 = vmul.f32 %v2577, 1.442695
        %v2840 = vpow.pop %v2839
        %v2841 = vmul.f32 %v2578, 1.442695
        %v2842 = vpow.pop %v2841
        %v2843 = vmul.f32 %v2579, 1.442695
        %v2844 = vpow.pop %v2843
        %v2845 = vmul.f32 %v2580, 1.442695
        %v2846 = vpow.pop %v2845
        %v2847 = vmul.f32 %v2581, 1.442695
        %v2848 = vpow.pop %v2847
        %v2849 = vmul.f32 %v2582, 1.442695
        %v2850 = vpow.pop %v2849
        %v2851 = vmul.f32 %v2583, 1.442695
        %v2852 = vpow.pop %v2851
        %v2853 = vmul.f32 %v2584, 1.442695
        %v2854 = vpow.pop %v2853
        %v2855 = vmul.f32 %v2585, 1.442695
        %v2856 = vpow.pop %v2855
        %v2857 = vmul.f32 %v2586, 1.442695
        %v2858 = vpow.pop %v2857
        %v2859 = vmul.f32 %v2587, 1.442695
        %v2860 = vpow.pop %v2859
        %v2861 = vmul.f32 %v2588, 1.442695
        %v2862 = vpow.pop %v2861
        %v2863 = vmul.f32 %v2589, 1.442695
        %v2864 = vpow.pop %v2863
        %v2865 = vmul.f32 %v2590, 1.442695
        %v2866 = vpow.pop %v2865
        %v2867 = vmul.f32 %v2591, 1.442695
        %v2868 = vpow.pop %v2867
        %v2869 = vmul.f32 %v2592, 1.442695
        %v2870 = vpow.pop %v2869
        %v2871 = vmul.f32 %v2593, 1.442695
        %v2872 = vpow.pop %v2871
        %v2873 = vmul.f32 %v2594, 1.442695
        %v2874 = vpow.pop %v2873
        %v2875 = vmul.f32 %v2595, 1.442695
        %v2876 = vpow.pop %v2875
        %v2877 = vmul.f32 %v2596, 1.442695
        %v2878 = vpow.pop %v2877
        %v2879 = vmul.f32 %v2597, 1.442695
        %v2880 = vpow.pop %v2879
        %v2881 = vmul.f32 %v2598, 1.442695
        %v2882 = vpow.pop %v2881
        %v2883 = vmul.f32 %v2599, 1.442695
        %v2884 = vpow.pop %v2883
        %v2885 = vmul.f32 %v2600, 1.442695
        %v2886 = vpow.pop %v2885
        %v2887 = vmul.f32 %v2601, 1.442695
        %v2888 = vpow.pop %v2887
        %v2889 = vmul.f32 %v2602, 1.442695
        %v2890 = vpow.pop %v2889
        %v2891 = vmul.f32 %v2603, 1.442695
        %v2892 = vpow.pop %v2891
        %v2893 = vmul.f32 %v2604, 1.442695
        %v2894 = vpow.pop %v2893
        %v2895 = vmul.f32 %v2605, 1.442695
        %v2896 = vpow.pop %v2895
        %v2897 = vmul.f32 %v2606, 1.442695
        %v2898 = vpow.pop %v2897
        %v2899 = vmul.f32 %v2607, 1.442695
        %v2900 = vpow.pop %v2899
        %v2901 = vmul.f32 %v2608, 1.442695
        %v2902 = vpow.pop %v2901
        %v2903 = vmul.f32 %v2609, 1.442695
        %v2904 = vpow.pop %v2903
        %v2905 = vmul.f32 %v2610, 1.442695
        %v2906 = vpow.pop %v2905
        %v2907 = vmul.f32 %v2611, 1.442695
        %v2908 = vpow.pop %v2907
        %v2909 = vmul.f32 %v2612, 1.442695
        %v2910 = vpow.pop %v2909
        %v2911 = vmul.f32 %v2613, 1.442695
        %v2912 = vpow.pop %v2911
        %v2913 = vmul.f32 %v2614, 1.442695
        %v2914 = vpow.pop %v2913
        %v2915 = vmul.f32 %v2615, 1.442695
        %v2916 = vpow.pop %v2915
        %v2917 = vmul.f32 %v2616, 1.442695
        %v2918 = vpow.pop %v2917
        %v2919 = vmul.f32 %v2617, 1.442695
        %v2920 = vpow.pop %v2919
        %v2921 = vmul.f32 %v2618, 1.442695
        %v2922 = vpow.pop %v2921
        %v2923 = vmul.f32 %v2619, 1.442695
        %v2924 = vpow.pop %v2923
        %v2925 = vmul.f32 %v2620, 1.442695
        %v2926 = vpow.pop %v2925
        %v2927 = vmul.f32 %v2621, 1.442695
        %v2928 = vpow.pop %v2927
        %v2929 = vmul.f32 %v2622, 1.442695
        %v2930 = vpow.pop %v2929
        %v2931 = vmul.f32 %v2623, 1.442695
        %v2932 = vpow.pop %v2931
        %v2933 = vmul.f32 %v2624, 1.442695
        %v2934 = vpow.pop %v2933
        %v2935 = vmul.f32 %v2625, 1.442695
        %v2936 = vpow.pop %v2935
        %v2937 = vmul.f32 %v2626, 1.442695
        %v2938 = vpow.pop %v2937
        %v2939 = vmul.f32 %v2627, 1.442695
        %v2940 = vpow.pop %v2939
        %v2941 = vmul.f32 %v2628, 1.442695
        %v2942 = vpow.pop %v2941
        %v2943 = vmul.f32 %v2629, 1.442695
        %v2944 = vpow.pop %v2943
        %v2945 = vmul.f32 %v2630, 1.442695
        %v2946 = vpow.pop %v2945
        %v2947 = vmul.f32 %v2631, 1.442695
        %v2948 = vpow.pop %v2947
        %v2949 = vmul.f32 %v2632, 1.442695
        %v2950 = vpow.pop %v2949
        %v2951 = vmul.f32 %v2633, 1.442695
        %v2952 = vpow.pop %v2951
        %v2953 = vmul.f32 %v2634, 1.442695
        %v2954 = vpow.pop %v2953
        %v2955 = vmul.f32 %v2635, 1.442695
        %v2956 = vpow.pop %v2955
        %v2957 = vmul.f32 %v2636, 1.442695
        %v2958 = vpow.pop %v2957
        %v2959 = vmul.f32 %v2637, 1.442695
        %v2960 = vpow.pop %v2959
        %v2961 = vmul.f32 %v2638, 1.442695
        %v2962 = vpow.pop %v2961
        %v2963 = vmul.f32 %v2639, 1.442695
        %v2964 = vpow.pop %v2963
        %v2965 = vmul.f32 %v2640, 1.442695
        %v2966 = vpow.pop %v2965
        %v2967 = vmul.f32 %v2641, 1.442695
        %v2968 = vpow.pop %v2967
        %v2969 = vmul.f32 %v2642, 1.442695
        %v2970 = vpow.pop %v2969
        %v2971 = vmul.f32 %v2643, 1.442695
        %v2972 = vpow.pop %v2971
        %v2973 = vmul.f32 %v2644, 1.442695
        %v2974 = vpow.pop %v2973
        %v2975 = vmul.f32 %v2645, 1.442695
        %v2976 = vpow.pop %v2975
        %v2977 = vmul.f32 %v2646, 1.442695
        %v2978 = vpow.pop %v2977
        %v2979 = vmul.f32 %v2647, 1.442695
        %v2980 = vpow.pop %v2979
        %v2981 = vmul.f32 %v2648, 1.442695
        %v2982 = vpow.pop %v2981
        %v2983 = vmul.f32 %v2649, 1.442695
        %v2984 = vpow.pop %v2983
        %v2985 = vmul.f32 %v2650, 1.442695
        %v2986 = vpow.pop %v2985
        %v2987 = vmul.f32 %v2651, 1.442695
        %v2988 = vpow.pop %v2987
        %v2989 = vmul.f32 %v2652, 1.442695
        %v2990 = vpow.pop %v2989
        %v2991 = vmul.f32 %v2653, 1.442695
        %v2992 = vpow.pop %v2991
        %v2993 = vmul.f32 %v2654, 1.442695
        %v2994 = vpow.pop %v2993
        %v2995 = vmul.f32 %v2655, 1.442695
        %v2996 = vpow.pop %v2995
        %v2997 = vmul.f32 %v2656, 1.442695
        %v2998 = vpow.pop %v2997
        %v2999 = vmul.f32 %v2657, 1.442695
        %v3000 = vpow.pop %v2999
        %v3001 = vmul.f32 %v2658, 1.442695
        %v3002 = vpow.pop %v3001
        %v3003 = vmul.f32 %v2659, 1.442695
        %v3004 = vpow.pop %v3003
        %v3005 = vmul.f32 %v2660, 1.442695
        %v3006 = vpow.pop %v3005
        %v3007 = vmul.f32 %v2661, 1.442695
        %v3008 = vpow.pop %v3007
        %v3009 = vmul.f32 %v2662, 1.442695
        %v3010 = vpow.pop %v3009
        %v3011 = vmul.f32 %v2663, 1.442695
        %v3012 = vpow.pop %v3011
        %v3013 = vmul.f32 %v2664, 1.442695
        %v3014 = vpow.pop %v3013
        %v3015 = vmul.f32 %v2665, 1.442695
        %v3016 = vpow.pop %v3015
        %v3017 = vmul.f32 %v2666, 1.442695
        %v3018 = vpow.pop %v3017
        %v3019 = vmul.f32 %v2667, 1.442695
        %v3020 = vpow.pop %v3019
        %v3021 = vmul.f32 %v2668, 1.442695
        %v3022 = vpow.pop %v3021
        %v3023 = vmul.f32 %v2669, 1.442695
        %v3024 = vpow.pop %v3023
        %v3025 = vmul.f32 %v2670, 1.442695
        %v3026 = vpow.pop %v3025
        %v3027 = vmul.f32 %v2671, 1.442695
        %v3028 = vpow.pop %v3027
        %v3029 = vmul.f32 %v2672, 1.442695
        %v3030 = vpow.pop %v3029
        %v3031 = vmul.f32 %v2673, 1.442695
        %v3032 = vpow.pop %v3031
        %v3033 = vmul.f32 %v2674, 1.442695
        %v3034 = vpow.pop %v3033
        %v3035 = vmul.f32 %v2675, 1.442695
        %v3036 = vpow.pop %v3035
        %v3037 = vmul.f32 %v2676, 1.442695
        %v3038 = vpow.pop %v3037
        %v3039 = vmul.f32 %v2677, 1.442695
        %v3040 = vpow.pop %v3039
        %v3041 = vmul.f32 %v2678, 1.442695
        %v3042 = vpow.pop %v3041
        %v3043 = vmul.f32 %v2679, 1.442695
        %v3044 = vpow.pop %v3043
        %v3045 = vmul.f32 %v2680, 1.442695
        %v3046 = vpow.pop %v3045
        %v3047 = vmul.f32 %v2681, 1.442695
        %v3048 = vpow.pop %v3047
        %v3049 = vmul.f32 %v2682, 1.442695
        %v3050 = vpow.pop %v3049
        %v3051 = vmul.f32 %v2683, 1.442695
        %v3052 = vpow.pop %v3051
        %v3053 = vmul.f32 %v2684, 1.442695
        %v3054 = vpow.pop %v3053
        %v3055 = vmul.f32 %v2685, 1.442695
        %v3056 = vpow.pop %v3055
        %v3057 = vmul.f32 %v2686, 1.442695
        %v3058 = vpow.pop %v3057
        %v3059 = vmul.f32 %v2687, 1.442695
        %v3060 = vpow.pop %v3059
        %v3061 = vmul.f32 %v2688, 1.442695
        %v3062 = vpow.pop %v3061
        %v3063 = vmul.f32 %v2689, 1.442695
        %v3064 = vpow.pop %v3063
        %v3065 = vmul.f32 %v2690, 1.442695
        %v3066 = vpow.pop %v3065
        %v3067 = vmul.f32 %v2691, 1.442695
        %v3068 = vpow.pop %v3067
        %v3069 = vmul.f32 %v2692, 1.442695
        %v3070 = vpow.pop %v3069
        %v3071 = vmul.f32 %v2693, 1.442695
        %v3072 = vpow.pop %v3071
        %v3073 = vmul.f32 %v2694, 1.442695
        %v3074 = vpow.pop %v3073
        %v3075 = vmul.f32 %v2695, 1.442695
        %v3076 = vpow.pop %v3075
        %v3077 = vmul.f32 %v2696, 1.442695
        %v3078 = vpow.pop %v3077
        %v3079 = vmul.f32 %v2697, 1.442695
        %v3080 = vpow.pop %v3079
        %v3081 = vmul.f32 %v2698, 1.442695
        %v3082 = vpow.pop %v3081
        %v3083 = vmul.f32 %v2699, 1.442695
        %v3084 = vpow.pop %v3083
        %v3085 = vmul.f32 %v2700, 1.442695
        %v3086 = vpow.pop %v3085
        %v3087 = vmul.f32 %v2701, 1.442695
        %v3088 = vpow.pop %v3087
        %v3089 = vmul.f32 %v2702, 1.442695
        %v3090 = vpow.pop %v3089
        %v3091 = vmul.f32 %v2703, 1.442695
        %v3092 = vpow.pop %v3091
        %v3093 = vmul.f32 %v2704, 1.442695
        %v3094 = vpow.pop %v3093
        %v3095 = vmul.f32 %v2705, 1.442695
        %v3096 = vpow.pop %v3095
        %v3097 = vmul.f32 %v2706, 1.442695
        %v3098 = vpow.pop %v3097
        %v3099 = vmul.f32 %v2707, 1.442695
        %v3100 = vpow.pop %v3099
        %v3101 = vmul.f32 %v2708, 1.442695
        %v3102 = vpow.pop %v3101
        %v3103 = vmul.f32 %v2709, 1.442695
        %v3104 = vpow.pop %v3103
        %v3105 = vmul.f32 %v2710, 1.442695
        %v3106 = vpow.pop %v3105
        %v3107 = vmul.f32 %v2711, 1.442695
        %v3108 = vpow.pop %v3107
        %v3109 = vmul.f32 %v2712, 1.442695
        %v3110 = vpow.pop %v3109
        %v3111 = vmul.f32 %v2713, 1.442695
        %v3112 = vpow.pop %v3111
        %v3113 = vmul.f32 %v2714, 1.442695
        %v3114 = vpow.pop %v3113
        %v3115 = vmul.f32 %v2715, 1.442695
        %v3116 = vpow.pop %v3115
        %v3117 = vmul.f32 %v2716, 1.442695
        %v3118 = vpow.pop %v3117
        %v3119 = vmul.f32 %v2717, 1.442695
        %v3120 = vpow.pop %v3119
        %v3121 = vmul.f32 %v2718, 1.442695
        %v3122 = vpow.pop %v3121
        %v3123 = vmul.f32 %v2719, 1.442695
        %v3124 = vpow.pop %v3123
        %v3125 = vmul.f32 %v2720, 1.442695
        %v3126 = vpow.pop %v3125
        %v3127 = vmul.f32 %v2721, 1.442695
        %v3128 = vpow.pop %v3127
        %v3129 = vmul.f32 %v2722, 1.442695
        %v3130 = vpow.pop %v3129
        %v3131 = vmul.f32 %v2723, 1.442695
        %v3132 = vpow.pop %v3131
        %v3133 = vmul.f32 %v2724, 1.442695
        %v3134 = vpow.pop %v3133
        %v3135 = vmul.f32 %v2725, 1.442695
        %v3136 = vpow.pop %v3135
        %v3137 = vmul.f32 %v2726, 1.442695
        %v3138 = vpow.pop %v3137
        %v3139 = vmul.f32 %v2727, 1.442695
        %v3140 = vpow.pop %v3139
        %v3141 = vmul.f32 %v2728, 1.442695
        %v3142 = vpow.pop %v3141
        %v3143 = vmul.f32 %v2729, 1.442695
        %v3144 = vpow.pop %v3143
        %v3145 = vmul.f32 %v2730, 1.442695
        %v3146 = vpow.pop %v3145
        %v3147 = vmul.f32 %v2731, 1.442695
        %v3148 = vpow.pop %v3147
        %v3149 = vmul.f32 %v2732, 1.442695
        %v3150 = vpow.pop %v3149
        %v3151 = vmul.f32 %v2733, 1.442695
        %v3152 = vpow.pop %v3151
        %v3153 = vmul.f32 %v2734, 1.442695
        %v3154 = vpow.pop %v3153
        %v3155 = vmul.f32 %v2735, 1.442695
        %v3156 = vpow.pop %v3155
        %v3157 = vmul.f32 %v2736, 1.442695
        %v3158 = vpow.pop %v3157
        %v3159 = vmul.f32 %v2737, 1.442695
        %v3160 = vpow.pop %v3159
        %v3161 = vmul.f32 %v2738, 1.442695
        %v3162 = vpow.pop %v3161
        %v3163 = vmul.f32 %v2739, 1.442695
        %v3164 = vpow.pop %v3163
        %v3165 = vmul.f32 %v2740, 1.442695
        %v3166 = vpow.pop %v3165
        %v3167 = vmul.f32 %v2741, 1.442695
        %v3168 = vpow.pop %v3167
        %v3169 = vmul.f32 %v2742, 1.442695
        %v3170 = vpow.pop %v3169
        %v3171 = vmul.f32 %v2743, 1.442695
        %v3172 = vpow.pop %v3171
        %v3173 = vmul.f32 %v2744, 1.442695
        %v3174 = vpow.pop %v3173
        %v3175 = vmul.f32 %v2745, 1.442695
        %v3176 = vpow.pop %v3175
        %v3177 = vmul.f32 %v2746, 1.442695
        %v3178 = vpow.pop %v3177
        %v3179 = vmul.f32 %v2747, 1.442695
        %v3180 = vpow.pop %v3179
        %v3181 = vmul.f32 %v2748, 1.442695
        %v3182 = vpow.pop %v3181
        %v3183 = vmul.f32 %v2749, 1.442695
        %v3184 = vpow.pop %v3183
        %v3185 = vmul.f32 %v2750, 1.442695
        %v3186 = vpow.pop %v3185
        %v3187 = vmul.f32 %v2751, 1.442695
        %v3188 = vpow.pop %v3187
        %v3189 = vmul.f32 %v2752, 1.442695
        %v3190 = vpow.pop %v3189
        %v3191 = vmul.f32 %v2753, 1.442695
        %v3192 = vpow.pop %v3191
        %v3193 = vmul.f32 %v2754, 1.442695
        %v3194 = vpow.pop %v3193
        %v3195 = vmul.f32 %v2755, 1.442695
        %v3196 = vpow.pop %v3195
        %v3197 = vmul.f32 %v2756, 1.442695
        %v3198 = vpow.pop %v3197
        %v3199 = vmul.f32 %v2757, 1.442695
        %v3200 = vpow.pop %v3199
        %v3201 = vmul.f32 %v2758, 1.442695
        %v3202 = vpow.pop %v3201
        %v3203 = vmul.f32 %v2759, 1.442695
        %v3204 = vpow.pop %v3203
        %v3205 = vmul.f32 %v2760, 1.442695
        %v3206 = vpow.pop %v3205
        %v3207 = vmul.f32 %v2761, 1.442695
        %v3208 = vpow.pop %v3207
        %v3209 = vmul.f32 %v2762, 1.442695
        %v3210 = vpow.pop %v3209
        %v3211 = vmul.f32 %v2763, 1.442695
        %v3212 = vpow.pop %v3211
        %v3213 = vmul.f32 %v2764, 1.442695
        %v3214 = vpow.pop %v3213
        %v3215 = vmul.f32 %v2765, 1.442695
        %v3216 = vpow.pop %v3215
        %v3217 = vmul.f32 %v2766, 1.442695
        %v3218 = vpow.pop %v3217
        %v3219 = vmul.f32 %v2767, 1.442695
        %v3220 = vpow.pop %v3219
        %v3221 = vmul.f32 %v2768, 1.442695
        %v3222 = vpow.pop %v3221
        %v3223 = vmul.f32 %v2769, 1.442695
        %v3224 = vpow.pop %v3223
        %v3225 = vmul.f32 %v2770, 1.442695
        %v3226 = vpow.pop %v3225
        %v3227 = vmul.f32 %v2771, 1.442695
        %v3228 = vpow.pop %v3227
        %v3229 = vmul.f32 %v2772, 1.442695
        %v3230 = vpow.pop %v3229
        %v3231 = vmul.f32 %v2773, 1.442695
        %v3232 = vpow.pop %v3231
        %v3233 = vmul.f32 %v2774, 1.442695
        %v3234 = vpow.pop %v3233
        %v3235 = vmul.f32 %v2775, 1.442695
        %v3236 = vpow.pop %v3235
        %v3237 = vmul.f32 %v2776, 1.442695
        %v3238 = vpow.pop %v3237
        %v3239 = vmul.f32 %v2777, 1.442695
        %v3240 = vpow.pop %v3239
        %v3241 = vmul.f32 %v2778, 1.442695
        %v3242 = vpow.pop %v3241
        %v3243 = vmul.f32 %v2779, 1.442695
        %v3244 = vpow.pop %v3243
        %v3245 = vmul.f32 %v2780, 1.442695
        %v3246 = vpow.pop %v3245
        %v3247 = vmul.f32 %v2781, 1.442695
        %v3248 = vpow.pop %v3247
        %v3249 = vmul.f32 %v2782, 1.442695
        %v3250 = vpow.pop %v3249
        %v3251 = vmul.f32 %v2783, 1.442695
        %v3252 = vpow.pop %v3251
        %v3253 = vmul.f32 %v2784, 1.442695
        %v3254 = vpow.pop %v3253
        %v3255 = vmul.f32 %v2785, 1.442695
        %v3256 = vpow.pop %v3255
        %v3257 = vmul.f32 %v2786, 1.442695
        %v3258 = vpow.pop %v3257
        %v3259 = vmul.f32 %v2787, 1.442695
        %v3260 = vpow.pop %v3259
        %v3261 = vmul.f32 %v2788, 1.442695
        %v3262 = vpow.pop %v3261
        %v3263 = vmul.f32 %v2789, 1.442695
        %v3264 = vpow.pop %v3263
        %v3265 = vmul.f32 %v2790, 1.442695
        %v3266 = vpow.pop %v3265
        %v3267 = vmul.f32 %v2791, 1.442695
        %v3268 = vpow.pop %v3267
        %v3269 = vmul.f32 %v2792, 1.442695
        %v3270 = vpow.pop %v3269
        %v3271 = vmul.f32 %v2793, 1.442695
        %v3272 = vpow.pop %v3271
        %v3273 = vmul.f32 %v2794, 1.442695
        %v3274 = vpow.pop %v3273
        %v3275 = vmul.f32 %v2795, 1.442695
        %v3276 = vpow.pop %v3275
        %v3277 = vmul.f32 %v2796, 1.442695
        %v3278 = vpow.pop %v3277
        %v3279 = vmul.f32 %v2797, 1.442695
        %v3280 = vpow.pop %v3279
        %v3281 = vmul.f32 %v2798, 1.442695
        %v3282 = vpow.pop %v3281
        %v3283 = vmul.f32 %v2799, 1.442695
        %v3284 = vpow.pop %v3283
        %v3285 = vmul.f32 %v2800, 1.442695
        %v3286 = vpow.pop %v3285
        %v3287 = vmul.f32 %v2801, 1.442695
        %v3288 = vpow.pop %v3287
        %v3289 = vmul.f32 %v2802, 1.442695
        %v3290 = vpow.pop %v3289
        %v3291 = vmul.f32 %v2803, 1.442695
        %v3292 = vpow.pop %v3291
        %v3293 = vmul.f32 %v2804, 1.442695
        %v3294 = vpow.pop %v3293
        %v3295 = vmul.f32 %v2805, 1.442695
        %v3296 = vpow.pop %v3295
        %v3297 = vmul.f32 %v2806, 1.442695
        %v3298 = vpow.pop %v3297
        %v3299 = vmul.f32 %v2807, 1.442695
        %v3300 = vpow.pop %v3299
        %v3301 = vmul.f32 %v2808, 1.442695
        %v3302 = vpow.pop %v3301
        %v3303 = vmul.f32 %v2809, 1.442695
        %v3304 = vpow.pop %v3303
        %v3305 = vmul.f32 %v2810, 1.442695
        %v3306 = vpow.pop %v3305
        %v3307 = vmul.f32 %v2811, 1.442695
        %v3308 = vpow.pop %v3307
        %v3309 = vmul.f32 %v2812, 1.442695
        %v3310 = vpow.pop %v3309
        %v3311 = vmul.f32 %v2813, 1.442695
        %v3312 = vpow.pop %v3311
        %v3313 = vmul.f32 %v2814, 1.442695
        %v3314 = vpow.pop %v3313
        %v3315 = vmul.f32 %v2815, 1.442695
        %v3316 = vpow.pop %v3315
        %v3317 = vmul.f32 %v2816, 1.442695
        %v3318 = vpow.pop %v3317
        %v3319 = vmul.f32 %v2817, 1.442695
        %v3320 = vpow.pop %v3319
        %v3321 = vmul.f32 %v2818, 1.442695
        %v3322 = vpow.pop %v3321
        %v3323 = vmul.f32 %v2819, 1.442695
        %v3324 = vpow.pop %v3323
        %v3325 = vmul.f32 %v2820, 1.442695
        %v3326 = vpow.pop %v3325
        %v3327 = vmul.f32 %v2821, 1.442695
        %v3328 = vpow.pop %v3327
        %v3329 = vmul.f32 %v2822, 1.442695
        %v3330 = vpow.pop %v3329
        %v3331 = vmul.f32 %v2823, 1.442695
        %v3332 = vpow.pop %v3331
        %v3333 = vmul.f32 %v2824, 1.442695
        %v3334 = vpow.pop %v3333
        %v3335 = vmul.f32 %v2825, 1.442695
        %v3336 = vpow.pop %v3335
        %v3337 = vmul.f32 %v2826, 1.442695
        %v3338 = vpow.pop %v3337
        %v3339 = vpack.c.bf16 %v2830, %v2828
        %v3340 = vpack.c.bf16 %v2834, %v2832
        %v3341 = vpack.c.bf16 %v2838, %v2836
        %v3342 = vpack.c.bf16 %v2842, %v2840
        %v3343 = vpack.c.bf16 %v2846, %v2844
        %v3344 = vpack.c.bf16 %v2850, %v2848
        %v3345 = vpack.c.bf16 %v2854, %v2852
        %v3346 = vpack.c.bf16 %v2858, %v2856
        %v3347 = vpack.c.bf16 %v2862, %v2860
        %v3348 = vpack.c.bf16 %v2866, %v2864
        %v3349 = vpack.c.bf16 %v2870, %v2868
        %v3350 = vpack.c.bf16 %v2874, %v2872
        %v3351 = vpack.c.bf16 %v2878, %v2876
        %v3352 = vpack.c.bf16 %v2882, %v2880
        %v3353 = vpack.c.bf16 %v2886, %v2884
        %v3354 = vpack.c.bf16 %v2890, %v2888
        %v3355 = vpack.c.bf16 %v2894, %v2892
        %v3356 = vpack.c.bf16 %v2898, %v2896
        %v3357 = vpack.c.bf16 %v2902, %v2900
        %v3358 = vpack.c.bf16 %v2906, %v2904
        %v3359 = vpack.c.bf16 %v2910, %v2908
        %v3360 = vpack.c.bf16 %v2914, %v2912
        %v3361 = vpack.c.bf16 %v2918, %v2916
        %v3362 = vpack.c.bf16 %v2922, %v2920
        %v3363 = vpack.c.bf16 %v2926, %v2924
        %v3364 = vpack.c.bf16 %v2930, %v2928
        %v3365 = vpack.c.bf16 %v2934, %v2932
        %v3366 = vpack.c.bf16 %v2938, %v2936
        %v3367 = vpack.c.bf16 %v2942, %v2940
        %v3368 = vpack.c.bf16 %v2946, %v2944
        %v3369 = vpack.c.bf16 %v2950, %v2948
        %v3370 = vpack.c.bf16 %v2954, %v2952
        %v3371 = vpack.c.bf16 %v2958, %v2956
        %v3372 = vpack.c.bf16 %v2962, %v2960
        %v3373 = vpack.c.bf16 %v2966, %v2964
        %v3374 = vpack.c.bf16 %v2970, %v2968
        %v3375 = vpack.c.bf16 %v2974, %v2972
        %v3376 = vpack.c.bf16 %v2978, %v2976
        %v3377 = vpack.c.bf16 %v2982, %v2980
        %v3378 = vpack.c.bf16 %v2986, %v2984
        %v3379 = vpack.c.bf16 %v2990, %v2988
        %v3380 = vpack.c.bf16 %v2994, %v2992
        %v3381 = vpack.c.bf16 %v2998, %v2996
        %v3382 = vpack.c.bf16 %v3002, %v3000
        %v3383 = vpack.c.bf16 %v3006, %v3004
        %v3384 = vpack.c.bf16 %v3010, %v3008
        %v3385 = vpack.c.bf16 %v3014, %v3012
        %v3386 = vpack.c.bf16 %v3018, %v3016
        %v3387 = vpack.c.bf16 %v3022, %v3020
        %v3388 = vpack.c.bf16 %v3026, %v3024
        %v3389 = vpack.c.bf16 %v3030, %v3028
        %v3390 = vpack.c.bf16 %v3034, %v3032
        %v3391 = vpack.c.bf16 %v3038, %v3036
        %v3392 = vpack.c.bf16 %v3042, %v3040
        %v3393 = vpack.c.bf16 %v3046, %v3044
        %v3394 = vpack.c.bf16 %v3050, %v3048
        %v3395 = vpack.c.bf16 %v3054, %v3052
        %v3396 = vpack.c.bf16 %v3058, %v3056
        %v3397 = vpack.c.bf16 %v3062, %v3060
        %v3398 = vpack.c.bf16 %v3066, %v3064
        %v3399 = vpack.c.bf16 %v3070, %v3068
        %v3400 = vpack.c.bf16 %v3074, %v3072
        %v3401 = vpack.c.bf16 %v3078, %v3076
        %v3402 = vpack.c.bf16 %v3082, %v3080
        %v3403 = vpack.c.bf16 %v3086, %v3084
        %v3404 = vpack.c.bf16 %v3090, %v3088
        %v3405 = vpack.c.bf16 %v3094, %v3092
        %v3406 = vpack.c.bf16 %v3098, %v3096
        %v3407 = vpack.c.bf16 %v3102, %v3100
        %v3408 = vpack.c.bf16 %v3106, %v3104
        %v3409 = vpack.c.bf16 %v3110, %v3108
        %v3410 = vpack.c.bf16 %v3114, %v3112
        %v3411 = vpack.c.bf16 %v3118, %v3116
        %v3412 = vpack.c.bf16 %v3122, %v3120
        %v3413 = vpack.c.bf16 %v3126, %v3124
        %v3414 = vpack.c.bf16 %v3130, %v3128
        %v3415 = vpack.c.bf16 %v3134, %v3132
        %v3416 = vpack.c.bf16 %v3138, %v3136
        %v3417 = vpack.c.bf16 %v3142, %v3140
        %v3418 = vpack.c.bf16 %v3146, %v3144
        %v3419 = vpack.c.bf16 %v3150, %v3148
        %v3420 = vpack.c.bf16 %v3154, %v3152
        %v3421 = vpack.c.bf16 %v3158, %v3156
        %v3422 = vpack.c.bf16 %v3162, %v3160
        %v3423 = vpack.c.bf16 %v3166, %v3164
        %v3424 = vpack.c.bf16 %v3170, %v3168
        %v3425 = vpack.c.bf16 %v3174, %v3172
        %v3426 = vpack.c.bf16 %v3178, %v3176
        %v3427 = vpack.c.bf16 %v3182, %v3180
        %v3428 = vpack.c.bf16 %v3186, %v3184
        %v3429 = vpack.c.bf16 %v3190, %v3188
        %v3430 = vpack.c.bf16 %v3194, %v3192
        %v3431 = vpack.c.bf16 %v3198, %v3196
        %v3432 = vpack.c.bf16 %v3202, %v3200
        %v3433 = vpack.c.bf16 %v3206, %v3204
        %v3434 = vpack.c.bf16 %v3210, %v3208
        %v3435 = vpack.c.bf16 %v3214, %v3212
        %v3436 = vpack.c.bf16 %v3218, %v3216
        %v3437 = vpack.c.bf16 %v3222, %v3220
        %v3438 = vpack.c.bf16 %v3226, %v3224
        %v3439 = vpack.c.bf16 %v3230, %v3228
        %v3440 = vpack.c.bf16 %v3234, %v3232
        %v3441 = vpack.c.bf16 %v3238, %v3236
        %v3442 = vpack.c.bf16 %v3242, %v3240
        %v3443 = vpack.c.bf16 %v3246, %v3244
        %v3444 = vpack.c.bf16 %v3250, %v3248
        %v3445 = vpack.c.bf16 %v3254, %v3252
        %v3446 = vpack.c.bf16 %v3258, %v3256
        %v3447 = vpack.c.bf16 %v3262, %v3260
        %v3448 = vpack.c.bf16 %v3266, %v3264
        %v3449 = vpack.c.bf16 %v3270, %v3268
        %v3450 = vpack.c.bf16 %v3274, %v3272
        %v3451 = vpack.c.bf16 %v3278, %v3276
        %v3452 = vpack.c.bf16 %v3282, %v3280
        %v3453 = vpack.c.bf16 %v3286, %v3284
        %v3454 = vpack.c.bf16 %v3290, %v3288
        %v3455 = vpack.c.bf16 %v3294, %v3292
        %v3456 = vpack.c.bf16 %v3298, %v3296
        %v3457 = vpack.c.bf16 %v3302, %v3300
        %v3458 = vpack.c.bf16 %v3306, %v3304
        %v3459 = vpack.c.bf16 %v3310, %v3308
        %v3460 = vpack.c.bf16 %v3314, %v3312
        %v3461 = vpack.c.bf16 %v3318, %v3316
        %v3462 = vpack.c.bf16 %v3322, %v3320
        %v3463 = vpack.c.bf16 %v3326, %v3324
        %v3464 = vpack.c.bf16 %v3330, %v3328
        %v3465 = vpack.c.bf16 %v3334, %v3332
        %v3466 = vpack.c.bf16 %v3338, %v3336
        %v3468 = vunpack.c.l.b16 %v985
        %v3469 = vunpack.c.h.b16 %v985
        %v3470 = vpack.c.b16 %v3468, %v3468
        %v3471 = vpack.c.b16 %v3469, %v3469
        %v3490 = vunpack.c.l.b16 %v3339
        %v3491 = vunpack.c.h.b16 %v3339
        %v3492 = vunpack.c.l.b16 %v3340
        %v3493 = vunpack.c.h.b16 %v3340
        %v3494 = vunpack.c.l.b16 %v3341
        %v3495 = vunpack.c.h.b16 %v3341
        %v3496 = vunpack.c.l.b16 %v3342
        %v3497 = vunpack.c.h.b16 %v3342
        %v3498 = vunpack.c.l.b16 %v3343
        %v3499 = vunpack.c.h.b16 %v3343
        %v3500 = vunpack.c.l.b16 %v3344
        %v3501 = vunpack.c.h.b16 %v3344
        %v3502 = vunpack.c.l.b16 %v3345
        %v3503 = vunpack.c.h.b16 %v3345
        %v3504 = vunpack.c.l.b16 %v3346
        %v3505 = vunpack.c.h.b16 %v3346
        %v3506 = vunpack.c.l.b16 %v3347
        %v3507 = vunpack.c.h.b16 %v3347
        %v3508 = vunpack.c.l.b16 %v3348
        %v3509 = vunpack.c.h.b16 %v3348
        %v3510 = vunpack.c.l.b16 %v3349
        %v3511 = vunpack.c.h.b16 %v3349
        %v3512 = vunpack.c.l.b16 %v3350
        %v3513 = vunpack.c.h.b16 %v3350
        %v3514 = vunpack.c.l.b16 %v3351
        %v3515 = vunpack.c.h.b16 %v3351
        %v3516 = vunpack.c.l.b16 %v3352
        %v3517 = vunpack.c.h.b16 %v3352
        %v3518 = vunpack.c.l.b16 %v3353
        %v3519 = vunpack.c.h.b16 %v3353
        %v3520 = vunpack.c.l.b16 %v3354
        %v3521 = vunpack.c.h.b16 %v3354
        %v3522 = vpack.c.b16 %v3492, %v3490
        %v3523 = vpack.c.b16 %v3493, %v3491
        %v3524 = vpack.c.b16 %v3496, %v3494
        %v3525 = vpack.c.b16 %v3497, %v3495
        %v3526 = vpack.c.b16 %v3500, %v3498
        %v3527 = vpack.c.b16 %v3501, %v3499
        %v3528 = vpack.c.b16 %v3504, %v3502
        %v3529 = vpack.c.b16 %v3505, %v3503
        %v3530 = vpack.c.b16 %v3508, %v3506
        %v3531 = vpack.c.b16 %v3509, %v3507
        %v3532 = vpack.c.b16 %v3512, %v3510
        %v3533 = vpack.c.b16 %v3513, %v3511
        %v3534 = vpack.c.b16 %v3516, %v3514
        %v3535 = vpack.c.b16 %v3517, %v3515
        %v3536 = vpack.c.b16 %v3520, %v3518
        %v3537 = vpack.c.b16 %v3521, %v3519
        %3554 = vmatpush.bf16.xpose.msra.mxu0 %v3536
        %3555 = vmatpush.bf16.xpose.msra.mxu0 %v3534
        %3556 = vmatpush.bf16.xpose.msra.mxu0 %v3532
        %3557 = vmatpush.bf16.xpose.msra.mxu0 %v3530
        %3558 = vmatpush.bf16.xpose.msra.mxu0 %v3528
        %3559 = vmatpush.bf16.xpose.msra.mxu0 %v3526
        %3560 = vmatpush.bf16.xpose.msra.mxu0 %v3524
        %3561 = vmatpush.bf16.xpose.msra.mxu0 %v3522
        %3562 = vmatmul.bf16.gmra.mxu0 %v3470
        %v3563 = vpop.f32.mrf.mxu0
        %v3564 = vadd.f32 0.0, %v3563
        %v3565 = vpop.f32.mrf.mxu0
        %3566 = vdwg.mxu0
        %3567 = vmatpush.bf16.xpose.msra.mxu0 %v3537
        %3568 = vmatpush.bf16.xpose.msra.mxu0 %v3535
        %3569 = vmatpush.bf16.xpose.msra.mxu0 %v3533
        %3570 = vmatpush.bf16.xpose.msra.mxu0 %v3531
        %3571 = vmatpush.bf16.xpose.msra.mxu0 %v3529
        %3572 = vmatpush.bf16.xpose.msra.mxu0 %v3527
        %3573 = vmatpush.bf16.xpose.msra.mxu0 %v3525
        %3574 = vmatpush.bf16.xpose.msra.mxu0 %v3523
        %3575 = vmatmul.bf16.gmra.mxu0 %v3471
        %v3576 = vpop.f32.mrf.mxu0
        %v3577 = vadd.f32 %v3564, %v3576
        %v3578 = vpop.f32.mrf.mxu0
        %3579 = vdwg.mxu0
        %v3581 = vunpack.c.l.b16 %v986
        %v3582 = vunpack.c.h.b16 %v986
        %v3583 = vpack.c.b16 %v3581, %v3581
        %v3584 = vpack.c.b16 %v3582, %v3582
        %v3603 = vunpack.c.l.b16 %v3355
        %v3604 = vunpack.c.h.b16 %v3355
        %v3605 = vunpack.c.l.b16 %v3356
        %v3606 = vunpack.c.h.b16 %v3356
        %v3607 = vunpack.c.l.b16 %v3357
        %v3608 = vunpack.c.h.b16 %v3357
        %v3609 = vunpack.c.l.b16 %v3358
        %v3610 = vunpack.c.h.b16 %v3358
        %v3611 = vunpack.c.l.b16 %v3359
        %v3612 = vunpack.c.h.b16 %v3359
        %v3613 = vunpack.c.l.b16 %v3360
        %v3614 = vunpack.c.h.b16 %v3360
        %v3615 = vunpack.c.l.b16 %v3361
        %v3616 = vunpack.c.h.b16 %v3361
        %v3617 = vunpack.c.l.b16 %v3362
        %v3618 = vunpack.c.h.b16 %v3362
        %v3619 = vunpack.c.l.b16 %v3363
        %v3620 = vunpack.c.h.b16 %v3363
        %v3621 = vunpack.c.l.b16 %v3364
        %v3622 = vunpack.c.h.b16 %v3364
        %v3623 = vunpack.c.l.b16 %v3365
        %v3624 = vunpack.c.h.b16 %v3365
        %v3625 = vunpack.c.l.b16 %v3366
        %v3626 = vunpack.c.h.b16 %v3366
        %v3627 = vunpack.c.l.b16 %v3367
        %v3628 = vunpack.c.h.b16 %v3367
        %v3629 = vunpack.c.l.b16 %v3368
        %v3630 = vunpack.c.h.b16 %v3368
        %v3631 = vunpack.c.l.b16 %v3369
        %v3632 = vunpack.c.h.b16 %v3369
        %v3633 = vunpack.c.l.b16 %v3370
        %v3634 = vunpack.c.h.b16 %v3370
        %v3635 = vpack.c.b16 %v3605, %v3603
        %v3636 = vpack.c.b16 %v3606, %v3604
        %v3637 = vpack.c.b16 %v3609, %v3607
        %v3638 = vpack.c.b16 %v3610, %v3608
        %v3639 = vpack.c.b16 %v3613, %v3611
        %v3640 = vpack.c.b16 %v3614, %v3612
        %v3641 = vpack.c.b16 %v3617, %v3615
        %v3642 = vpack.c.b16 %v3618, %v3616
        %v3643 = vpack.c.b16 %v3621, %v3619
        %v3644 = vpack.c.b16 %v3622, %v3620
        %v3645 = vpack.c.b16 %v3625, %v3623
        %v3646 = vpack.c.b16 %v3626, %v3624
        %v3647 = vpack.c.b16 %v3629, %v3627
        %v3648 = vpack.c.b16 %v3630, %v3628
        %v3649 = vpack.c.b16 %v3633, %v3631
        %v3650 = vpack.c.b16 %v3634, %v3632
        %3667 = vmatpush.bf16.xpose.msra.mxu0 %v3649
        %3668 = vmatpush.bf16.xpose.msra.mxu0 %v3647
        %3669 = vmatpush.bf16.xpose.msra.mxu0 %v3645
        %3670 = vmatpush.bf16.xpose.msra.mxu0 %v3643
        %3671 = vmatpush.bf16.xpose.msra.mxu0 %v3641
        %3672 = vmatpush.bf16.xpose.msra.mxu0 %v3639
        %3673 = vmatpush.bf16.xpose.msra.mxu0 %v3637
        %3674 = vmatpush.bf16.xpose.msra.mxu0 %v3635
        %3675 = vmatmul.bf16.gmra.mxu0 %v3583
        %v3676 = vpop.f32.mrf.mxu0
        %v3677 = vadd.f32 0.0, %v3676
        %v3678 = vpop.f32.mrf.mxu0
        %3679 = vdwg.mxu0
        %3680 = vmatpush.bf16.xpose.msra.mxu0 %v3650
        %3681 = vmatpush.bf16.xpose.msra.mxu0 %v3648
        %3682 = vmatpush.bf16.xpose.msra.mxu0 %v3646
        %3683 = vmatpush.bf16.xpose.msra.mxu0 %v3644
        %3684 = vmatpush.bf16.xpose.msra.mxu0 %v3642
        %3685 = vmatpush.bf16.xpose.msra.mxu0 %v3640
        %3686 = vmatpush.bf16.xpose.msra.mxu0 %v3638
        %3687 = vmatpush.bf16.xpose.msra.mxu0 %v3636
        %3688 = vmatmul.bf16.gmra.mxu0 %v3584
        %v3689 = vpop.f32.mrf.mxu0
        %v3690 = vadd.f32 %v3677, %v3689
        %v3691 = vpop.f32.mrf.mxu0
        %3692 = vdwg.mxu0
        %v3694 = vunpack.c.l.b16 %v987
        %v3695 = vunpack.c.h.b16 %v987
        %v3696 = vpack.c.b16 %v3694, %v3694
        %v3697 = vpack.c.b16 %v3695, %v3695
        %v3716 = vunpack.c.l.b16 %v3371
        %v3717 = vunpack.c.h.b16 %v3371
        %v3718 = vunpack.c.l.b16 %v3372
        %v3719 = vunpack.c.h.b16 %v3372
        %v3720 = vunpack.c.l.b16 %v3373
        %v3721 = vunpack.c.h.b16 %v3373
        %v3722 = vunpack.c.l.b16 %v3374
        %v3723 = vunpack.c.h.b16 %v3374
        %v3724 = vunpack.c.l.b16 %v3375
        %v3725 = vunpack.c.h.b16 %v3375
        %v3726 = vunpack.c.l.b16 %v3376
        %v3727 = vunpack.c.h.b16 %v3376
        %v3728 = vunpack.c.l.b16 %v3377
        %v3729 = vunpack.c.h.b16 %v3377
        %v3730 = vunpack.c.l.b16 %v3378
        %v3731 = vunpack.c.h.b16 %v3378
        %v3732 = vunpack.c.l.b16 %v3379
        %v3733 = vunpack.c.h.b16 %v3379
        %v3734 = vunpack.c.l.b16 %v3380
        %v3735 = vunpack.c.h.b16 %v3380
        %v3736 = vunpack.c.l.b16 %v3381
        %v3737 = vunpack.c.h.b16 %v3381
        %v3738 = vunpack.c.l.b16 %v3382
        %v3739 = vunpack.c.h.b16 %v3382
        %v3740 = vunpack.c.l.b16 %v3383
        %v3741 = vunpack.c.h.b16 %v3383
        %v3742 = vunpack.c.l.b16 %v3384
        %v3743 = vunpack.c.h.b16 %v3384
        %v3744 = vunpack.c.l.b16 %v3385
        %v3745 = vunpack.c.h.b16 %v3385
        %v3746 = vunpack.c.l.b16 %v3386
        %v3747 = vunpack.c.h.b16 %v3386
        %v3748 = vpack.c.b16 %v3718, %v3716
        %v3749 = vpack.c.b16 %v3719, %v3717
        %v3750 = vpack.c.b16 %v3722, %v3720
        %v3751 = vpack.c.b16 %v3723, %v3721
        %v3752 = vpack.c.b16 %v3726, %v3724
        %v3753 = vpack.c.b16 %v3727, %v3725
        %v3754 = vpack.c.b16 %v3730, %v3728
        %v3755 = vpack.c.b16 %v3731, %v3729
        %v3756 = vpack.c.b16 %v3734, %v3732
        %v3757 = vpack.c.b16 %v3735, %v3733
        %v3758 = vpack.c.b16 %v3738, %v3736
        %v3759 = vpack.c.b16 %v3739, %v3737
        %v3760 = vpack.c.b16 %v3742, %v3740
        %v3761 = vpack.c.b16 %v3743, %v3741
        %v3762 = vpack.c.b16 %v3746, %v3744
        %v3763 = vpack.c.b16 %v3747, %v3745
        %3780 = vmatpush.bf16.xpose.msra.mxu0 %v3762
        %3781 = vmatpush.bf16.xpose.msra.mxu0 %v3760
        %3782 = vmatpush.bf16.xpose.msra.mxu0 %v3758
        %3783 = vmatpush.bf16.xpose.msra.mxu0 %v3756
        %3784 = vmatpush.bf16.xpose.msra.mxu0 %v3754
        %3785 = vmatpush.bf16.xpose.msra.mxu0 %v3752
        %3786 = vmatpush.bf16.xpose.msra.mxu0 %v3750
        %3787 = vmatpush.bf16.xpose.msra.mxu0 %v3748
        %3788 = vmatmul.bf16.gmra.mxu0 %v3696
        %v3789 = vpop.f32.mrf.mxu0
        %v3790 = vadd.f32 0.0, %v3789
        %v3791 = vpop.f32.mrf.mxu0
        %3792 = vdwg.mxu0
        %3793 = vmatpush.bf16.xpose.msra.mxu0 %v3763
        %3794 = vmatpush.bf16.xpose.msra.mxu0 %v3761
        %3795 = vmatpush.bf16.xpose.msra.mxu0 %v3759
        %3796 = vmatpush.bf16.xpose.msra.mxu0 %v3757
        %3797 = vmatpush.bf16.xpose.msra.mxu0 %v3755
        %3798 = vmatpush.bf16.xpose.msra.mxu0 %v3753
        %3799 = vmatpush.bf16.xpose.msra.mxu0 %v3751
        %3800 = vmatpush.bf16.xpose.msra.mxu0 %v3749
        %3801 = vmatmul.bf16.gmra.mxu0 %v3697
        %v3802 = vpop.f32.mrf.mxu0
        %v3803 = vadd.f32 %v3790, %v3802
        %v3804 = vpop.f32.mrf.mxu0
        %3805 = vdwg.mxu0
        %v3807 = vunpack.c.l.b16 %v988
        %v3808 = vunpack.c.h.b16 %v988
        %v3809 = vpack.c.b16 %v3807, %v3807
        %v3810 = vpack.c.b16 %v3808, %v3808
        %v3829 = vunpack.c.l.b16 %v3387
        %v3830 = vunpack.c.h.b16 %v3387
        %v3831 = vunpack.c.l.b16 %v3388
        %v3832 = vunpack.c.h.b16 %v3388
        %v3833 = vunpack.c.l.b16 %v3389
        %v3834 = vunpack.c.h.b16 %v3389
        %v3835 = vunpack.c.l.b16 %v3390
        %v3836 = vunpack.c.h.b16 %v3390
        %v3837 = vunpack.c.l.b16 %v3391
        %v3838 = vunpack.c.h.b16 %v3391
        %v3839 = vunpack.c.l.b16 %v3392
        %v3840 = vunpack.c.h.b16 %v3392
        %v3841 = vunpack.c.l.b16 %v3393
        %v3842 = vunpack.c.h.b16 %v3393
        %v3843 = vunpack.c.l.b16 %v3394
        %v3844 = vunpack.c.h.b16 %v3394
        %v3845 = vunpack.c.l.b16 %v3395
        %v3846 = vunpack.c.h.b16 %v3395
        %v3847 = vunpack.c.l.b16 %v3396
        %v3848 = vunpack.c.h.b16 %v3396
        %v3849 = vunpack.c.l.b16 %v3397
        %v3850 = vunpack.c.h.b16 %v3397
        %v3851 = vunpack.c.l.b16 %v3398
        %v3852 = vunpack.c.h.b16 %v3398
        %v3853 = vunpack.c.l.b16 %v3399
        %v3854 = vunpack.c.h.b16 %v3399
        %v3855 = vunpack.c.l.b16 %v3400
        %v3856 = vunpack.c.h.b16 %v3400
        %v3857 = vunpack.c.l.b16 %v3401
        %v3858 = vunpack.c.h.b16 %v3401
        %v3859 = vunpack.c.l.b16 %v3402
        %v3860 = vunpack.c.h.b16 %v3402
        %v3861 = vpack.c.b16 %v3831, %v3829
        %v3862 = vpack.c.b16 %v3832, %v3830
        %v3863 = vpack.c.b16 %v3835, %v3833
        %v3864 = vpack.c.b16 %v3836, %v3834
        %v3865 = vpack.c.b16 %v3839, %v3837
        %v3866 = vpack.c.b16 %v3840, %v3838
        %v3867 = vpack.c.b16 %v3843, %v3841
        %v3868 = vpack.c.b16 %v3844, %v3842
        %v3869 = vpack.c.b16 %v3847, %v3845
        %v3870 = vpack.c.b16 %v3848, %v3846
        %v3871 = vpack.c.b16 %v3851, %v3849
        %v3872 = vpack.c.b16 %v3852, %v3850
        %v3873 = vpack.c.b16 %v3855, %v3853
        %v3874 = vpack.c.b16 %v3856, %v3854
        %v3875 = vpack.c.b16 %v3859, %v3857
        %v3876 = vpack.c.b16 %v3860, %v3858
        %3893 = vmatpush.bf16.xpose.msra.mxu0 %v3875
        %3894 = vmatpush.bf16.xpose.msra.mxu0 %v3873
        %3895 = vmatpush.bf16.xpose.msra.mxu0 %v3871
        %3896 = vmatpush.bf16.xpose.msra.mxu0 %v3869
        %3897 = vmatpush.bf16.xpose.msra.mxu0 %v3867
        %3898 = vmatpush.bf16.xpose.msra.mxu0 %v3865
        %3899 = vmatpush.bf16.xpose.msra.mxu0 %v3863
        %3900 = vmatpush.bf16.xpose.msra.mxu0 %v3861
        %3901 = vmatmul.bf16.gmra.mxu0 %v3809
        %v3902 = vpop.f32.mrf.mxu0
        %v3903 = vadd.f32 0.0, %v3902
        %v3904 = vpop.f32.mrf.mxu0
        %3905 = vdwg.mxu0
        %3906 = vmatpush.bf16.xpose.msra.mxu0 %v3876
        %3907 = vmatpush.bf16.xpose.msra.mxu0 %v3874
        %3908 = vmatpush.bf16.xpose.msra.mxu0 %v3872
        %3909 = vmatpush.bf16.xpose.msra.mxu0 %v3870
        %3910 = vmatpush.bf16.xpose.msra.mxu0 %v3868
        %3911 = vmatpush.bf16.xpose.msra.mxu0 %v3866
        %3912 = vmatpush.bf16.xpose.msra.mxu0 %v3864
        %3913 = vmatpush.bf16.xpose.msra.mxu0 %v3862
        %3914 = vmatmul.bf16.gmra.mxu0 %v3810
        %v3915 = vpop.f32.mrf.mxu0
        %v3916 = vadd.f32 %v3903, %v3915
        %v3917 = vpop.f32.mrf.mxu0
        %3918 = vdwg.mxu0
        %v3920 = vunpack.c.l.b16 %v989
        %v3921 = vunpack.c.h.b16 %v989
        %v3922 = vpack.c.b16 %v3920, %v3920
        %v3923 = vpack.c.b16 %v3921, %v3921
        %v3942 = vunpack.c.l.b16 %v3403
        %v3943 = vunpack.c.h.b16 %v3403
        %v3944 = vunpack.c.l.b16 %v3404
        %v3945 = vunpack.c.h.b16 %v3404
        %v3946 = vunpack.c.l.b16 %v3405
        %v3947 = vunpack.c.h.b16 %v3405
        %v3948 = vunpack.c.l.b16 %v3406
        %v3949 = vunpack.c.h.b16 %v3406
        %v3950 = vunpack.c.l.b16 %v3407
        %v3951 = vunpack.c.h.b16 %v3407
        %v3952 = vunpack.c.l.b16 %v3408
        %v3953 = vunpack.c.h.b16 %v3408
        %v3954 = vunpack.c.l.b16 %v3409
        %v3955 = vunpack.c.h.b16 %v3409
        %v3956 = vunpack.c.l.b16 %v3410
        %v3957 = vunpack.c.h.b16 %v3410
        %v3958 = vunpack.c.l.b16 %v3411
        %v3959 = vunpack.c.h.b16 %v3411
        %v3960 = vunpack.c.l.b16 %v3412
        %v3961 = vunpack.c.h.b16 %v3412
        %v3962 = vunpack.c.l.b16 %v3413
        %v3963 = vunpack.c.h.b16 %v3413
        %v3964 = vunpack.c.l.b16 %v3414
        %v3965 = vunpack.c.h.b16 %v3414
        %v3966 = vunpack.c.l.b16 %v3415
        %v3967 = vunpack.c.h.b16 %v3415
        %v3968 = vunpack.c.l.b16 %v3416
        %v3969 = vunpack.c.h.b16 %v3416
        %v3970 = vunpack.c.l.b16 %v3417
        %v3971 = vunpack.c.h.b16 %v3417
        %v3972 = vunpack.c.l.b16 %v3418
        %v3973 = vunpack.c.h.b16 %v3418
        %v3974 = vpack.c.b16 %v3944, %v3942
        %v3975 = vpack.c.b16 %v3945, %v3943
        %v3976 = vpack.c.b16 %v3948, %v3946
        %v3977 = vpack.c.b16 %v3949, %v3947
        %v3978 = vpack.c.b16 %v3952, %v3950
        %v3979 = vpack.c.b16 %v3953, %v3951
        %v3980 = vpack.c.b16 %v3956, %v3954
        %v3981 = vpack.c.b16 %v3957, %v3955
        %v3982 = vpack.c.b16 %v3960, %v3958
        %v3983 = vpack.c.b16 %v3961, %v3959
        %v3984 = vpack.c.b16 %v3964, %v3962
        %v3985 = vpack.c.b16 %v3965, %v3963
        %v3986 = vpack.c.b16 %v3968, %v3966
        %v3987 = vpack.c.b16 %v3969, %v3967
        %v3988 = vpack.c.b16 %v3972, %v3970
        %v3989 = vpack.c.b16 %v3973, %v3971
        %4006 = vmatpush.bf16.xpose.msra.mxu0 %v3988
        %4007 = vmatpush.bf16.xpose.msra.mxu0 %v3986
        %4008 = vmatpush.bf16.xpose.msra.mxu0 %v3984
        %4009 = vmatpush.bf16.xpose.msra.mxu0 %v3982
        %4010 = vmatpush.bf16.xpose.msra.mxu0 %v3980
        %4011 = vmatpush.bf16.xpose.msra.mxu0 %v3978
        %4012 = vmatpush.bf16.xpose.msra.mxu0 %v3976
        %4013 = vmatpush.bf16.xpose.msra.mxu0 %v3974
        %4014 = vmatmul.bf16.gmra.mxu0 %v3922
        %v4015 = vpop.f32.mrf.mxu0
        %v4016 = vadd.f32 0.0, %v4015
        %v4017 = vpop.f32.mrf.mxu0
        %4018 = vdwg.mxu0
        %4019 = vmatpush.bf16.xpose.msra.mxu0 %v3989
        %4020 = vmatpush.bf16.xpose.msra.mxu0 %v3987
        %4021 = vmatpush.bf16.xpose.msra.mxu0 %v3985
        %4022 = vmatpush.bf16.xpose.msra.mxu0 %v3983
        %4023 = vmatpush.bf16.xpose.msra.mxu0 %v3981
        %4024 = vmatpush.bf16.xpose.msra.mxu0 %v3979
        %4025 = vmatpush.bf16.xpose.msra.mxu0 %v3977
        %4026 = vmatpush.bf16.xpose.msra.mxu0 %v3975
        %4027 = vmatmul.bf16.gmra.mxu0 %v3923
        %v4028 = vpop.f32.mrf.mxu0
        %v4029 = vadd.f32 %v4016, %v4028
        %v4030 = vpop.f32.mrf.mxu0
        %4031 = vdwg.mxu0
        %v4033 = vunpack.c.l.b16 %v990
        %v4034 = vunpack.c.h.b16 %v990
        %v4035 = vpack.c.b16 %v4033, %v4033
        %v4036 = vpack.c.b16 %v4034, %v4034
        %v4055 = vunpack.c.l.b16 %v3419
        %v4056 = vunpack.c.h.b16 %v3419
        %v4057 = vunpack.c.l.b16 %v3420
        %v4058 = vunpack.c.h.b16 %v3420
        %v4059 = vunpack.c.l.b16 %v3421
        %v4060 = vunpack.c.h.b16 %v3421
        %v4061 = vunpack.c.l.b16 %v3422
        %v4062 = vunpack.c.h.b16 %v3422
        %v4063 = vunpack.c.l.b16 %v3423
        %v4064 = vunpack.c.h.b16 %v3423
        %v4065 = vunpack.c.l.b16 %v3424
        %v4066 = vunpack.c.h.b16 %v3424
        %v4067 = vunpack.c.l.b16 %v3425
        %v4068 = vunpack.c.h.b16 %v3425
        %v4069 = vunpack.c.l.b16 %v3426
        %v4070 = vunpack.c.h.b16 %v3426
        %v4071 = vunpack.c.l.b16 %v3427
        %v4072 = vunpack.c.h.b16 %v3427
        %v4073 = vunpack.c.l.b16 %v3428
        %v4074 = vunpack.c.h.b16 %v3428
        %v4075 = vunpack.c.l.b16 %v3429
        %v4076 = vunpack.c.h.b16 %v3429
        %v4077 = vunpack.c.l.b16 %v3430
        %v4078 = vunpack.c.h.b16 %v3430
        %v4079 = vunpack.c.l.b16 %v3431
        %v4080 = vunpack.c.h.b16 %v3431
        %v4081 = vunpack.c.l.b16 %v3432
        %v4082 = vunpack.c.h.b16 %v3432
        %v4083 = vunpack.c.l.b16 %v3433
        %v4084 = vunpack.c.h.b16 %v3433
        %v4085 = vunpack.c.l.b16 %v3434
        %v4086 = vunpack.c.h.b16 %v3434
        %v4087 = vpack.c.b16 %v4057, %v4055
        %v4088 = vpack.c.b16 %v4058, %v4056
        %v4089 = vpack.c.b16 %v4061, %v4059
        %v4090 = vpack.c.b16 %v4062, %v4060
        %v4091 = vpack.c.b16 %v4065, %v4063
        %v4092 = vpack.c.b16 %v4066, %v4064
        %v4093 = vpack.c.b16 %v4069, %v4067
        %v4094 = vpack.c.b16 %v4070, %v4068
        %v4095 = vpack.c.b16 %v4073, %v4071
        %v4096 = vpack.c.b16 %v4074, %v4072
        %v4097 = vpack.c.b16 %v4077, %v4075
        %v4098 = vpack.c.b16 %v4078, %v4076
        %v4099 = vpack.c.b16 %v4081, %v4079
        %v4100 = vpack.c.b16 %v4082, %v4080
        %v4101 = vpack.c.b16 %v4085, %v4083
        %v4102 = vpack.c.b16 %v4086, %v4084
        %4119 = vmatpush.bf16.xpose.msra.mxu0 %v4101
        %4120 = vmatpush.bf16.xpose.msra.mxu0 %v4099
        %4121 = vmatpush.bf16.xpose.msra.mxu0 %v4097
        %4122 = vmatpush.bf16.xpose.msra.mxu0 %v4095
        %4123 = vmatpush.bf16.xpose.msra.mxu0 %v4093
        %4124 = vmatpush.bf16.xpose.msra.mxu0 %v4091
        %4125 = vmatpush.bf16.xpose.msra.mxu0 %v4089
        %4126 = vmatpush.bf16.xpose.msra.mxu0 %v4087
        %4127 = vmatmul.bf16.gmra.mxu0 %v4035
        %v4128 = vpop.f32.mrf.mxu0
        %v4129 = vadd.f32 0.0, %v4128
        %v4130 = vpop.f32.mrf.mxu0
        %4131 = vdwg.mxu0
        %4132 = vmatpush.bf16.xpose.msra.mxu0 %v4102
        %4133 = vmatpush.bf16.xpose.msra.mxu0 %v4100
        %4134 = vmatpush.bf16.xpose.msra.mxu0 %v4098
        %4135 = vmatpush.bf16.xpose.msra.mxu0 %v4096
        %4136 = vmatpush.bf16.xpose.msra.mxu0 %v4094
        %4137 = vmatpush.bf16.xpose.msra.mxu0 %v4092
        %4138 = vmatpush.bf16.xpose.msra.mxu0 %v4090
        %4139 = vmatpush.bf16.xpose.msra.mxu0 %v4088
        %4140 = vmatmul.bf16.gmra.mxu0 %v4036
        %v4141 = vpop.f32.mrf.mxu0
        %v4142 = vadd.f32 %v4129, %v4141
        %v4143 = vpop.f32.mrf.mxu0
        %4144 = vdwg.mxu0
        %v4146 = vunpack.c.l.b16 %v991
        %v4147 = vunpack.c.h.b16 %v991
        %v4148 = vpack.c.b16 %v4146, %v4146
        %v4149 = vpack.c.b16 %v4147, %v4147
        %v4168 = vunpack.c.l.b16 %v3435
        %v4169 = vunpack.c.h.b16 %v3435
        %v4170 = vunpack.c.l.b16 %v3436
        %v4171 = vunpack.c.h.b16 %v3436
        %v4172 = vunpack.c.l.b16 %v3437
        %v4173 = vunpack.c.h.b16 %v3437
        %v4174 = vunpack.c.l.b16 %v3438
        %v4175 = vunpack.c.h.b16 %v3438
        %v4176 = vunpack.c.l.b16 %v3439
        %v4177 = vunpack.c.h.b16 %v3439
        %v4178 = vunpack.c.l.b16 %v3440
        %v4179 = vunpack.c.h.b16 %v3440
        %v4180 = vunpack.c.l.b16 %v3441
        %v4181 = vunpack.c.h.b16 %v3441
        %v4182 = vunpack.c.l.b16 %v3442
        %v4183 = vunpack.c.h.b16 %v3442
        %v4184 = vunpack.c.l.b16 %v3443
        %v4185 = vunpack.c.h.b16 %v3443
        %v4186 = vunpack.c.l.b16 %v3444
        %v4187 = vunpack.c.h.b16 %v3444
        %v4188 = vunpack.c.l.b16 %v3445
        %v4189 = vunpack.c.h.b16 %v3445
        %v4190 = vunpack.c.l.b16 %v3446
        %v4191 = vunpack.c.h.b16 %v3446
        %v4192 = vunpack.c.l.b16 %v3447
        %v4193 = vunpack.c.h.b16 %v3447
        %v4194 = vunpack.c.l.b16 %v3448
        %v4195 = vunpack.c.h.b16 %v3448
        %v4196 = vunpack.c.l.b16 %v3449
        %v4197 = vunpack.c.h.b16 %v3449
        %v4198 = vunpack.c.l.b16 %v3450
        %v4199 = vunpack.c.h.b16 %v3450
        %v4200 = vpack.c.b16 %v4170, %v4168
        %v4201 = vpack.c.b16 %v4171, %v4169
        %v4202 = vpack.c.b16 %v4174, %v4172
        %v4203 = vpack.c.b16 %v4175, %v4173
        %v4204 = vpack.c.b16 %v4178, %v4176
        %v4205 = vpack.c.b16 %v4179, %v4177
        %v4206 = vpack.c.b16 %v4182, %v4180
        %v4207 = vpack.c.b16 %v4183, %v4181
        %v4208 = vpack.c.b16 %v4186, %v4184
        %v4209 = vpack.c.b16 %v4187, %v4185
        %v4210 = vpack.c.b16 %v4190, %v4188
        %v4211 = vpack.c.b16 %v4191, %v4189
        %v4212 = vpack.c.b16 %v4194, %v4192
        %v4213 = vpack.c.b16 %v4195, %v4193
        %v4214 = vpack.c.b16 %v4198, %v4196
        %v4215 = vpack.c.b16 %v4199, %v4197
        %4232 = vmatpush.bf16.xpose.msra.mxu0 %v4214
        %4233 = vmatpush.bf16.xpose.msra.mxu0 %v4212
        %4234 = vmatpush.bf16.xpose.msra.mxu0 %v4210
        %4235 = vmatpush.bf16.xpose.msra.mxu0 %v4208
        %4236 = vmatpush.bf16.xpose.msra.mxu0 %v4206
        %4237 = vmatpush.bf16.xpose.msra.mxu0 %v4204
        %4238 = vmatpush.bf16.xpose.msra.mxu0 %v4202
        %4239 = vmatpush.bf16.xpose.msra.mxu0 %v4200
        %4240 = vmatmul.bf16.gmra.mxu0 %v4148
        %v4241 = vpop.f32.mrf.mxu0
        %v4242 = vadd.f32 0.0, %v4241
        %v4243 = vpop.f32.mrf.mxu0
        %4244 = vdwg.mxu0
        %4245 = vmatpush.bf16.xpose.msra.mxu0 %v4215
        %4246 = vmatpush.bf16.xpose.msra.mxu0 %v4213
        %4247 = vmatpush.bf16.xpose.msra.mxu0 %v4211
        %4248 = vmatpush.bf16.xpose.msra.mxu0 %v4209
        %4249 = vmatpush.bf16.xpose.msra.mxu0 %v4207
        %4250 = vmatpush.bf16.xpose.msra.mxu0 %v4205
        %4251 = vmatpush.bf16.xpose.msra.mxu0 %v4203
        %4252 = vmatpush.bf16.xpose.msra.mxu0 %v4201
        %4253 = vmatmul.bf16.gmra.mxu0 %v4149
        %v4254 = vpop.f32.mrf.mxu0
        %v4255 = vadd.f32 %v4242, %v4254
        %v4256 = vpop.f32.mrf.mxu0
        %4257 = vdwg.mxu0
        %v4259 = vunpack.c.l.b16 %v992
        %v4260 = vunpack.c.h.b16 %v992
        %v4261 = vpack.c.b16 %v4259, %v4259
        %v4262 = vpack.c.b16 %v4260, %v4260
        %v4281 = vunpack.c.l.b16 %v3451
        %v4282 = vunpack.c.h.b16 %v3451
        %v4283 = vunpack.c.l.b16 %v3452
        %v4284 = vunpack.c.h.b16 %v3452
        %v4285 = vunpack.c.l.b16 %v3453
        %v4286 = vunpack.c.h.b16 %v3453
        %v4287 = vunpack.c.l.b16 %v3454
        %v4288 = vunpack.c.h.b16 %v3454
        %v4289 = vunpack.c.l.b16 %v3455
        %v4290 = vunpack.c.h.b16 %v3455
        %v4291 = vunpack.c.l.b16 %v3456
        %v4292 = vunpack.c.h.b16 %v3456
        %v4293 = vunpack.c.l.b16 %v3457
        %v4294 = vunpack.c.h.b16 %v3457
        %v4295 = vunpack.c.l.b16 %v3458
        %v4296 = vunpack.c.h.b16 %v3458
        %v4297 = vunpack.c.l.b16 %v3459
        %v4298 = vunpack.c.h.b16 %v3459
        %v4299 = vunpack.c.l.b16 %v3460
        %v4300 = vunpack.c.h.b16 %v3460
        %v4301 = vunpack.c.l.b16 %v3461
        %v4302 = vunpack.c.h.b16 %v3461
        %v4303 = vunpack.c.l.b16 %v3462
        %v4304 = vunpack.c.h.b16 %v3462
        %v4305 = vunpack.c.l.b16 %v3463
        %v4306 = vunpack.c.h.b16 %v3463
        %v4307 = vunpack.c.l.b16 %v3464
        %v4308 = vunpack.c.h.b16 %v3464
        %v4309 = vunpack.c.l.b16 %v3465
        %v4310 = vunpack.c.h.b16 %v3465
        %v4311 = vunpack.c.l.b16 %v3466
        %v4312 = vunpack.c.h.b16 %v3466
        %v4313 = vpack.c.b16 %v4283, %v4281
        %v4314 = vpack.c.b16 %v4284, %v4282
        %v4315 = vpack.c.b16 %v4287, %v4285
        %v4316 = vpack.c.b16 %v4288, %v4286
        %v4317 = vpack.c.b16 %v4291, %v4289
        %v4318 = vpack.c.b16 %v4292, %v4290
        %v4319 = vpack.c.b16 %v4295, %v4293
        %v4320 = vpack.c.b16 %v4296, %v4294
        %v4321 = vpack.c.b16 %v4299, %v4297
        %v4322 = vpack.c.b16 %v4300, %v4298
        %v4323 = vpack.c.b16 %v4303, %v4301
        %v4324 = vpack.c.b16 %v4304, %v4302
        %v4325 = vpack.c.b16 %v4307, %v4305
        %v4326 = vpack.c.b16 %v4308, %v4306
        %v4327 = vpack.c.b16 %v4311, %v4309
        %v4328 = vpack.c.b16 %v4312, %v4310
        %4345 = vmatpush.bf16.xpose.msra.mxu0 %v4327
        %4346 = vmatpush.bf16.xpose.msra.mxu0 %v4325
        %4347 = vmatpush.bf16.xpose.msra.mxu0 %v4323
        %4348 = vmatpush.bf16.xpose.msra.mxu0 %v4321
        %4349 = vmatpush.bf16.xpose.msra.mxu0 %v4319
        %4350 = vmatpush.bf16.xpose.msra.mxu0 %v4317
        %4351 = vmatpush.bf16.xpose.msra.mxu0 %v4315
        %4352 = vmatpush.bf16.xpose.msra.mxu0 %v4313
        %4353 = vmatmul.bf16.gmra.mxu0 %v4261
        %v4354 = vpop.f32.mrf.mxu0
        %v4355 = vadd.f32 0.0, %v4354
        %v4356 = vpop.f32.mrf.mxu0
        %4357 = vdwg.mxu0
        %4358 = vmatpush.bf16.xpose.msra.mxu0 %v4328
        %4359 = vmatpush.bf16.xpose.msra.mxu0 %v4326
        %4360 = vmatpush.bf16.xpose.msra.mxu0 %v4324
        %4361 = vmatpush.bf16.xpose.msra.mxu0 %v4322
        %4362 = vmatpush.bf16.xpose.msra.mxu0 %v4320
        %4363 = vmatpush.bf16.xpose.msra.mxu0 %v4318
        %4364 = vmatpush.bf16.xpose.msra.mxu0 %v4316
        %4365 = vmatpush.bf16.xpose.msra.mxu0 %v4314
        %4366 = vmatmul.bf16.gmra.mxu0 %v4262
        %v4367 = vpop.f32.mrf.mxu0
        %v4368 = vadd.f32 %v4355, %v4367
        %v4369 = vpop.f32.mrf.mxu0
        %4370 = vdwg.mxu0
        %v4371 = vrcp.pop %v3577
        %v4372 = vrcp.pop %v3690
        %v4373 = vrcp.pop %v3803
        %v4374 = vrcp.pop %v3916
        %v4375 = vrcp.pop %v4029
        %v4376 = vrcp.pop %v4142
        %v4377 = vrcp.pop %v4255
        %v4378 = vrcp.pop %v4368
        %v4379 = vperm.slane %v4371, 4
        %v4380 = vperm.slane %v4372, 4
        %v4381 = vperm.slane %v4373, 4
        %v4382 = vperm.slane %v4374, 4
        %v4383 = vperm.slane %v4375, 4
        %v4384 = vperm.slane %v4376, 4
        %v4385 = vperm.slane %v4377, 4
        %v4386 = vperm.slane %v4378, 4
        %v4387 = vmul.f32 %v3577, %v4379
        %v4388 = vmul.f32 %v3690, %v4380
        %v4389 = vmul.f32 %v3803, %v4381
        %v4390 = vmul.f32 %v3916, %v4382
        %v4391 = vmul.f32 %v4029, %v4383
        %v4392 = vmul.f32 %v4142, %v4384
        %v4393 = vmul.f32 %v4255, %v4385
        %v4394 = vmul.f32 %v4368, %v4386
        %v4395 = vpack.c.bf16 %v4388, %v4387
        %v4396 = vpack.c.bf16 %v4390, %v4389
        %v4397 = vpack.c.bf16 %v4392, %v4391
        %v4398 = vpack.c.bf16 %v4394, %v4393
        %v4399 = vld [vmem:[%s9] sm:$0xf]
        %v4400 = vld [vmem:[%s9 + $0x4] sm:$0xf]
        %v4401 = vld [vmem:[%s9 + $0x8] sm:$0xf]
        %v4402 = vld [vmem:[%s9 + $0xc] sm:$0xf]
        %v4403 = vld [vmem:[%s10] sm:$0xff]
        %v4404 = vld [vmem:[%s10 + $0x8] sm:$0xff]
        %v4405 = vld [vmem:[%s10 + $0x10] sm:$0xff]
        %v4406 = vld [vmem:[%s10 + $0x18] sm:$0xff]
        %4408 = vset.pattern.permute.xlu0 0
        %4409 = vperm.xlu0 %4408, %v4403
        %v4410 = vpop.permute.xlu0 %4409
        %4413 = vset.pattern.permute.xlu0 0
        %4414 = vperm.xlu0 %4413, %v4404
        %v4415 = vpop.permute.xlu0 %4414
        %4418 = vset.pattern.permute.xlu0 0
        %4419 = vperm.xlu0 %4418, %v4405
        %v4420 = vpop.permute.xlu0 %4419
        %4423 = vset.pattern.permute.xlu0 0
        %4424 = vperm.xlu0 %4423, %v4406
        %v4425 = vpop.permute.xlu0 %4424
        %v4431 = vunpack.c.l.b16 %v4399
        %v4432 = vunpack.c.l.b16 %v4400
        %v4433 = vunpack.c.l.b16 %v4401
        %v4434 = vunpack.c.l.b16 %v4402
        %v4435 = vpack.c.b16 %v4432, %v4431
        %v4436 = vpack.c.b16 %v4434, %v4433
        %vm4437 = vcmask 523264
        %v4439 = vsel %vm4437, %v4435, 0
        %v4442 = vsel %vm4437, %v4436, 0
        %4444 = vmatpush.bf16.msra.mxu0 0
        %4445 = vmatpush.bf16.msra.mxu0 0
        %4446 = vmatpush.bf16.msra.mxu0 0
        %4447 = vmatpush.bf16.msra.mxu0 0
        %4448 = vmatpush.bf16.msra.mxu0 %v4398
        %4449 = vmatpush.bf16.msra.mxu0 %v4397
        %4450 = vmatpush.bf16.msra.mxu0 %v4396
        %4451 = vmatpush.bf16.msra.mxu0 %v4395
        %4452 = vmatmul.bf16.gmra.mxu0 %v4439
        %v4453 = vpop.f32.mrf.mxu0
        %v4454 = vadd.f32 %v4410, %v4453
        %v4455 = vpop.f32.mrf.mxu0
        %v4456 = vadd.f32 %v4415, %v4455
        %4457 = vmatmul.bf16.gmra.mxu0 %v4442
        %v4458 = vpop.f32.mrf.mxu0
        %v4459 = vadd.f32 %v4420, %v4458
        %v4460 = vpop.f32.mrf.mxu0
        %v4461 = vadd.f32 %v4425, %v4460
        %4462 = vdwg.mxu0
        %4463 = vst [vmem:[%s483] sm:$0xff] %v4454
        %4464 = vst [vmem:[%s483 + $0x8] sm:$0xff] %v4456
        %4465 = vst [vmem:[%s483 + $0x10] sm:$0xff] %v4459
        %4466 = vst [vmem:[%s483 + $0x18] sm:$0xff] %v4461
        %s4467 = sand.u32 %s292, 1
        %s4468 = sand.u32 %s292, 1
        %s4469 = smul.addr %s4468, 32
        %s4470 = scalar_lea.vmem [#allocation3], %s4469
        // Predicated region
        $region106: #{window_shift_attention_forward.1} parent=100 // pred_check
          %p4471 = pneg %p302
        $region107: #{window_shift_attention_forward.1} parent=100 // pred_check_branch
          %4473 = sbr.rel (%p4471) target = $region109
        $region108: #{window_shift_attention_forward.1} parent=100 // pred_region
          %s4474 = smul.addr %s26, 8
          %s4475 = sadd.s32 %s27, %s4474
          %s4476 = smul.addr %s4475, 8
          %s4477 = scalar_lea.vmem %s11, %s4476
          // Predicated region
          $region110: #{window_shift_attention_forward.1} parent=108 // pred_check
            _
          $region111: #{window_shift_attention_forward.1} parent=108 // pred_check_branch
            %4479 = sbr.rel (0) target = $region113
          $region112: #{window_shift_attention_forward.1} parent=108 // pred_region
            // Predicated region
            $region114: #{window_shift_attention_forward.1} parent=112 // pred_check
              _
            $region115: #{window_shift_attention_forward.1} parent=112 // pred_check_branch
              %4481 = sbr.rel (0) target = $region117
            $region116: #{window_shift_attention_forward.1} parent=112 // pred_region
              // Predicated region
              $region129: #{window_shift_attention_forward.1} parent=116 // pred_check
                _
              $region130: #{window_shift_attention_forward.1} parent=116 // pred_check_branch
                %4503 = sbr.rel (0) target = $region132
              $region131: #{window_shift_attention_forward.1} parent=116 // pred_region
                loop: start=0, step=1, limit=1
                $region133: #{window_shift_attention_forward.1} parent=131 // loop_pre_header
                  _
                $region134: #{window_shift_attention_forward.1} parent=131 // loop_header
                  %s4505 = sphi 0, %s4509
                  %p4506 = scmp.ge.s32.totalorder %s4505, 1
                  %s4510 = sphi %s4470, %s4470
                  %s4511 = sphi %s4477, %s4477
                $region135: #{window_shift_attention_forward.1} parent=131 // loop_header_branch
                  %4508 = sbr.rel (%p4506) target = $region139
                $region136: #{window_shift_attention_forward.1} parent=131 // loop_body
                  %v4512 = vld [vmem:[%s4510] sm:$0xff]
                  %4513 = vst [vmem:[%s4511] sm:$0xff] %v4512
                  %v4514 = vld [vmem:[%s4510 + $0x8] sm:$0xff]
                  %4515 = vst [vmem:[%s4511 + $0x10] sm:$0xff] %v4514
                  %v4516 = vld [vmem:[%s4510 + $0x10] sm:$0xff]
                  %4517 = vst [vmem:[%s4511 + $0x20] sm:$0xff] %v4516
                  %v4518 = vld [vmem:[%s4510 + $0x18] sm:$0xff]
                  %4519 = vst [vmem:[%s4511 + $0x30] sm:$0xff] %v4518
                $region137: #{window_shift_attention_forward.1} parent=131 // loop_footer
                  %s4509 = sadd.s32 1, %s4505
                $region138: #{window_shift_attention_forward.1} parent=131 // loop_footer_branch
                  %4504 = sbr.rel target = $region134
                $region139: #{window_shift_attention_forward.1} parent=131 // loop_exit
                  _
              $region132: #{window_shift_attention_forward.1} parent=116 // pred_fallthru
                _
              // Predicated region
              $region140: #{window_shift_attention_forward.1} parent=116 // pred_check
                _
              $region141: #{window_shift_attention_forward.1} parent=116 // pred_check_branch
                %4521 = sbr.rel target = $region143
              $region142: #{window_shift_attention_forward.1} parent=116 // pred_region
                _
              $region143: #{window_shift_attention_forward.1} parent=116 // pred_fallthru
                _
            $region117: #{window_shift_attention_forward.1} parent=112 // pred_fallthru
              _
            // Predicated region
            $region118: #{window_shift_attention_forward.1} parent=112 // pred_check
              _
            $region119: #{window_shift_attention_forward.1} parent=112 // pred_check_branch
              %4483 = sbr.rel target = $region121
            $region120: #{window_shift_attention_forward.1} parent=112 // pred_region
              %s4485 = ssub.s32 256, 1
              loop: start=0, step=1, limit=1
              $region122: #{window_shift_attention_forward.1} parent=120 // loop_pre_header
                _
              $region123: #{window_shift_attention_forward.1} parent=120 // loop_header
                %s4487 = sphi 0, %s4491
                %p4488 = scmp.ge.s32.totalorder %s4487, 1
                %s4492 = sphi %s4470, %s4470
                %s4493 = sphi %s4477, %s4477
              $region124: #{window_shift_attention_forward.1} parent=120 // loop_header_branch
                %4490 = sbr.rel (%p4488) target = $region128
              $region125: #{window_shift_attention_forward.1} parent=120 // loop_body
                %v4494 = vld [vmem:[%s4492] sm:%s4485]
                %4495 = vst [vmem:[%s4493] sm:%s4485] %v4494
                %v4496 = vld [vmem:[%s4492 + $0x8] sm:%s4485]
                %4497 = vst [vmem:[%s4493 + $0x10] sm:%s4485] %v4496
                %v4498 = vld [vmem:[%s4492 + $0x10] sm:%s4485]
                %4499 = vst [vmem:[%s4493 + $0x20] sm:%s4485] %v4498
                %v4500 = vld [vmem:[%s4492 + $0x18] sm:%s4485]
                %4501 = vst [vmem:[%s4493 + $0x30] sm:%s4485] %v4500
              $region126: #{window_shift_attention_forward.1} parent=120 // loop_footer
                %s4491 = sadd.s32 1, %s4487
              $region127: #{window_shift_attention_forward.1} parent=120 // loop_footer_branch
                %4486 = sbr.rel target = $region123
              $region128: #{window_shift_attention_forward.1} parent=120 // loop_exit
                _
            $region121: #{window_shift_attention_forward.1} parent=112 // pred_fallthru
              _
          $region113: #{window_shift_attention_forward.1} parent=108 // pred_fallthru
            _
          %4522 = vnop
        $region109: #{window_shift_attention_forward.1} parent=100 // pred_fallthru
          _
      $region101: #{window_shift_attention_forward.1} parent=5 // pred_fallthru
        _
      %p4523 = scmp.le.s32.totalorder 2, %s17
      // Predicated region
      $region144: #{window_shift_attention_forward.1} parent=5 // pred_check
        %p4524 = pneg %p4523
      $region145: #{window_shift_attention_forward.1} parent=5 // pred_check_branch
        %4526 = sbr.rel (%p4524) target = $region147
      $region146: #{window_shift_attention_forward.1} parent=5 // pred_region
        %s4527 = ssub.s32 %s17, 2
        // Predicated region
        $region148: #{window_shift_attention_forward.1} parent=146 // pred_check
          %p4528 = pneg %p308
        $region149: #{window_shift_attention_forward.1} parent=146 // pred_check_branch
          %4530 = sbr.rel (%p4528) target = $region151
        $region150: #{window_shift_attention_forward.1} parent=146 // pred_region
          %s4531 = sand.u32 %s293, 1
          %s4532 = sand.u32 %s293, 1
          %s4533 = smul.addr %s4532, 32
          %s4534 = scalar_lea.vmem [#allocation3], %s4533
        $region151: #{window_shift_attention_forward.1} parent=146 // pred_fallthru
          _
      $region147: #{window_shift_attention_forward.1} parent=5 // pred_fallthru
        _
    $region6: #{window_shift_attention_forward.1} parent=1 // loop_footer
      %s21 = sadd.s32 1, %s17
    $region7: #{window_shift_attention_forward.1} parent=1 // loop_footer_branch
      %16 = sbr.rel target = $region3
    $region8: #{window_shift_attention_forward.1} parent=1 // loop_exit
      _

</llo_original>
